<compile_context>
chip_gen: v7x
topology: tpu7x:2x2x1
jax: 0.10.0
libtpu: 0.0.40
codegen_flags: <defaults>
</compile_context>

<pallas_src>
import functools

import numpy as np
import jax
import jax.numpy as jnp
from jax.experimental import pallas as pl
from jax.experimental.pallas import tpu as pltpu


# ----------------------------------------------------------------------------
# trace-time (static) pooling / interpolation matrices
# ----------------------------------------------------------------------------
def _adaptive_pool_matrix(out_size, in_size):
    """A[i, h] = 1/len(window_i) if h in window_i else 0 (PyTorch adaptive avg pool)."""
    a = np.zeros((out_size, in_size), np.float32)
    for i in range(out_size):
        s = (i * in_size) // out_size
        e = -(-((i + 1) * in_size) // out_size)  # ceil
        a[i, s:e] = 1.0 / (e - s)
    return a


def _bilinear_matrix(out_size, in_size):
    """B[h, i]: bilinear (1-D) interpolation weights, align_corners=True."""
    b = np.zeros((out_size, in_size), np.float32)
    if in_size == 1:
        b[:, 0] = 1.0
        return b
    if out_size == 1:
        b[0, 0] = 1.0
        return b
    for h in range(out_size):
        src = h * (in_size - 1) / (out_size - 1)
        i0 = min(int(np.floor(src)), in_size - 2)
        f = src - i0
        b[h, i0] += 1.0 - f
        b[h, i0 + 1] += f
    return b


def _build_ppm_matrices(pyramids, h, w, rows, hw_pad):
    """P[b*rows + i*bin + j, s] = Ah[i,h]*Aw[j,w]  (branch-stacked pooling, zero padded)
       U[b, i*bin + j, s]       = Bh[h,i]*Bw[w,j]  (upsample, zero-row padded)."""
    nb = len(pyramids)
    hw = h * w
    p_all = np.zeros((nb * rows, hw_pad), np.float32)
    u_all = np.zeros((nb, rows, hw), np.float32)
    for bi, b in enumerate(pyramids):
        ah = _adaptive_pool_matrix(b, h)
        aw = _adaptive_pool_matrix(b, w)
        bh = _bilinear_matrix(h, b)
        bw = _bilinear_matrix(w, b)
        p_all[bi * rows: bi * rows + b * b, :hw] = np.einsum(
            "ih,jw->ijhw", ah, aw).reshape(b * b, hw)
        u_all[bi, : b * b, :] = np.einsum("hi,wj->ijhw", bh, bw).reshape(b * b, hw)
    return p_all, u_all


def _pick_hw_tiling(hw, cin, max_block_bytes=8 * 2 ** 20):
    """Choose the H*W contraction tile so the bf16 x block stays VMEM-friendly
    (v7x has only 64 MiB physical VMEM). Single full block when it already fits."""
    if cin * hw * 2 <= max_block_bytes:
        return hw, 1, hw
    tile = max(128, ((max_block_bytes // (2 * cin)) // 128) * 128)
    n_t = pl.cdiv(hw, tile)
    return tile, n_t, tile * n_t


def _vmem_limit(*byte_counts):
    est = 2 * sum(int(b) for b in byte_counts) + (4 << 20)
    return int(min(max(est, 32 << 20), 64 << 20))


# ----------------------------------------------------------------------------
# Kernel A: fused adaptive-avg-pool (all branches, hw-tiled accumulation)
#           + 1x1 conv (bf16 MXU, f32 accumulate, channel-major output)
#           + per-sample BatchNorm partial sums / sums-of-squares.
# Grid = (sample, hw_tile);   hw_tile axis is the "arbitrary" reduction axis.
# ----------------------------------------------------------------------------
def _pool_conv_stats_kernel(x_ref, p_ref, w_ref, y_ref, s1_ref, s2_ref, acc_ref,
                            *, nb, rows):
    t = pl.program_id(1)

    @pl.when(t == 0)
    def _():
        acc_ref[...] = jnp.zeros_like(acc_ref)

    # pooled[c, b*rows + r] += sum_s x[c, s] * P[b*rows + r, s]   (NT matmul)
    acc_ref[...] += jax.lax.dot_general(
        x_ref[0], p_ref[...], (((1,), (1,)), ((), ())),
        preferred_element_type=jnp.float32)

    @pl.when(t == pl.num_programs(1) - 1)
    def _():
        for b in range(nb):                                  # static unroll (nb=4)
            pooled_b = acc_ref[:, b * rows:(b + 1) * rows].astype(jnp.bfloat16)
            # 1x1 conv as a channel matmul, kept channel-major: (coutp, rows)
            y_b = jnp.dot(w_ref[b], pooled_b, preferred_element_type=jnp.float32)
            y_ref[0, b] = y_b
            # zero-padded rows contribute 0 to both sums -> no masking needed
            # TODO(synk): chunk the coutp axis here if coutp >= 1024 (vreg pressure).
            s1_ref[0, b] = jnp.sum(y_b, axis=1, keepdims=True)
            s2_ref[0, b] = jnp.sum(y_b * y_b, axis=1, keepdims=True)


# ----------------------------------------------------------------------------
# Kernel B: fused BN affine + ReLU + bilinear upsample.
# One plain NN matmul whose (coutp, H*W) output slab is lane-dense and written
# exactly once per (branch, sample); no XLA transpose of y is needed.
# ----------------------------------------------------------------------------
def _bn_relu_upsample_kernel(y_ref, sc_ref, sh_ref, u_ref, o_ref):
    a = jnp.maximum(y_ref[0, 0] * sc_ref[0] + sh_ref[0], 0.0)     # (coutp, rows) f32
    o_ref[0, 0] = jnp.dot(a.astype(jnp.bfloat16), u_ref[0],
                          preferred_element_type=jnp.float32)      # (coutp, hw)


# ----------------------------------------------------------------------------
# Wrapper
# ----------------------------------------------------------------------------
@functools.partial(jax.jit, static_argnames=("pyramids", "eps"))
def ppm_forward(x, weight, gamma, beta, *, pyramids=(1, 2, 3, 6), eps=1e-5):
    """PyramidPoolingModule forward.

    x:      [N, Cin, H, W]           (NCHW, like the PyTorch module)
    weight: [n_branch, Cout, Cin]    (the 1x1 conv kernels, weight[..., 0, 0])
    gamma:  [n_branch, Cout]         (BatchNorm weight per branch)
    beta:   [n_branch, Cout]         (BatchNorm bias per branch)
    Returns [N, Cin + n_branch*Cout, H, W].
    BatchNorm uses training-mode batch statistics (PyTorch default forward).
    Intentional precision trade: pooling / conv / upsample matmuls run on bf16
    MXU inputs with f32 accumulation.
    """
    n, cin, h, wd = x.shape
    nb = len(pyramids)
    cout = weight.shape[1]
    hw = h * wd

    coutp = 128 * pl.cdiv(cout, 128)                         # lane-dense conv channels
    rows = 16 * pl.cdiv(max(b * b for b in pyramids), 16)    # 48: bf16 (16,128) tiles
    nbrows = nb * rows

    hw_tile, n_t, hw_pad = _pick_hw_tiling(hw, cin)

    p_np, u_np = _build_ppm_matrices(pyramids, h, wd, rows, hw_pad)
    p_all = jnp.asarray(p_np, dtype=jnp.bfloat16)            # (nbrows, hw_pad)
    u_all = jnp.asarray(u_np, dtype=jnp.bfloat16)            # (nb, rows, hw)

    # NCHW -> (n, cin, hw) is a free reshape (no NHWC transpose); bf16 halves the
    # dominant x DMA / VMEM footprint and feeds the MXU its native dtype.
    x_bf = x.reshape(n, cin, hw).astype(jnp.bfloat16)
    if hw_pad != hw:
        # TODO(synk): this pad costs one extra pass over x; only hit when the
        # hw contraction is tiled and hw is not a multiple of the tile.
        x_bf = jnp.pad(x_bf, ((0, 0), (0, 0), (0, hw_pad - hw)))

    w_pad = jnp.zeros((nb, coutp, cin), jnp.bfloat16)
    w_pad = w_pad.at[:, :cout, :].set(weight.astype(jnp.bfloat16))

    vmem_a = _vmem_limit(cin * hw_tile * 2, nbrows * hw_tile * 2,
                         nb * coutp * cin * 2, nb * coutp * rows * 4,
                         2 * nb * coutp * 4, cin * nbrows * 4)

    # ------------- Kernel A: pool + 1x1 conv + BN partial stats -------------
    y, s1, s2 = pl.pallas_call(
        functools.partial(_pool_conv_stats_kernel, nb=nb, rows=rows),
        out_shape=(
            jax.ShapeDtypeStruct((n, nb, coutp, rows), jnp.float32),
            jax.ShapeDtypeStruct((n, nb, coutp, 1), jnp.float32),
            jax.ShapeDtypeStruct((n, nb, coutp, 1), jnp.float32),
        ),
        grid=(n, n_t),
        in_specs=[
            pl.BlockSpec((1, cin, hw_tile), lambda i, t: (i, 0, t)),
            pl.BlockSpec((nbrows, hw_tile), lambda i, t: (0, t)),
            pl.BlockSpec((nb, coutp, cin), lambda i, t: (0, 0, 0)),
        ],
        out_specs=(
            pl.BlockSpec((1, nb, coutp, rows), lambda i, t: (i, 0, 0, 0)),
            pl.BlockSpec((1, nb, coutp, 1), lambda i, t: (i, 0, 0, 0)),
            pl.BlockSpec((1, nb, coutp, 1), lambda i, t: (i, 0, 0, 0)),
        ),
        scratch_shapes=[pltpu.VMEM((cin, nbrows), jnp.float32)],
        compiler_params=pltpu.CompilerParams(
            dimension_semantics=("parallel", "arbitrary"),
            vmem_limit_bytes=vmem_a),
    )(x_bf, p_all, w_pad)

    # ----------- BatchNorm fold (tiny per-channel scalar math, JAX) ---------
    m_true = jnp.asarray([n * b * b for b in pyramids], jnp.float32).reshape(nb, 1)
    col_sum = jnp.sum(s1[:, :, :, 0], axis=0)                # (nb, coutp)
    col_sq = jnp.sum(s2[:, :, :, 0], axis=0)                 # (nb, coutp)
    mean = col_sum / m_true
    var = col_sq / m_true - mean * mean                      # biased, BN training fwd
    # TODO(synk): switch to a two-pass (centered) variance if parity tighter than
    # ~1e-2 is needed for large-mean backbone activations.
    inv_std = jax.lax.rsqrt(var + eps)
    g_pad = jnp.zeros((nb, coutp), jnp.float32).at[:, :cout].set(gamma.astype(jnp.float32))
    b_pad = jnp.zeros((nb, coutp), jnp.float32).at[:, :cout].set(beta.astype(jnp.float32))
    scale = (g_pad * inv_std).reshape(nb, coutp, 1)
    shift = (b_pad - g_pad * inv_std * mean).reshape(nb, coutp, 1)

    vmem_b = _vmem_limit(coutp * rows * 4, 2 * coutp * 4,
                         rows * hw * 2, coutp * hw * 4)

    # -------- Kernel B: fused BN affine + ReLU + bilinear upsample ----------
    up = pl.pallas_call(
        _bn_relu_upsample_kernel,
        out_shape=jax.ShapeDtypeStruct((n, nb, coutp, hw), jnp.float32),
        grid=(nb, n),
        in_specs=[
            pl.BlockSpec((1, 1, coutp, rows), lambda b, i: (i, b, 0, 0)),
            pl.BlockSpec((1, coutp, 1), lambda b, i: (b, 0, 0)),
            pl.BlockSpec((1, coutp, 1), lambda b, i: (b, 0, 0)),
            pl.BlockSpec((1, rows, hw), lambda b, i: (b, 0, 0)),
        ],
        out_specs=pl.BlockSpec((1, 1, coutp, hw), lambda b, i: (i, b, 0, 0)),
        compiler_params=pltpu.CompilerParams(
            dimension_semantics=("parallel", "parallel"),
            vmem_limit_bytes=vmem_b),
    )(y, scale, shift, u_all)

    up = up[:, :, :cout, :].reshape(n, nb * cout, h, wd)
    # TODO(synk): when cout % 8 == 0 and cout divides cin, write the branch slabs
    # directly into a preallocated (n, cin + nb*cout, hw) buffer via
    # input_output_aliases to drop this concatenate round trip.
    return jnp.concatenate([x.astype(jnp.float32), up], axis=1)   # [x, branch0..3]


# ----------------------------------------------------------------------------
# Pure-JAX reference (independent composition, for the correctness check).
# The bf16 casts mirror the kernel's deliberate bf16 MXU inputs.
# ----------------------------------------------------------------------------
def _reference(x, weight, gamma, beta, pyramids, eps=1e-5):
    n, cin, h, wd = x.shape
    xf = x.astype(jnp.float32)
    xq = x.astype(jnp.bfloat16).astype(jnp.float32)          # mirror bf16 x
    feats = [xf]
    for bi, b in enumerate(pyramids):
        ah = jnp.asarray(_adaptive_pool_matrix(b, h))
        aw = jnp.asarray(_adaptive_pool_matrix(b, wd))
        pooled = jnp.einsum("ih,jw,nchw->ncij", ah, aw, xq)
        pooled = pooled.astype(jnp.bfloat16).astype(jnp.float32)
        wb = weight[bi].astype(jnp.bfloat16).astype(jnp.float32)   # (cout, cin)
        y = jnp.einsum("ncij,oc->noij", pooled, wb)
        mean = y.mean(axis=(0, 2, 3), keepdims=True)
        var = y.var(axis=(0, 2, 3), keepdims=True)                 # biased
        z = (y - mean) * jax.lax.rsqrt(var + eps)
        z = z * gamma[bi][None, :, None, None] + beta[bi][None, :, None, None]
        z = jnp.maximum(z, 0.0)
        bh = jnp.asarray(_bilinear_matrix(h, b))
        bw = jnp.asarray(_bilinear_matrix(wd, b))
        feats.append(jnp.einsum("hi,wj,noij->nohw", bh, bw, z))
    return jnp.concatenate(feats, axis=1)


if __name__ == "__main__":
    # PyramidPoolingModule(in_channels=8, pyramids=[1, 2, 3, 6]) -> Cout = 2
    N, Cin, H, W = 2, 8, 16, 16
    pyramids = (1, 2, 3, 6)
    Cout = Cin // len(pyramids)

    key = jax.random.PRNGKey(0)
    kx, kw, kg, kb = jax.random.split(key, 4)
    x = jax.random.normal(kx, (N, Cin, H, W), dtype=jnp.float32)
    weight = jax.random.normal(kw, (len(pyramids), Cout, Cin), dtype=jnp.float32) * 0.2
    gamma = 1.0 + 0.1 * jax.random.normal(kg, (len(pyramids), Cout), dtype=jnp.float32)
    beta = 0.1 * jax.random.normal(kb, (len(pyramids), Cout), dtype=jnp.float32)

    out = ppm_forward(x, weight, gamma, beta, pyramids=pyramids)
    out = jax.block_until_ready(out)

    ref = _reference(x, weight, gamma, beta, pyramids)
    assert out.shape == (N, Cin + len(pyramids) * Cout, H, W), out.shape
    # the first Cin channels are an exact pass-through of the input
    assert bool(jnp.array_equal(out[:, :Cin], x))
    max_err = float(jnp.max(jnp.abs(out - ref)))
    # tolerance covers the deliberate bf16 MXU inputs + BN normalization
    assert jnp.allclose(out, ref, atol=5e-2, rtol=5e-2), max_err

    print("KERNEL_OK")
</pallas_src>

<mosaic_0001>
module attributes {stable_mosaic.version = 11 : i64} {
  func.func @_pool_conv_stats_kernel(%arg0: i32, %arg1: i32, %arg2: memref<1x8x256xbf16, #tpu.memory_space<vmem>>, %arg3: memref<192x256xbf16, #tpu.memory_space<vmem>>, %arg4: memref<4x128x8xbf16, #tpu.memory_space<vmem>>, %arg5: memref<1x4x128x48xf32, #tpu.memory_space<vmem>>, %arg6: memref<1x4x128x1xf32, #tpu.memory_space<vmem>>, %arg7: memref<1x4x128x1xf32, #tpu.memory_space<vmem>>, %arg8: memref<8x192xf32, #tpu.memory_space<vmem>>) attributes {dimension_semantics = [#tpu.dimension_semantics<parallel>, #tpu.dimension_semantics<arbitrary>], iteration_bounds = array<i64: 2, 1>, scalar_prefetch = 0 : i64, scratch_operands = 1 : i64, tpu.core_type = #tpu.core_type<tc>, window_params = [{transform_indices = @transform_0, window_bounds = array<i64: 1, 8, 256>}, {transform_indices = @transform_1, window_bounds = array<i64: 192, 256>}, {pipeline_mode = #tpu.pipeline_mode<synchronous>, transform_indices = @transform_2, window_bounds = array<i64: 4, 128, 8>}, {transform_indices = @transform_3, window_bounds = array<i64: 1, 4, 128, 48>}, {transform_indices = @transform_4, window_bounds = array<i64: 1, 4, 128, 1>}, {transform_indices = @transform_5, window_bounds = array<i64: 1, 4, 128, 1>}]} {
    %c0_i32 = arith.constant 0 : i32
    %0 = arith.cmpi eq, %arg1, %c0_i32 : i32
    %1 = arith.extui %0 : i1 to i32
    %c0_i32_0 = arith.constant 0 : i32
    %2 = arith.cmpi ne, %1, %c0_i32_0 : i32
    scf.if %2 {
      %cst_11 = arith.constant 0.000000e+00 : f32
      %13 = vector.broadcast %cst_11 : f32 to vector<8x192xf32>
      %c0_12 = arith.constant 0 : index
      %c0_13 = arith.constant 0 : index
      %14 = vector.load %arg8[%c0_12, %c0_13] : memref<8x192xf32, #tpu.memory_space<vmem>>, vector<8x192xf32>
      tpu.vector_store %arg8[%c0_12, %c0_13], %13 {strides = array<i32>} : memref<8x192xf32, #tpu.memory_space<vmem>>, vector<8x192xf32>,
    } else {
    }
    %c0 = arith.constant 0 : index
    %c0_1 = arith.constant 0 : index
    %3 = vector.load %arg8[%c0, %c0_1] : memref<8x192xf32, #tpu.memory_space<vmem>>, vector<8x192xf32>
    %c0_2 = arith.constant 0 : index
    %c0_3 = arith.constant 0 : index
    %c0_4 = arith.constant 0 : index
    %4 = vector.load %arg2[%c0_2, %c0_3, %c0_4] : memref<1x8x256xbf16, #tpu.memory_space<vmem>>, vector<1x8x256xbf16>
    %5 = vector.shape_cast %4 : vector<1x8x256xbf16> to vector<8x256xbf16>
    %c0_5 = arith.constant 0 : index
    %c0_6 = arith.constant 0 : index
    %6 = vector.load %arg3[%c0_5, %c0_6] : memref<192x256xbf16, #tpu.memory_space<vmem>>, vector<192x256xbf16>
    %cst = arith.constant dense<0.000000e+00> : vector<8x192xf32>
    %7 = tpu.matmul %5, %6, %cst {dimension_numbers = #tpu.dot_dimension_numbers<[1], [1], [0], [0], [0, 0, 1, 0], [], []>} : vector<8x256xbf16>, vector<192x256xbf16>, vector<8x192xf32> -> vector<8x192xf32>
    %8 = arith.addf %3, %7 : vector<8x192xf32>
    %c0_7 = arith.constant 0 : index
    %c0_8 = arith.constant 0 : index
    %9 = vector.load %arg8[%c0_7, %c0_8] : memref<8x192xf32, #tpu.memory_space<vmem>>, vector<8x192xf32>
    tpu.vector_store %arg8[%c0_7, %c0_8], %8 {strides = array<i32>} : memref<8x192xf32, #tpu.memory_space<vmem>>, vector<8x192xf32>,
    %c0_i32_9 = arith.constant 0 : i32
    %10 = arith.cmpi eq, %arg1, %c0_i32_9 : i32
    %11 = arith.extui %10 : i1 to i32
    %c0_i32_10 = arith.constant 0 : i32
    %12 = arith.cmpi ne, %11, %c0_i32_10 : i32
    scf.if %12 {
      %c0_11 = arith.constant 0 : index
      %c0_12 = arith.constant 0 : index
      %13 = vector.load %arg8[%c0_11, %c0_12] : memref<8x192xf32, #tpu.memory_space<vmem>>, vector<8x48xf32>
      %14 = arith.truncf %13 : vector<8x48xf32> to vector<8x48xbf16>
      %c0_13 = arith.constant 0 : index
      %c0_14 = arith.constant 0 : index
      %c0_15 = arith.constant 0 : index
      %15 = vector.load %arg4[%c0_13, %c0_14, %c0_15] : memref<4x128x8xbf16, #tpu.memory_space<vmem>>, vector<1x128x8xbf16>
      %16 = vector.shape_cast %15 : vector<1x128x8xbf16> to vector<128x8xbf16>
      %cst_16 = arith.constant dense<0.000000e+00> : vector<128x48xf32>
      %17 = tpu.matmul %16, %14, %cst_16 {dimension_numbers = #tpu.dot_dimension_numbers<[1], [0], [0], [1], [0, 0, 1, 1], [], []>} : vector<128x8xbf16>, vector<8x48xbf16>, vector<128x48xf32> -> vector<128x48xf32>
      %c0_17 = arith.constant 0 : index
      %c0_18 = arith.constant 0 : index
      %c0_19 = arith.constant 0 : index
      %c0_20 = arith.constant 0 : index
      %18 = vector.load %arg5[%c0_17, %c0_18, %c0_19, %c0_20] : memref<1x4x128x48xf32, #tpu.memory_space<vmem>>, vector<1x1x128x48xf32>
      %19 = vector.shape_cast %18 : vector<1x1x128x48xf32> to vector<128x48xf32>
      %20 = vector.shape_cast %17 : vector<128x48xf32> to vector<1x1x128x48xf32>
      tpu.vector_store %arg5[%c0_17, %c0_18, %c0_19, %c0_20], %20 {strides = array<i32>} : memref<1x4x128x48xf32, #tpu.memory_space<vmem>>, vector<1x1x128x48xf32>,
      %cst_21 = arith.constant dense<0.000000e+00> : vector<128xf32>
      %21 = vector.multi_reduction <add>, %17, %cst_21 [1] : vector<128x48xf32> to vector<128xf32>
      %22 = vector.shape_cast %21 : vector<128xf32> to vector<128x1xf32>
      %c0_22 = arith.constant 0 : index
      %c0_23 = arith.constant 0 : index
      %c0_24 = arith.constant 0 : index
      %c0_25 = arith.constant 0 : index
      %23 = vector.load %arg6[%c0_22, %c0_23, %c0_24, %c0_25] : memref<1x4x128x1xf32, #tpu.memory_space<vmem>>, vector<1x1x128x1xf32>
      %24 = vector.shape_cast %23 : vector<1x1x128x1xf32> to vector<128x1xf32>
      %25 = vector.shape_cast %22 : vector<128x1xf32> to vector<1x1x128x1xf32>
      tpu.vector_store %arg6[%c0_22, %c0_23, %c0_24, %c0_25], %25 {strides = array<i32>} : memref<1x4x128x1xf32, #tpu.memory_space<vmem>>, vector<1x1x128x1xf32>,
      %26 = arith.mulf %17, %17 : vector<128x48xf32>
      %cst_26 = arith.constant dense<0.000000e+00> : vector<128xf32>
      %27 = vector.multi_reduction <add>, %26, %cst_26 [1] : vector<128x48xf32> to vector<128xf32>
      %28 = vector.shape_cast %27 : vector<128xf32> to vector<128x1xf32>
      %c0_27 = arith.constant 0 : index
      %c0_28 = arith.constant 0 : index
      %c0_29 = arith.constant 0 : index
      %c0_30 = arith.constant 0 : index
      %29 = vector.load %arg7[%c0_27, %c0_28, %c0_29, %c0_30] : memref<1x4x128x1xf32, #tpu.memory_space<vmem>>, vector<1x1x128x1xf32>
      %30 = vector.shape_cast %29 : vector<1x1x128x1xf32> to vector<128x1xf32>
      %31 = vector.shape_cast %28 : vector<128x1xf32> to vector<1x1x128x1xf32>
      tpu.vector_store %arg7[%c0_27, %c0_28, %c0_29, %c0_30], %31 {strides = array<i32>} : memref<1x4x128x1xf32, #tpu.memory_space<vmem>>, vector<1x1x128x1xf32>,
      %c0_31 = arith.constant 0 : index
      %c48 = arith.constant 48 : index
      %32 = vector.load %arg8[%c0_31, %c48] : memref<8x192xf32, #tpu.memory_space<vmem>>, vector<8x48xf32>
      %33 = arith.truncf %32 : vector<8x48xf32> to vector<8x48xbf16>
      %c1 = arith.constant 1 : index
      %c0_32 = arith.constant 0 : index
      %c0_33 = arith.constant 0 : index
      %34 = vector.load %arg4[%c1, %c0_32, %c0_33] : memref<4x128x8xbf16, #tpu.memory_space<vmem>>, vector<1x128x8xbf16>
      %35 = vector.shape_cast %34 : vector<1x128x8xbf16> to vector<128x8xbf16>
      %cst_34 = arith.constant dense<0.000000e+00> : vector<128x48xf32>
      %36 = tpu.matmul %35, %33, %cst_34 {dimension_numbers = #tpu.dot_dimension_numbers<[1], [0], [0], [1], [0, 0, 1, 1], [], []>} : vector<128x8xbf16>, vector<8x48xbf16>, vector<128x48xf32> -> vector<128x48xf32>
      %c0_35 = arith.constant 0 : index
      %c1_36 = arith.constant 1 : index
      %c0_37 = arith.constant 0 : index
      %c0_38 = arith.constant 0 : index
      %37 = vector.load %arg5[%c0_35, %c1_36, %c0_37, %c0_38] : memref<1x4x128x48xf32, #tpu.memory_space<vmem>>, vector<1x1x128x48xf32>
      %38 = vector.shape_cast %37 : vector<1x1x128x48xf32> to vector<128x48xf32>
      %39 = vector.shape_cast %36 : vector<128x48xf32> to vector<1x1x128x48xf32>
      tpu.vector_store %arg5[%c0_35, %c1_36, %c0_37, %c0_38], %39 {strides = array<i32>} : memref<1x4x128x48xf32, #tpu.memory_space<vmem>>, vector<1x1x128x48xf32>,
      %cst_39 = arith.constant dense<0.000000e+00> : vector<128xf32>
      %40 = vector.multi_reduction <add>, %36, %cst_39 [1] : vector<128x48xf32> to vector<128xf32>
      %41 = vector.shape_cast %40 : vector<128xf32> to vector<128x1xf32>
      %c0_40 = arith.constant 0 : index
      %c1_41 = arith.constant 1 : index
      %c0_42 = arith.constant 0 : index
      %c0_43 = arith.constant 0 : index
      %42 = vector.load %arg6[%c0_40, %c1_41, %c0_42, %c0_43] : memref<1x4x128x1xf32, #tpu.memory_space<vmem>>, vector<1x1x128x1xf32>
      %43 = vector.shape_cast %42 : vector<1x1x128x1xf32> to vector<128x1xf32>
      %44 = vector.shape_cast %41 : vector<128x1xf32> to vector<1x1x128x1xf32>
      tpu.vector_store %arg6[%c0_40, %c1_41, %c0_42, %c0_43], %44 {strides = array<i32>} : memref<1x4x128x1xf32, #tpu.memory_space<vmem>>, vector<1x1x128x1xf32>,
      %45 = arith.mulf %36, %36 : vector<128x48xf32>
      %cst_44 = arith.constant dense<0.000000e+00> : vector<128xf32>
      %46 = vector.multi_reduction <add>, %45, %cst_44 [1] : vector<128x48xf32> to vector<128xf32>
      %47 = vector.shape_cast %46 : vector<128xf32> to vector<128x1xf32>
      %c0_45 = arith.constant 0 : index
      %c1_46 = arith.constant 1 : index
      %c0_47 = arith.constant 0 : index
      %c0_48 = arith.constant 0 : index
      %48 = vector.load %arg7[%c0_45, %c1_46, %c0_47, %c0_48] : memref<1x4x128x1xf32, #tpu.memory_space<vmem>>, vector<1x1x128x1xf32>
      %49 = vector.shape_cast %48 : vector<1x1x128x1xf32> to vector<128x1xf32>
      %50 = vector.shape_cast %47 : vector<128x1xf32> to vector<1x1x128x1xf32>
      tpu.vector_store %arg7[%c0_45, %c1_46, %c0_47, %c0_48], %50 {strides = array<i32>} : memref<1x4x128x1xf32, #tpu.memory_space<vmem>>, vector<1x1x128x1xf32>,
      %c0_49 = arith.constant 0 : index
      %c96 = arith.constant 96 : index
      %51 = vector.load %arg8[%c0_49, %c96] : memref<8x192xf32, #tpu.memory_space<vmem>>, vector<8x48xf32>
      %52 = arith.truncf %51 : vector<8x48xf32> to vector<8x48xbf16>
      %c2 = arith.constant 2 : index
      %c0_50 = arith.constant 0 : index
      %c0_51 = arith.constant 0 : index
      %53 = vector.load %arg4[%c2, %c0_50, %c0_51] : memref<4x128x8xbf16, #tpu.memory_space<vmem>>, vector<1x128x8xbf16>
      %54 = vector.shape_cast %53 : vector<1x128x8xbf16> to vector<128x8xbf16>
      %cst_52 = arith.constant dense<0.000000e+00> : vector<128x48xf32>
      %55 = tpu.matmul %54, %52, %cst_52 {dimension_numbers = #tpu.dot_dimension_numbers<[1], [0], [0], [1], [0, 0, 1, 1], [], []>} : vector<128x8xbf16>, vector<8x48xbf16>, vector<128x48xf32> -> vector<128x48xf32>
      %c0_53 = arith.constant 0 : index
      %c2_54 = arith.constant 2 : index
      %c0_55 = arith.constant 0 : index
      %c0_56 = arith.constant 0 : index
      %56 = vector.load %arg5[%c0_53, %c2_54, %c0_55, %c0_56] : memref<1x4x128x48xf32, #tpu.memory_space<vmem>>, vector<1x1x128x48xf32>
      %57 = vector.shape_cast %56 : vector<1x1x128x48xf32> to vector<128x48xf32>
      %58 = vector.shape_cast %55 : vector<128x48xf32> to vector<1x1x128x48xf32>
      tpu.vector_store %arg5[%c0_53, %c2_54, %c0_55, %c0_56], %58 {strides = array<i32>} : memref<1x4x128x48xf32, #tpu.memory_space<vmem>>, vector<1x1x128x48xf32>,
      %cst_57 = arith.constant dense<0.000000e+00> : vector<128xf32>
      %59 = vector.multi_reduction <add>, %55, %cst_57 [1] : vector<128x48xf32> to vector<128xf32>
      %60 = vector.shape_cast %59 : vector<128xf32> to vector<128x1xf32>
      %c0_58 = arith.constant 0 : index
      %c2_59 = arith.constant 2 : index
      %c0_60 = arith.constant 0 : index
      %c0_61 = arith.constant 0 : index
      %61 = vector.load %arg6[%c0_58, %c2_59, %c0_60, %c0_61] : memref<1x4x128x1xf32, #tpu.memory_space<vmem>>, vector<1x1x128x1xf32>
      %62 = vector.shape_cast %61 : vector<1x1x128x1xf32> to vector<128x1xf32>
      %63 = vector.shape_cast %60 : vector<128x1xf32> to vector<1x1x128x1xf32>
      tpu.vector_store %arg6[%c0_58, %c2_59, %c0_60, %c0_61], %63 {strides = array<i32>} : memref<1x4x128x1xf32, #tpu.memory_space<vmem>>, vector<1x1x128x1xf32>,
      %64 = arith.mulf %55, %55 : vector<128x48xf32>
      %cst_62 = arith.constant dense<0.000000e+00> : vector<128xf32>
      %65 = vector.multi_reduction <add>, %64, %cst_62 [1] : vector<128x48xf32> to vector<128xf32>
      %66 = vector.shape_cast %65 : vector<128xf32> to vector<128x1xf32>
      %c0_63 = arith.constant 0 : index
      %c2_64 = arith.constant 2 : index
      %c0_65 = arith.constant 0 : index
      %c0_66 = arith.constant 0 : index
      %67 = vector.load %arg7[%c0_63, %c2_64, %c0_65, %c0_66] : memref<1x4x128x1xf32, #tpu.memory_space<vmem>>, vector<1x1x128x1xf32>
      %68 = vector.shape_cast %67 : vector<1x1x128x1xf32> to vector<128x1xf32>
      %69 = vector.shape_cast %66 : vector<128x1xf32> to vector<1x1x128x1xf32>
      tpu.vector_store %arg7[%c0_63, %c2_64, %c0_65, %c0_66], %69 {strides = array<i32>} : memref<1x4x128x1xf32, #tpu.memory_space<vmem>>, vector<1x1x128x1xf32>,
      %c0_67 = arith.constant 0 : index
      %c144 = arith.constant 144 : index
      %70 = vector.load %arg8[%c0_67, %c144] : memref<8x192xf32, #tpu.memory_space<vmem>>, vector<8x48xf32>
      %71 = arith.truncf %70 : vector<8x48xf32> to vector<8x48xbf16>
      %c3 = arith.constant 3 : index
      %c0_68 = arith.constant 0 : index
      %c0_69 = arith.constant 0 : index
      %72 = vector.load %arg4[%c3, %c0_68, %c0_69] : memref<4x128x8xbf16, #tpu.memory_space<vmem>>, vector<1x128x8xbf16>
      %73 = vector.shape_cast %72 : vector<1x128x8xbf16> to vector<128x8xbf16>
      %cst_70 = arith.constant dense<0.000000e+00> : vector<128x48xf32>
      %74 = tpu.matmul %73, %71, %cst_70 {dimension_numbers = #tpu.dot_dimension_numbers<[1], [0], [0], [1], [0, 0, 1, 1], [], []>} : vector<128x8xbf16>, vector<8x48xbf16>, vector<128x48xf32> -> vector<128x48xf32>
      %c0_71 = arith.constant 0 : index
      %c3_72 = arith.constant 3 : index
      %c0_73 = arith.constant 0 : index
      %c0_74 = arith.constant 0 : index
      %75 = vector.load %arg5[%c0_71, %c3_72, %c0_73, %c0_74] : memref<1x4x128x48xf32, #tpu.memory_space<vmem>>, vector<1x1x128x48xf32>
      %76 = vector.shape_cast %75 : vector<1x1x128x48xf32> to vector<128x48xf32>
      %77 = vector.shape_cast %74 : vector<128x48xf32> to vector<1x1x128x48xf32>
      tpu.vector_store %arg5[%c0_71, %c3_72, %c0_73, %c0_74], %77 {strides = array<i32>} : memref<1x4x128x48xf32, #tpu.memory_space<vmem>>, vector<1x1x128x48xf32>,
      %cst_75 = arith.constant dense<0.000000e+00> : vector<128xf32>
      %78 = vector.multi_reduction <add>, %74, %cst_75 [1] : vector<128x48xf32> to vector<128xf32>
      %79 = vector.shape_cast %78 : vector<128xf32> to vector<128x1xf32>
      %c0_76 = arith.constant 0 : index
      %c3_77 = arith.constant 3 : index
      %c0_78 = arith.constant 0 : index
      %c0_79 = arith.constant 0 : index
      %80 = vector.load %arg6[%c0_76, %c3_77, %c0_78, %c0_79] : memref<1x4x128x1xf32, #tpu.memory_space<vmem>>, vector<1x1x128x1xf32>
      %81 = vector.shape_cast %80 : vector<1x1x128x1xf32> to vector<128x1xf32>
      %82 = vector.shape_cast %79 : vector<128x1xf32> to vector<1x1x128x1xf32>
      tpu.vector_store %arg6[%c0_76, %c3_77, %c0_78, %c0_79], %82 {strides = array<i32>} : memref<1x4x128x1xf32, #tpu.memory_space<vmem>>, vector<1x1x128x1xf32>,
      %83 = arith.mulf %74, %74 : vector<128x48xf32>
      %cst_80 = arith.constant dense<0.000000e+00> : vector<128xf32>
      %84 = vector.multi_reduction <add>, %83, %cst_80 [1] : vector<128x48xf32> to vector<128xf32>
      %85 = vector.shape_cast %84 : vector<128xf32> to vector<128x1xf32>
      %c0_81 = arith.constant 0 : index
      %c3_82 = arith.constant 3 : index
      %c0_83 = arith.constant 0 : index
      %c0_84 = arith.constant 0 : index
      %86 = vector.load %arg7[%c0_81, %c3_82, %c0_83, %c0_84] : memref<1x4x128x1xf32, #tpu.memory_space<vmem>>, vector<1x1x128x1xf32>
      %87 = vector.shape_cast %86 : vector<1x1x128x1xf32> to vector<128x1xf32>
      %88 = vector.shape_cast %85 : vector<128x1xf32> to vector<1x1x128x1xf32>
      tpu.vector_store %arg7[%c0_81, %c3_82, %c0_83, %c0_84], %88 {strides = array<i32>} : memref<1x4x128x1xf32, #tpu.memory_space<vmem>>, vector<1x1x128x1xf32>,
    } else {
    }
    return
  }
  func.func @transform_0(%arg0: i32, %arg1: i32) -> (i32, i32, i32) {
    %c0_i32 = arith.constant 0 : i32
    %c0_i32_0 = arith.constant 0 : i32
    return %arg0, %c0_i32, %arg1 : i32, i32, i32
  }
  func.func @transform_1(%arg0: i32, %arg1: i32) -> (i32, i32) {
    %c0_i32 = arith.constant 0 : i32
    %c0_i32_0 = arith.constant 0 : i32
    return %c0_i32, %arg1 : i32, i32
  }
  func.func @transform_2(%arg0: i32, %arg1: i32) -> (i32, i32, i32) {
    %c0_i32 = arith.constant 0 : i32
    %c0_i32_0 = arith.constant 0 : i32
    %c0_i32_1 = arith.constant 0 : i32
    %c0_i32_2 = arith.constant 0 : i32
    return %c0_i32, %c0_i32_0, %c0_i32_1 : i32, i32, i32
  }
  func.func @transform_3(%arg0: i32, %arg1: i32) -> (i32, i32, i32, i32) {
    %c0_i32 = arith.constant 0 : i32
    %c0_i32_0 = arith.constant 0 : i32
    %c0_i32_1 = arith.constant 0 : i32
    %c0_i32_2 = arith.constant 0 : i32
    return %arg0, %c0_i32, %c0_i32_0, %c0_i32_1 : i32, i32, i32, i32
  }
  func.func @transform_4(%arg0: i32, %arg1: i32) -> (i32, i32, i32, i32) {
    %c0_i32 = arith.constant 0 : i32
    %c0_i32_0 = arith.constant 0 : i32
    %c0_i32_1 = arith.constant 0 : i32
    %c0_i32_2 = arith.constant 0 : i32
    return %arg0, %c0_i32, %c0_i32_0, %c0_i32_1 : i32, i32, i32, i32
  }
  func.func @transform_5(%arg0: i32, %arg1: i32) -> (i32, i32, i32, i32) {
    %c0_i32 = arith.constant 0 : i32
    %c0_i32_0 = arith.constant 0 : i32
    %c0_i32_1 = arith.constant 0 : i32
    %c0_i32_2 = arith.constant 0 : i32
    return %arg0, %c0_i32, %c0_i32_0, %c0_i32_1 : i32, i32, i32, i32
  }
}

module attributes {stable_mosaic.version = 11 : i64} {
  func.func @_bn_relu_upsample_kernel(%arg0: i32, %arg1: i32, %arg2: memref<1x1x128x48xf32, #tpu.memory_space<vmem>>, %arg3: memref<1x128x1xf32, #tpu.memory_space<vmem>>, %arg4: memref<1x128x1xf32, #tpu.memory_space<vmem>>, %arg5: memref<1x48x256xbf16, #tpu.memory_space<vmem>>, %arg6: memref<1x1x128x256xf32, #tpu.memory_space<vmem>>) attributes {dimension_semantics = [#tpu.dimension_semantics<parallel>, #tpu.dimension_semantics<parallel>], iteration_bounds = array<i64: 4, 2>, scalar_prefetch = 0 : i64, scratch_operands = 0 : i64, tpu.core_type = #tpu.core_type<tc>, window_params = [{transform_indices = @transform_0, window_bounds = array<i64: 1, 1, 128, 48>}, {transform_indices = @transform_1, window_bounds = array<i64: 1, 128, 1>}, {transform_indices = @transform_2, window_bounds = array<i64: 1, 128, 1>}, {transform_indices = @transform_3, window_bounds = array<i64: 1, 48, 256>}, {transform_indices = @transform_4, window_bounds = array<i64: 1, 1, 128, 256>}]} {
    %c0 = arith.constant 0 : index
    %c0_0 = arith.constant 0 : index
    %c0_1 = arith.constant 0 : index
    %c0_2 = arith.constant 0 : index
    %0 = vector.load %arg2[%c0, %c0_0, %c0_1, %c0_2] : memref<1x1x128x48xf32, #tpu.memory_space<vmem>>, vector<1x1x128x48xf32>
    %1 = vector.shape_cast %0 : vector<1x1x128x48xf32> to vector<128x48xf32>
    %c0_3 = arith.constant 0 : index
    %c0_4 = arith.constant 0 : index
    %c0_5 = arith.constant 0 : index
    %2 = vector.load %arg3[%c0_3, %c0_4, %c0_5] : memref<1x128x1xf32, #tpu.memory_space<vmem>>, vector<1x128x1xf32>
    %3 = vector.shape_cast %2 : vector<1x128x1xf32> to vector<128x1xf32>
    %4 = vector.broadcast %3 : vector<128x1xf32> to vector<128x48xf32>
    %5 = arith.mulf %1, %4 : vector<128x48xf32>
    %c0_6 = arith.constant 0 : index
    %c0_7 = arith.constant 0 : index
    %c0_8 = arith.constant 0 : index
    %6 = vector.load %arg4[%c0_6, %c0_7, %c0_8] : memref<1x128x1xf32, #tpu.memory_space<vmem>>, vector<1x128x1xf32>
    %7 = vector.shape_cast %6 : vector<1x128x1xf32> to vector<128x1xf32>
    %8 = vector.broadcast %7 : vector<128x1xf32> to vector<128x48xf32>
    %9 = arith.addf %5, %8 : vector<128x48xf32>
    %cst = arith.constant 0.000000e+00 : f32
    %10 = vector.broadcast %cst : f32 to vector<128x48xf32>
    %11 = arith.maximumf %9, %10 : vector<128x48xf32>
    %12 = arith.truncf %11 : vector<128x48xf32> to vector<128x48xbf16>
    %c0_9 = arith.constant 0 : index
    %c0_10 = arith.constant 0 : index
    %c0_11 = arith.constant 0 : index
    %13 = vector.load %arg5[%c0_9, %c0_10, %c0_11] : memref<1x48x256xbf16, #tpu.memory_space<vmem>>, vector<1x48x256xbf16>
    %14 = vector.shape_cast %13 : vector<1x48x256xbf16> to vector<48x256xbf16>
    %cst_12 = arith.constant dense<0.000000e+00> : vector<128x256xf32>
    %15 = tpu.matmul %12, %14, %cst_12 {dimension_numbers = #tpu.dot_dimension_numbers<[1], [0], [0], [1], [0, 0, 1, 1], [], []>} : vector<128x48xbf16>, vector<48x256xbf16>, vector<128x256xf32> -> vector<128x256xf32>
    %c0_13 = arith.constant 0 : index
    %c0_14 = arith.constant 0 : index
    %c0_15 = arith.constant 0 : index
    %c0_16 = arith.constant 0 : index
    %16 = vector.load %arg6[%c0_13, %c0_14, %c0_15, %c0_16] : memref<1x1x128x256xf32, #tpu.memory_space<vmem>>, vector<1x1x128x256xf32>
    %17 = vector.shape_cast %16 : vector<1x1x128x256xf32> to vector<128x256xf32>
    %18 = vector.shape_cast %15 : vector<128x256xf32> to vector<1x1x128x256xf32>
    tpu.vector_store %arg6[%c0_13, %c0_14, %c0_15, %c0_16], %18 {strides = array<i32>} : memref<1x1x128x256xf32, #tpu.memory_space<vmem>>, vector<1x1x128x256xf32>,
    return
  }
  func.func @transform_0(%arg0: i32, %arg1: i32) -> (i32, i32, i32, i32) {
    %c0_i32 = arith.constant 0 : i32
    %c0_i32_0 = arith.constant 0 : i32
    %c0_i32_1 = arith.constant 0 : i32
    return %arg1, %arg0, %c0_i32, %c0_i32_0 : i32, i32, i32, i32
  }
  func.func @transform_1(%arg0: i32, %arg1: i32) -> (i32, i32, i32) {
    %c0_i32 = arith.constant 0 : i32
    %c0_i32_0 = arith.constant 0 : i32
    %c0_i32_1 = arith.constant 0 : i32
    return %arg0, %c0_i32, %c0_i32_0 : i32, i32, i32
  }
  func.func @transform_2(%arg0: i32, %arg1: i32) -> (i32, i32, i32) {
    %c0_i32 = arith.constant 0 : i32
    %c0_i32_0 = arith.constant 0 : i32
    %c0_i32_1 = arith.constant 0 : i32
    return %arg0, %c0_i32, %c0_i32_0 : i32, i32, i32
  }
  func.func @transform_3(%arg0: i32, %arg1: i32) -> (i32, i32, i32) {
    %c0_i32 = arith.constant 0 : i32
    %c0_i32_0 = arith.constant 0 : i32
    %c0_i32_1 = arith.constant 0 : i32
    return %arg0, %c0_i32, %c0_i32_0 : i32, i32, i32
  }
  func.func @transform_4(%arg0: i32, %arg1: i32) -> (i32, i32, i32, i32) {
    %c0_i32 = arith.constant 0 : i32
    %c0_i32_0 = arith.constant 0 : i32
    %c0_i32_1 = arith.constant 0 : i32
    return %arg1, %arg0, %c0_i32, %c0_i32_0 : i32, i32, i32, i32
  }
}

</mosaic_0001>

<llo_original>
// kernel: ppm_forward.3
$region0: #{ppm_forward.3}
  #allocation0 [shape = 'u32[]', space=smem, size = 0x4, offset = 0x4, fixed_abs, tag = 'smem constant byte address 0x4 - core index']
  #allocation1 [shape = 'u32[144,128]{1,0:T(1,128)}', space=vmem, size = 0x12000, scoped, tag = 'internal scratch']
  %s0 = inlined_call_operand.vmem [shape: f32[2,4,128,48], index: 0, kind: input, shape index: {}]
  %s1 = inlined_call_operand.vmem [shape: f32[4,128,1], index: 1, kind: input, shape index: {}]
  %s2 = inlined_call_operand.vmem [shape: f32[4,128,1], index: 2, kind: input, shape index: {}]
  %s3 = inlined_call_operand.vmem [shape: bf16[4,48,256], index: 3, kind: input, shape index: {}]
  %s4 = inlined_call_operand.vmem [shape: f32[2,4,128,256], index: 4, kind: output, shape index: {}]
  %s5 = sld [smem:[#allocation0]]
  $region49: #{ppm_forward.3} parent=0
    _
  %s7 = ssub.s32 1, %s5
  %s8 = scalar_select 0, %s7, %s5
  loop: start=0, step=1, limit=10
  $region2: #{ppm_forward.3} parent=0 // loop_pre_header
    _
  $region3: #{ppm_forward.3} parent=0 // loop_header
    %s10 = sphi 0, %s14
    %p11 = scmp.ge.s32.totalorder %s10, 10
    %s17 = sphi 0, %s29
    %s18 = sphi 0, %s25
    %s19 = sphi 0, %s17
    %s20 = sphi 0, %s18
    %s21 = sphi 0, %s19
    %s22 = sphi 0, %s20
    %s34 = sphi 0, %s36
    %s37 = sphi 0, %s34
    %s38 = sphi 0, %s37
    %s54 = sphi 0, %s38
    %s60 = sphi 0, %s62
    %s63 = sphi 0, %s60
    %s64 = sphi 0, %s63
    %s80 = sphi 0, %s64
    %s86 = sphi 0, %s88
    %s89 = sphi 0, %s86
    %s90 = sphi 0, %s89
    %s106 = sphi 0, %s90
    %s112 = sphi 0, %s114
    %s115 = sphi 0, %s112
    %s116 = sphi 0, %s115
    %s132 = sphi 0, %s116
    %s140 = sphi 0, %s142
    %s143 = sphi 0, %s140
    %s144 = sphi 0, %s143
    %s160 = sphi 0, %s144
  $region4: #{ppm_forward.3} parent=0 // loop_header_branch
    %13 = sbr.rel (%p11) target = $region8
  $region5: #{ppm_forward.3} parent=0 // loop_body
    %s15 = ssub.s32 %s10, 1
    %s16 = ssub.s32 %s10, 2
    %s23 = sadd.s32 1, %s18
    %p24 = scmp.ge.s32.totalorder %s23, 2
    %s25 = scalar_select %p24, 0, %s23
    %s26 = sadd.s32 1, %s17
    %s27 = scalar_select %p24, %s26, %s17
    %p28 = scmp.ge.s32.totalorder %s27, 4
    %s29 = scalar_select %p28, 0, %s27
    %s30 = ssub.s32 %s18, %s25
    %s31 = ssub.s32 %s17, %s29
    %s32 = sor.u32 %s30, %s31
    %p33 = scmp.eq.s32.totalorder %s32, 0
    %s35 = sadd.s32 %s34, 1
    %s36 = scalar_select %p33, %s34, %s35
    %p39 = pneg %p33
    %p40 = scmp.eq.s32.totalorder %s10, 7
    %p41 = por %p39, %p40
    %p42 = scmp.ne.s32.totalorder %s34, %s37
    %p43 = scmp.eq.s32.totalorder %s10, 0
    %p44 = por %p42, %p43
    %p45 = scmp.ne.s32.totalorder %s34, %s37
    %p46 = scmp.eq.s32.totalorder %s15, 7
    %p47 = por %p45, %p46
    %p48 = scmp.ne.s32.totalorder %s37, %s38
    %p49 = scmp.eq.s32.totalorder %s15, 0
    %p50 = por %p48, %p49
    %p51 = scmp.ne.s32.totalorder %s37, %s38
    %p52 = scmp.eq.s32.totalorder %s16, 7
    %p53 = por %p51, %p52
    %p55 = scmp.ne.s32.totalorder %s38, %s54
    %p56 = scmp.eq.s32.totalorder %s16, 0
    %p57 = por %p55, %p56
    %s58 = ssub.s32 %s17, %s29
    %p59 = scmp.eq.s32.totalorder %s58, 0
    %s61 = sadd.s32 %s60, 1
    %s62 = scalar_select %p59, %s60, %s61
    %p65 = pneg %p59
    %p66 = scmp.eq.s32.totalorder %s10, 7
    %p67 = por %p65, %p66
    %p68 = scmp.ne.s32.totalorder %s60, %s63
    %p69 = scmp.eq.s32.totalorder %s10, 0
    %p70 = por %p68, %p69
    %p71 = scmp.ne.s32.totalorder %s60, %s63
    %p72 = scmp.eq.s32.totalorder %s15, 7
    %p73 = por %p71, %p72
    %p74 = scmp.ne.s32.totalorder %s63, %s64
    %p75 = scmp.eq.s32.totalorder %s15, 0
    %p76 = por %p74, %p75
    %p77 = scmp.ne.s32.totalorder %s63, %s64
    %p78 = scmp.eq.s32.totalorder %s16, 7
    %p79 = por %p77, %p78
    %p81 = scmp.ne.s32.totalorder %s64, %s80
    %p82 = scmp.eq.s32.totalorder %s16, 0
    %p83 = por %p81, %p82
    %s84 = ssub.s32 %s17, %s29
    %p85 = scmp.eq.s32.totalorder %s84, 0
    %s87 = sadd.s32 %s86, 1
    %s88 = scalar_select %p85, %s86, %s87
    %p91 = pneg %p85
    %p92 = scmp.eq.s32.totalorder %s10, 7
    %p93 = por %p91, %p92
    %p94 = scmp.ne.s32.totalorder %s86, %s89
    %p95 = scmp.eq.s32.totalorder %s10, 0
    %p96 = por %p94, %p95
    %p97 = scmp.ne.s32.totalorder %s86, %s89
    %p98 = scmp.eq.s32.totalorder %s15, 7
    %p99 = por %p97, %p98
    %p100 = scmp.ne.s32.totalorder %s89, %s90
    %p101 = scmp.eq.s32.totalorder %s15, 0
    %p102 = por %p100, %p101
    %p103 = scmp.ne.s32.totalorder %s89, %s90
    %p104 = scmp.eq.s32.totalorder %s16, 7
    %p105 = por %p103, %p104
    %p107 = scmp.ne.s32.totalorder %s90, %s106
    %p108 = scmp.eq.s32.totalorder %s16, 0
    %p109 = por %p107, %p108
    %s110 = ssub.s32 %s17, %s29
    %p111 = scmp.eq.s32.totalorder %s110, 0
    %s113 = sadd.s32 %s112, 1
    %s114 = scalar_select %p111, %s112, %s113
    %p117 = pneg %p111
    %p118 = scmp.eq.s32.totalorder %s10, 7
    %p119 = por %p117, %p118
    %p120 = scmp.ne.s32.totalorder %s112, %s115
    %p121 = scmp.eq.s32.totalorder %s10, 0
    %p122 = por %p120, %p121
    %p123 = scmp.ne.s32.totalorder %s112, %s115
    %p124 = scmp.eq.s32.totalorder %s15, 7
    %p125 = por %p123, %p124
    %p126 = scmp.ne.s32.totalorder %s115, %s116
    %p127 = scmp.eq.s32.totalorder %s15, 0
    %p128 = por %p126, %p127
    %p129 = scmp.ne.s32.totalorder %s115, %s116
    %p130 = scmp.eq.s32.totalorder %s16, 7
    %p131 = por %p129, %p130
    %p133 = scmp.ne.s32.totalorder %s116, %s132
    %p134 = scmp.eq.s32.totalorder %s16, 0
    %p135 = por %p133, %p134
    %s136 = ssub.s32 %s18, %s25
    %s137 = ssub.s32 %s17, %s29
    %s138 = sor.u32 %s136, %s137
    %p139 = scmp.eq.s32.totalorder %s138, 0
    %s141 = sadd.s32 %s140, 1
    %s142 = scalar_select %p139, %s140, %s141
    %p145 = pneg %p139
    %p146 = scmp.eq.s32.totalorder %s10, 7
    %p147 = por %p145, %p146
    %p148 = scmp.ne.s32.totalorder %s140, %s143
    %p149 = scmp.eq.s32.totalorder %s10, 0
    %p150 = por %p148, %p149
    %p151 = scmp.ne.s32.totalorder %s140, %s143
    %p152 = scmp.eq.s32.totalorder %s15, 7
    %p153 = por %p151, %p152
    %p154 = scmp.ne.s32.totalorder %s143, %s144
    %p155 = scmp.eq.s32.totalorder %s15, 0
    %p156 = por %p154, %p155
    %p157 = scmp.ne.s32.totalorder %s143, %s144
    %p158 = scmp.eq.s32.totalorder %s16, 7
    %p159 = por %p157, %p158
    %p161 = scmp.ne.s32.totalorder %s144, %s160
    %p162 = scmp.eq.s32.totalorder %s16, 0
    %p163 = por %p161, %p162
    %p164 = scmp.le.s32.totalorder 1, %s10
    %p165 = scmp.lt.s32.totalorder %s10, 9
    %p166 = pnand %p164, %p165
    %p167 = pneg %p166
    // Predicated region
    $region9: #{ppm_forward.3} parent=5 // pred_check
      _
    $region10: #{ppm_forward.3} parent=5 // pred_check_branch
      %169 = sbr.rel (%p166) target = $region12
    $region11: #{ppm_forward.3} parent=5 // pred_region
      %s170 = ssub.s32 %s10, 1
    $region12: #{ppm_forward.3} parent=5 // pred_fallthru
      _
    %p171 = scmp.lt.s32.totalorder %s10, 8
    // Predicated region
    $region13: #{ppm_forward.3} parent=5 // pred_check
      %p172 = pneg %p171
    $region14: #{ppm_forward.3} parent=5 // pred_check_branch
      %174 = sbr.rel (%p172) target = $region16
    $region15: #{ppm_forward.3} parent=5 // pred_region
      // Predicated region
      $region17: #{ppm_forward.3} parent=15 // pred_check
        %p175 = pneg %p44
      $region18: #{ppm_forward.3} parent=15 // pred_check_branch
        %177 = sbr.rel (%p175) target = $region20
      $region19: #{ppm_forward.3} parent=15 // pred_region
        %p178 = scmp.lt.s32.totalorder %s18, 1
        %s179 = scalar_select %p178, %s18, 1
        %p180 = scmp.lt.s32.totalorder %s17, 3
        %s181 = scalar_select %p180, %s17, 3
        %s182 = smul.addr %s181, 16
        %s183 = smul.addr %s179, 64
        %s184 = sadd.s32 %s182, %s183
        %s185 = smul.addr %s184, 8
        %s186 = scalar_lea.vmem %s0, %s185
      $region20: #{ppm_forward.3} parent=15 // pred_fallthru
        _
      // Predicated region
      $region21: #{ppm_forward.3} parent=15 // pred_check
        %p187 = pneg %p70
      $region22: #{ppm_forward.3} parent=15 // pred_check_branch
        %189 = sbr.rel (%p187) target = $region24
      $region23: #{ppm_forward.3} parent=15 // pred_region
        %p190 = scmp.lt.s32.totalorder %s17, 3
        %s191 = scalar_select %p190, %s17, 3
        %s192 = smul.addr %s191, 16
        %s193 = smul.addr %s192, 8
        %s194 = scalar_lea.vmem %s1, %s193
      $region24: #{ppm_forward.3} parent=15 // pred_fallthru
        _
      // Predicated region
      $region25: #{ppm_forward.3} parent=15 // pred_check
        %p195 = pneg %p96
      $region26: #{ppm_forward.3} parent=15 // pred_check_branch
        %197 = sbr.rel (%p195) target = $region28
      $region27: #{ppm_forward.3} parent=15 // pred_region
        %p198 = scmp.lt.s32.totalorder %s17, 3
        %s199 = scalar_select %p198, %s17, 3
        %s200 = smul.addr %s199, 16
        %s201 = smul.addr %s200, 8
        %s202 = scalar_lea.vmem %s2, %s201
      $region28: #{ppm_forward.3} parent=15 // pred_fallthru
        _
      // Predicated region
      $region29: #{ppm_forward.3} parent=15 // pred_check
        %p203 = pneg %p122
      $region30: #{ppm_forward.3} parent=15 // pred_check_branch
        %205 = sbr.rel (%p203) target = $region32
      $region31: #{ppm_forward.3} parent=15 // pred_region
        %p206 = scmp.lt.s32.totalorder %s17, 3
        %s207 = scalar_select %p206, %s17, 3
        %s208 = smul.addr %s207, 12
        %s209 = smul.addr %s208, 4
        %s210 = scalar_lea.vmem %s3, %s209
      $region32: #{ppm_forward.3} parent=15 // pred_fallthru
        _
    $region16: #{ppm_forward.3} parent=5 // pred_fallthru
      _
    %p211 = scmp.le.s32.totalorder 1, %s10
    %p212 = scmp.lt.s32.totalorder %s10, 9
    %p213 = pnand %p211, %p212
    %p214 = pneg %p213
    // Predicated region
    $region33: #{ppm_forward.3} parent=5 // pred_check
      _
    $region34: #{ppm_forward.3} parent=5 // pred_check_branch
      %216 = sbr.rel (%p213) target = $region36
    $region35: #{ppm_forward.3} parent=5 // pred_region
      %s217 = ssub.s32 %s10, 1
      %p218 = scmp.lt.s32.totalorder %s20, 1
      %s219 = scalar_select %p218, %s20, 1
      %p220 = scmp.lt.s32.totalorder %s19, 3
      %s221 = scalar_select %p220, %s19, 3
      %s222 = smul.addr %s221, 16
      %s223 = smul.addr %s219, 64
      %s224 = sadd.s32 %s222, %s223
      %s225 = smul.addr %s224, 8
      %s226 = scalar_lea.vmem %s0, %s225
      %p227 = pneg %p50
      %p228 = pneg %p47
      %p229 = scmp.lt.s32.totalorder %s19, 3
      %s230 = scalar_select %p229, %s19, 3
      %s231 = smul.addr %s230, 16
      %s232 = smul.addr %s231, 8
      %s233 = scalar_lea.vmem %s1, %s232
      %p234 = pneg %p76
      %p235 = pneg %p73
      %p236 = scmp.lt.s32.totalorder %s19, 3
      %s237 = scalar_select %p236, %s19, 3
      %s238 = smul.addr %s237, 16
      %s239 = smul.addr %s238, 8
      %s240 = scalar_lea.vmem %s2, %s239
      %p241 = pneg %p102
      %p242 = pneg %p99
      %p243 = scmp.lt.s32.totalorder %s19, 3
      %s244 = scalar_select %p243, %s19, 3
      %s245 = smul.addr %s244, 12
      %s246 = smul.addr %s245, 4
      %s247 = scalar_lea.vmem %s3, %s246
      %p248 = pneg %p128
      %p249 = pneg %p125
      %p250 = pneg %p156
      %p251 = pneg %p153
      %p252 = scmp.lt.s32.totalorder %s20, 1
      %s253 = scalar_select %p252, %s20, 1
      %p254 = scmp.lt.s32.totalorder %s19, 3
      %s255 = scalar_select %p254, %s19, 3
      %s256 = smul.addr %s255, 32
      %s257 = smul.addr %s253, 128
      %s258 = sadd.s32 %s256, %s257
      %s259 = smul.addr %s258, 8
      %s260 = scalar_lea.vmem %s4, %s259
      %p261 = scmp.lt.s32.totalorder %s20, 1
      %s262 = scalar_select %p261, %s20, 1
      %p263 = scmp.lt.s32.totalorder %s19, 3
      %s264 = scalar_select %p263, %s19, 3
      %s265 = smul.addr %s264, 16
      %s266 = smul.addr %s262, 64
      %s267 = sadd.s32 %s265, %s266
      %s268 = smul.addr %s267, 8
      %s269 = scalar_lea.vmem %s0, %s268
      %p270 = scmp.lt.s32.totalorder %s19, 3
      %s271 = scalar_select %p270, %s19, 3
      %s272 = smul.addr %s271, 16
      %s273 = smul.addr %s272, 8
      %s274 = scalar_lea.vmem %s1, %s273
      %p275 = scmp.lt.s32.totalorder %s19, 3
      %s276 = scalar_select %p275, %s19, 3
      %s277 = smul.addr %s276, 16
      %s278 = smul.addr %s277, 8
      %s279 = scalar_lea.vmem %s2, %s278
      %p280 = scmp.lt.s32.totalorder %s19, 3
      %s281 = scalar_select %p280, %s19, 3
      %s282 = smul.addr %s281, 12
      %s283 = smul.addr %s282, 4
      %s284 = scalar_lea.vmem %s3, %s283
      %p285 = scmp.lt.s32.totalorder %s20, 1
      %s286 = scalar_select %p285, %s20, 1
      %p287 = scmp.lt.s32.totalorder %s19, 3
      %s288 = scalar_select %p287, %s19, 3
      %s289 = smul.addr %s288, 32
      %s290 = smul.addr %s286, 128
      %s291 = sadd.s32 %s289, %s290
      %s292 = smul.addr %s291, 8
      %s293 = scalar_lea.vmem %s4, %s292
      %v295 = vld [vmem:[%s269] sm:$0xff]
      %v296 = vld [vmem:[%s269 + $0x8] sm:$0xff]
      %v297 = vld [vmem:[%s269 + $0x10] sm:$0xff]
      %v298 = vld [vmem:[%s269 + $0x18] sm:$0xff]
      %v299 = vld [vmem:[%s269 + $0x20] sm:$0xff]
      %v300 = vld [vmem:[%s269 + $0x28] sm:$0xff]
      %v301 = vld [vmem:[%s269 + $0x30] sm:$0xff]
      %v302 = vld [vmem:[%s269 + $0x38] sm:$0xff]
      %v303 = vld [vmem:[%s269 + $0x40] sm:$0xff]
      %v304 = vld [vmem:[%s269 + $0x48] sm:$0xff]
      %v305 = vld [vmem:[%s269 + $0x50] sm:$0xff]
      %v306 = vld [vmem:[%s269 + $0x58] sm:$0xff]
      %v307 = vld [vmem:[%s269 + $0x60] sm:$0xff]
      %v308 = vld [vmem:[%s269 + $0x68] sm:$0xff]
      %v309 = vld [vmem:[%s269 + $0x70] sm:$0xff]
      %v310 = vld [vmem:[%s269 + $0x78] sm:$0xff]
      %v311 = vld [vmem:[%s274] sm:$0xff]
      %v312 = vld [vmem:[%s274 + $0x8] sm:$0xff]
      %v313 = vld [vmem:[%s274 + $0x10] sm:$0xff]
      %v314 = vld [vmem:[%s274 + $0x18] sm:$0xff]
      %v315 = vld [vmem:[%s274 + $0x20] sm:$0xff]
      %v316 = vld [vmem:[%s274 + $0x28] sm:$0xff]
      %v317 = vld [vmem:[%s274 + $0x30] sm:$0xff]
      %v318 = vld [vmem:[%s274 + $0x38] sm:$0xff]
      %v319 = vld [vmem:[%s274 + $0x40] sm:$0xff]
      %v320 = vld [vmem:[%s274 + $0x48] sm:$0xff]
      %v321 = vld [vmem:[%s274 + $0x50] sm:$0xff]
      %v322 = vld [vmem:[%s274 + $0x58] sm:$0xff]
      %v323 = vld [vmem:[%s274 + $0x60] sm:$0xff]
      %v324 = vld [vmem:[%s274 + $0x68] sm:$0xff]
      %v325 = vld [vmem:[%s274 + $0x70] sm:$0xff]
      %v326 = vld [vmem:[%s274 + $0x78] sm:$0xff]
      %328 = vset.pattern.permute.xlu0 0
      %329 = vperm.xlu0 %328, %v311
      %v330 = vpop.permute.xlu0 %329
      %333 = vset.pattern.permute.xlu0 0
      %334 = vperm.xlu0 %333, %v312
      %v335 = vpop.permute.xlu0 %334
      %338 = vset.pattern.permute.xlu0 0
      %339 = vperm.xlu0 %338, %v313
      %v340 = vpop.permute.xlu0 %339
      %343 = vset.pattern.permute.xlu0 0
      %344 = vperm.xlu0 %343, %v314
      %v345 = vpop.permute.xlu0 %344
      %348 = vset.pattern.permute.xlu0 0
      %349 = vperm.xlu0 %348, %v315
      %v350 = vpop.permute.xlu0 %349
      %353 = vset.pattern.permute.xlu0 0
      %354 = vperm.xlu0 %353, %v316
      %v355 = vpop.permute.xlu0 %354
      %358 = vset.pattern.permute.xlu0 0
      %359 = vperm.xlu0 %358, %v317
      %v360 = vpop.permute.xlu0 %359
      %363 = vset.pattern.permute.xlu0 0
      %364 = vperm.xlu0 %363, %v318
      %v365 = vpop.permute.xlu0 %364
      %368 = vset.pattern.permute.xlu0 0
      %369 = vperm.xlu0 %368, %v319
      %v370 = vpop.permute.xlu0 %369
      %373 = vset.pattern.permute.xlu0 0
      %374 = vperm.xlu0 %373, %v320
      %v375 = vpop.permute.xlu0 %374
      %378 = vset.pattern.permute.xlu0 0
      %379 = vperm.xlu0 %378, %v321
      %v380 = vpop.permute.xlu0 %379
      %383 = vset.pattern.permute.xlu0 0
      %384 = vperm.xlu0 %383, %v322
      %v385 = vpop.permute.xlu0 %384
      %388 = vset.pattern.permute.xlu0 0
      %389 = vperm.xlu0 %388, %v323
      %v390 = vpop.permute.xlu0 %389
      %393 = vset.pattern.permute.xlu0 0
      %394 = vperm.xlu0 %393, %v324
      %v395 = vpop.permute.xlu0 %394
      %398 = vset.pattern.permute.xlu0 0
      %399 = vperm.xlu0 %398, %v325
      %v400 = vpop.permute.xlu0 %399
      %403 = vset.pattern.permute.xlu0 0
      %404 = vperm.xlu0 %403, %v326
      %v405 = vpop.permute.xlu0 %404
      %v407 = vmul.f32 %v295, %v330
      %v408 = vmul.f32 %v296, %v335
      %v409 = vmul.f32 %v297, %v340
      %v410 = vmul.f32 %v298, %v345
      %v411 = vmul.f32 %v299, %v350
      %v412 = vmul.f32 %v300, %v355
      %v413 = vmul.f32 %v301, %v360
      %v414 = vmul.f32 %v302, %v365
      %v415 = vmul.f32 %v303, %v370
      %v416 = vmul.f32 %v304, %v375
      %v417 = vmul.f32 %v305, %v380
      %v418 = vmul.f32 %v306, %v385
      %v419 = vmul.f32 %v307, %v390
      %v420 = vmul.f32 %v308, %v395
      %v421 = vmul.f32 %v309, %v400
      %v422 = vmul.f32 %v310, %v405
      %v423 = vld [vmem:[%s279] sm:$0xff]
      %v424 = vld [vmem:[%s279 + $0x8] sm:$0xff]
      %v425 = vld [vmem:[%s279 + $0x10] sm:$0xff]
      %v426 = vld [vmem:[%s279 + $0x18] sm:$0xff]
      %v427 = vld [vmem:[%s279 + $0x20] sm:$0xff]
      %v428 = vld [vmem:[%s279 + $0x28] sm:$0xff]
      %v429 = vld [vmem:[%s279 + $0x30] sm:$0xff]
      %v430 = vld [vmem:[%s279 + $0x38] sm:$0xff]
      %v431 = vld [vmem:[%s279 + $0x40] sm:$0xff]
      %v432 = vld [vmem:[%s279 + $0x48] sm:$0xff]
      %v433 = vld [vmem:[%s279 + $0x50] sm:$0xff]
      %v434 = vld [vmem:[%s279 + $0x58] sm:$0xff]
      %v435 = vld [vmem:[%s279 + $0x60] sm:$0xff]
      %v436 = vld [vmem:[%s279 + $0x68] sm:$0xff]
      %v437 = vld [vmem:[%s279 + $0x70] sm:$0xff]
      %v438 = vld [vmem:[%s279 + $0x78] sm:$0xff]
      %440 = vset.pattern.permute.xlu0 0
      %441 = vperm.xlu0 %440, %v423
      %v442 = vpop.permute.xlu0 %441
      %445 = vset.pattern.permute.xlu0 0
      %446 = vperm.xlu0 %445, %v424
      %v447 = vpop.permute.xlu0 %446
      %450 = vset.pattern.permute.xlu0 0
      %451 = vperm.xlu0 %450, %v425
      %v452 = vpop.permute.xlu0 %451
      %455 = vset.pattern.permute.xlu0 0
      %456 = vperm.xlu0 %455, %v426
      %v457 = vpop.permute.xlu0 %456
      %460 = vset.pattern.permute.xlu0 0
      %461 = vperm.xlu0 %460, %v427
      %v462 = vpop.permute.xlu0 %461
      %465 = vset.pattern.permute.xlu0 0
      %466 = vperm.xlu0 %465, %v428
      %v467 = vpop.permute.xlu0 %466
      %470 = vset.pattern.permute.xlu0 0
      %471 = vperm.xlu0 %470, %v429
      %v472 = vpop.permute.xlu0 %471
      %475 = vset.pattern.permute.xlu0 0
      %476 = vperm.xlu0 %475, %v430
      %v477 = vpop.permute.xlu0 %476
      %480 = vset.pattern.permute.xlu0 0
      %481 = vperm.xlu0 %480, %v431
      %v482 = vpop.permute.xlu0 %481
      %485 = vset.pattern.permute.xlu0 0
      %486 = vperm.xlu0 %485, %v432
      %v487 = vpop.permute.xlu0 %486
      %490 = vset.pattern.permute.xlu0 0
      %491 = vperm.xlu0 %490, %v433
      %v492 = vpop.permute.xlu0 %491
      %495 = vset.pattern.permute.xlu0 0
      %496 = vperm.xlu0 %495, %v434
      %v497 = vpop.permute.xlu0 %496
      %500 = vset.pattern.permute.xlu0 0
      %501 = vperm.xlu0 %500, %v435
      %v502 = vpop.permute.xlu0 %501
      %505 = vset.pattern.permute.xlu0 0
      %506 = vperm.xlu0 %505, %v436
      %v507 = vpop.permute.xlu0 %506
      %510 = vset.pattern.permute.xlu0 0
      %511 = vperm.xlu0 %510, %v437
      %v512 = vpop.permute.xlu0 %511
      %515 = vset.pattern.permute.xlu0 0
      %516 = vperm.xlu0 %515, %v438
      %v517 = vpop.permute.xlu0 %516
      %v519 = vadd.f32 %v407, %v442
      %v520 = vadd.f32 %v408, %v447
      %v521 = vadd.f32 %v409, %v452
      %v522 = vadd.f32 %v410, %v457
      %v523 = vadd.f32 %v411, %v462
      %v524 = vadd.f32 %v412, %v467
      %v525 = vadd.f32 %v413, %v472
      %v526 = vadd.f32 %v414, %v477
      %v527 = vadd.f32 %v415, %v482
      %v528 = vadd.f32 %v416, %v487
      %v529 = vadd.f32 %v417, %v492
      %v530 = vadd.f32 %v418, %v497
      %v531 = vadd.f32 %v419, %v502
      %v532 = vadd.f32 %v420, %v507
      %v533 = vadd.f32 %v421, %v512
      %v534 = vadd.f32 %v422, %v517
      %v535 = vmax.f32 %v519, 0.0
      %v536 = vmax.f32 %v520, 0.0
      %v537 = vmax.f32 %v521, 0.0
      %v538 = vmax.f32 %v522, 0.0
      %v539 = vmax.f32 %v523, 0.0
      %v540 = vmax.f32 %v524, 0.0
      %v541 = vmax.f32 %v525, 0.0
      %v542 = vmax.f32 %v526, 0.0
      %v543 = vmax.f32 %v527, 0.0
      %v544 = vmax.f32 %v528, 0.0
      %v545 = vmax.f32 %v529, 0.0
      %v546 = vmax.f32 %v530, 0.0
      %v547 = vmax.f32 %v531, 0.0
      %v548 = vmax.f32 %v532, 0.0
      %v549 = vmax.f32 %v533, 0.0
      %v550 = vmax.f32 %v534, 0.0
      %v551 = vpack.c.bf16 %v536, %v535
      %v552 = vpack.c.bf16 %v538, %v537
      %v553 = vpack.c.bf16 %v540, %v539
      %v554 = vpack.c.bf16 %v542, %v541
      %v555 = vpack.c.bf16 %v544, %v543
      %v556 = vpack.c.bf16 %v546, %v545
      %v557 = vpack.c.bf16 %v548, %v547
      %v558 = vpack.c.bf16 %v550, %v549
      %v559 = vld [vmem:[%s284] sm:$0xff]
      %v560 = vld [vmem:[%s284 + $0x8] sm:$0xff]
      %v561 = vld [vmem:[%s284 + $0x10] sm:$0xff]
      %v562 = vld [vmem:[%s284 + $0x18] sm:$0xff]
      %v563 = vld [vmem:[%s284 + $0x20] sm:$0xff]
      %v564 = vld [vmem:[%s284 + $0x28] sm:$0xff]
      %v571 = vunpack.c.l.b16 %v559
      %v572 = vunpack.c.h.b16 %v559
      %v573 = vunpack.c.l.b16 %v560
      %v574 = vunpack.c.h.b16 %v560
      %v575 = vunpack.c.l.b16 %v561
      %v576 = vunpack.c.h.b16 %v561
      %v577 = vunpack.c.l.b16 %v562
      %v578 = vunpack.c.h.b16 %v562
      %v579 = vunpack.c.l.b16 %v563
      %v580 = vunpack.c.h.b16 %v563
      %v581 = vunpack.c.l.b16 %v564
      %v582 = vunpack.c.h.b16 %v564
      %v583 = vpack.c.b16 %v573, %v571
      %v584 = vpack.c.b16 %v574, %v572
      %v585 = vpack.c.b16 %v577, %v575
      %v586 = vpack.c.b16 %v578, %v576
      %v587 = vpack.c.b16 %v581, %v579
      %v588 = vpack.c.b16 %v582, %v580
      %vm595 = vcmask 392192
      %v597 = vsel %vm595, %v551, 0
      %v600 = vsel %vm595, %v552, 0
      %v603 = vsel %vm595, %v553, 0
      %v606 = vsel %vm595, %v554, 0
      %v609 = vsel %vm595, %v555, 0
      %v612 = vsel %vm595, %v556, 0
      %v615 = vsel %vm595, %v557, 0
      %v618 = vsel %vm595, %v558, 0
      %620 = vmatprep.subr.bf16.mxu0 %v584
      %621 = vmatpush1.bf16.msra.mxu0 %v583
      %622 = vmatprep.subr.bf16.mxu0 %v586
      %623 = vmatpush1.bf16.msra.mxu0 %v585
      %624 = vmatprep.subr.bf16.mxu0 %v588
      %625 = vmatpush1.bf16.msra.mxu0 %v587
      %626 = vmatprep.subr.bf16.mxu0 0
      %627 = vmatpush1.bf16.msra.mxu0 0
      %628 = vmatprep.subr.bf16.mxu0 0
      %629 = vmatpush1.bf16.msra.mxu0 0
      %630 = vmatprep.subr.bf16.mxu0 0
      %631 = vmatpush1.bf16.msra.mxu0 0
      %632 = vmatprep.subr.bf16.mxu0 0
      %633 = vmatpush1.bf16.msra.mxu0 0
      %634 = vmatprep.subr.bf16.mxu0 0
      %635 = vmatpush1.bf16.msra.mxu0 0
      %636 = vmatprep.subr.bf16.mxu0 0
      %637 = vmatpush1.bf16.msra.mxu0 0
      %638 = vmatprep.subr.bf16.mxu0 0
      %639 = vmatpush1.bf16.msra.mxu0 0
      %640 = vmatprep.subr.bf16.mxu0 0
      %641 = vmatpush1.bf16.msra.mxu0 0
      %642 = vmatprep.subr.bf16.mxu0 0
      %643 = vmatpush1.bf16.msra.mxu0 0
      %644 = vmatprep.subr.bf16.mxu0 0
      %645 = vmatpush1.bf16.msra.mxu0 0
      %646 = vmatprep.subr.bf16.mxu0 0
      %647 = vmatpush1.bf16.msra.mxu0 0
      %648 = vmatprep.subr.bf16.mxu0 0
      %649 = vmatpush1.bf16.msra.mxu0 0
      %650 = vmatprep.subr.bf16.mxu0 0
      %651 = vmatpush1.bf16.msra.mxu0 0
      %652 = vmatprep.mubr.bf16.mxu0 0
      %653 = vmatmul.mubr.bf16.gmra.mrb[0].mxu0 %v597
      %v654 = vpop.f32.mrb[0].mxu0
      %v655 = vadd.f32 0.0, %v654
      %v656 = vpop.f32.mrb[0].mxu0
      %v657 = vadd.f32 0.0, %v656
      %v658 = vpop.f32.mrb[0].mxu0
      %v659 = vadd.f32 0.0, %v658
      %v660 = vpop.f32.mrb[0].mxu0
      %v661 = vadd.f32 0.0, %v660
      %662 = vmatprep.mubr.bf16.mxu0 0
      %663 = vmatmul.mubr.bf16.gmra.mrb[0].mxu0 %v600
      %v664 = vpop.f32.mrb[0].mxu0
      %v665 = vadd.f32 0.0, %v664
      %v666 = vpop.f32.mrb[0].mxu0
      %v667 = vadd.f32 0.0, %v666
      %v668 = vpop.f32.mrb[0].mxu0
      %v669 = vadd.f32 0.0, %v668
      %v670 = vpop.f32.mrb[0].mxu0
      %v671 = vadd.f32 0.0, %v670
      %672 = vmatprep.mubr.bf16.mxu0 0
      %673 = vmatmul.mubr.bf16.gmra.mrb[0].mxu0 %v603
      %v674 = vpop.f32.mrb[0].mxu0
      %v675 = vadd.f32 0.0, %v674
      %v676 = vpop.f32.mrb[0].mxu0
      %v677 = vadd.f32 0.0, %v676
      %v678 = vpop.f32.mrb[0].mxu0
      %v679 = vadd.f32 0.0, %v678
      %v680 = vpop.f32.mrb[0].mxu0
      %v681 = vadd.f32 0.0, %v680
      %682 = vmatprep.mubr.bf16.mxu0 0
      %683 = vmatmul.mubr.bf16.gmra.mrb[0].mxu0 %v606
      %v684 = vpop.f32.mrb[0].mxu0
      %v685 = vadd.f32 0.0, %v684
      %v686 = vpop.f32.mrb[0].mxu0
      %v687 = vadd.f32 0.0, %v686
      %v688 = vpop.f32.mrb[0].mxu0
      %v689 = vadd.f32 0.0, %v688
      %v690 = vpop.f32.mrb[0].mxu0
      %v691 = vadd.f32 0.0, %v690
      %692 = vmatprep.mubr.bf16.mxu0 0
      %693 = vmatmul.mubr.bf16.gmra.mrb[0].mxu0 %v609
      %v694 = vpop.f32.mrb[0].mxu0
      %v695 = vadd.f32 0.0, %v694
      %v696 = vpop.f32.mrb[0].mxu0
      %v697 = vadd.f32 0.0, %v696
      %v698 = vpop.f32.mrb[0].mxu0
      %v699 = vadd.f32 0.0, %v698
      %v700 = vpop.f32.mrb[0].mxu0
      %v701 = vadd.f32 0.0, %v700
      %702 = vmatprep.mubr.bf16.mxu0 0
      %703 = vmatmul.mubr.bf16.gmra.mrb[0].mxu0 %v612
      %v704 = vpop.f32.mrb[0].mxu0
      %v705 = vadd.f32 0.0, %v704
      %v706 = vpop.f32.mrb[0].mxu0
      %v707 = vadd.f32 0.0, %v706
      %v708 = vpop.f32.mrb[0].mxu0
      %v709 = vadd.f32 0.0, %v708
      %v710 = vpop.f32.mrb[0].mxu0
      %v711 = vadd.f32 0.0, %v710
      %712 = vmatprep.mubr.bf16.mxu0 0
      %713 = vmatmul.mubr.bf16.gmra.mrb[0].mxu0 %v615
      %v714 = vpop.f32.mrb[0].mxu0
      %v715 = vadd.f32 0.0, %v714
      %v716 = vpop.f32.mrb[0].mxu0
      %v717 = vadd.f32 0.0, %v716
      %v718 = vpop.f32.mrb[0].mxu0
      %v719 = vadd.f32 0.0, %v718
      %v720 = vpop.f32.mrb[0].mxu0
      %v721 = vadd.f32 0.0, %v720
      %722 = vmatprep.mubr.bf16.mxu0 0
      %723 = vmatmul.mubr.bf16.gmra.mrb[0].mxu0 %v618
      %v724 = vpop.f32.mrb[0].mxu0
      %v725 = vadd.f32 0.0, %v724
      %v726 = vpop.f32.mrb[0].mxu0
      %v727 = vadd.f32 0.0, %v726
      %v728 = vpop.f32.mrb[0].mxu0
      %v729 = vadd.f32 0.0, %v728
      %v730 = vpop.f32.mrb[0].mxu0
      %v731 = vadd.f32 0.0, %v730
      %732 = vdwg.mxu0
      %733 = vst [vmem:[%s293] sm:$0xff] %v655
      %734 = vst [vmem:[%s293 + $0x8] sm:$0xff] %v657
      %735 = vst [vmem:[%s293 + $0x10] sm:$0xff] %v659
      %736 = vst [vmem:[%s293 + $0x18] sm:$0xff] %v661
      %737 = vst [vmem:[%s293 + $0x20] sm:$0xff] %v665
      %738 = vst [vmem:[%s293 + $0x28] sm:$0xff] %v667
      %739 = vst [vmem:[%s293 + $0x30] sm:$0xff] %v669
      %740 = vst [vmem:[%s293 + $0x38] sm:$0xff] %v671
      %741 = vst [vmem:[%s293 + $0x40] sm:$0xff] %v675
      %742 = vst [vmem:[%s293 + $0x48] sm:$0xff] %v677
      %743 = vst [vmem:[%s293 + $0x50] sm:$0xff] %v679
      %744 = vst [vmem:[%s293 + $0x58] sm:$0xff] %v681
      %745 = vst [vmem:[%s293 + $0x60] sm:$0xff] %v685
      %746 = vst [vmem:[%s293 + $0x68] sm:$0xff] %v687
      %747 = vst [vmem:[%s293 + $0x70] sm:$0xff] %v689
      %748 = vst [vmem:[%s293 + $0x78] sm:$0xff] %v691
      %749 = vst [vmem:[%s293 + $0x80] sm:$0xff] %v695
      %750 = vst [vmem:[%s293 + $0x88] sm:$0xff] %v697
      %751 = vst [vmem:[%s293 + $0x90] sm:$0xff] %v699
      %752 = vst [vmem:[%s293 + $0x98] sm:$0xff] %v701
      %753 = vst [vmem:[%s293 + $0xa0] sm:$0xff] %v705
      %754 = vst [vmem:[%s293 + $0xa8] sm:$0xff] %v707
      %755 = vst [vmem:[%s293 + $0xb0] sm:$0xff] %v709
      %756 = vst [vmem:[%s293 + $0xb8] sm:$0xff] %v711
      %757 = vst [vmem:[%s293 + $0xc0] sm:$0xff] %v715
      %758 = vst [vmem:[%s293 + $0xc8] sm:$0xff] %v717
      %759 = vst [vmem:[%s293 + $0xd0] sm:$0xff] %v719
      %760 = vst [vmem:[%s293 + $0xd8] sm:$0xff] %v721
      %761 = vst [vmem:[%s293 + $0xe0] sm:$0xff] %v725
      %762 = vst [vmem:[%s293 + $0xe8] sm:$0xff] %v727
      %763 = vst [vmem:[%s293 + $0xf0] sm:$0xff] %v729
      %764 = vst [vmem:[%s293 + $0xf8] sm:$0xff] %v731
      %p765 = scmp.lt.s32.totalorder %s20, 1
      %s766 = scalar_select %p765, %s20, 1
      %p767 = scmp.lt.s32.totalorder %s19, 3
      %s768 = scalar_select %p767, %s19, 3
      %s769 = smul.addr %s768, 32
      %s770 = smul.addr %s766, 128
      %s771 = sadd.s32 %s769, %s770
      %s772 = smul.addr %s771, 8
      %s773 = scalar_lea.vmem %s4, %s772
      // Predicated region
      $region37: #{ppm_forward.3} parent=35 // pred_check
        %p774 = pneg %p153
      $region38: #{ppm_forward.3} parent=35 // pred_check_branch
        %776 = sbr.rel (%p774) target = $region40
      $region39: #{ppm_forward.3} parent=35 // pred_region
        _
      $region40: #{ppm_forward.3} parent=35 // pred_fallthru
        _
    $region36: #{ppm_forward.3} parent=5 // pred_fallthru
      _
    %p777 = scmp.le.s32.totalorder 2, %s10
    // Predicated region
    $region41: #{ppm_forward.3} parent=5 // pred_check
      %p778 = pneg %p777
    $region42: #{ppm_forward.3} parent=5 // pred_check_branch
      %780 = sbr.rel (%p778) target = $region44
    $region43: #{ppm_forward.3} parent=5 // pred_region
      %s781 = ssub.s32 %s10, 2
      // Predicated region
      $region45: #{ppm_forward.3} parent=43 // pred_check
        %p782 = pneg %p159
      $region46: #{ppm_forward.3} parent=43 // pred_check_branch
        %784 = sbr.rel (%p782) target = $region48
      $region47: #{ppm_forward.3} parent=43 // pred_region
        %p785 = scmp.lt.s32.totalorder %s22, 1
        %s786 = scalar_select %p785, %s22, 1
        %p787 = scmp.lt.s32.totalorder %s21, 3
        %s788 = scalar_select %p787, %s21, 3
        %s789 = smul.addr %s788, 32
        %s790 = smul.addr %s786, 128
        %s791 = sadd.s32 %s789, %s790
        %s792 = smul.addr %s791, 8
        %s793 = scalar_lea.vmem %s4, %s792
      $region48: #{ppm_forward.3} parent=43 // pred_fallthru
        _
    $region44: #{ppm_forward.3} parent=5 // pred_fallthru
      _
  $region6: #{ppm_forward.3} parent=0 // loop_footer
    %s14 = sadd.s32 1, %s10
  $region7: #{ppm_forward.3} parent=0 // loop_footer_branch
    %9 = sbr.rel target = $region3
  $region8: #{ppm_forward.3} parent=0 // loop_exit
    _

// kernel: ppm_forward.2
$region0: #{ppm_forward.2}
  #allocation0 [shape = 'u32[]', space=smem, size = 0x4, offset = 0x4, fixed_abs, tag = 'smem constant byte address 0x4 - core index']
  #allocation1 [shape = 'u32[144,128]{1,0:T(1,128)}', space=vmem, size = 0x12000, scoped, tag = 'internal scratch']
  #allocation2 [shape = 'f32[8,192]{1,0:T(8,128)}', space=vmem, size = 0x2000, scoped, tag = 'scratch operand']
  %s0 = inlined_call_operand.vmem [shape: bf16[2,8,256], index: 0, kind: input, shape index: {}]
  %s1 = inlined_call_operand.vmem [shape: bf16[192,256], index: 1, kind: input, shape index: {}]
  %s2 = inlined_call_operand.vmem [shape: bf16[4,128,8], index: 2, kind: input, shape index: {}]
  %s3 = inlined_call_operand.vmem [shape: f32[2,4,128,48], index: 3, kind: output, shape index: {0}]
  %s4 = inlined_call_operand.vmem [shape: f32[2,4,128,1], index: 4, kind: output, shape index: {1}]
  %s5 = inlined_call_operand.vmem [shape: f32[2,4,128,1], index: 5, kind: output, shape index: {2}]
  %6 = xla_tuple %s3, %s4, %s5
  %s7 = sld [smem:[#allocation0]]
  $region69: #{ppm_forward.2} parent=0
    _
  %s9 = ssub.s32 1, %s7
  %s10 = scalar_select 0, %s9, %s7
  loop: start=0, step=1, limit=4
  $region2: #{ppm_forward.2} parent=0 // loop_pre_header
    _
  $region3: #{ppm_forward.2} parent=0 // loop_header
    %s12 = sphi 0, %s16
    %p13 = scmp.ge.s32.totalorder %s12, 4
    %s19 = sphi 0, %s31
    %s20 = sphi 0, %s27
    %s21 = sphi 0, %s19
    %s22 = sphi 0, %s20
    %s23 = sphi 0, %s21
    %s24 = sphi 0, %s22
    %s36 = sphi 0, %s38
    %s39 = sphi 0, %s36
    %s40 = sphi 0, %s39
    %s56 = sphi 0, %s40
    %s62 = sphi 0, %s64
    %s65 = sphi 0, %s62
    %s66 = sphi 0, %s65
    %s82 = sphi 0, %s66
    %s86 = sphi 0, %s86
    %s88 = sphi 0, %s86
    %s89 = sphi 0, %s88
    %s103 = sphi 0, %s89
    %s109 = sphi 0, %s111
    %s112 = sphi 0, %s109
    %s113 = sphi 0, %s112
    %s129 = sphi 0, %s113
    %s135 = sphi 0, %s137
    %s138 = sphi 0, %s135
    %s139 = sphi 0, %s138
    %s155 = sphi 0, %s139
    %s161 = sphi 0, %s163
    %s164 = sphi 0, %s161
    %s165 = sphi 0, %s164
    %s181 = sphi 0, %s165
  $region4: #{ppm_forward.2} parent=0 // loop_header_branch
    %15 = sbr.rel (%p13) target = $region8
  $region5: #{ppm_forward.2} parent=0 // loop_body
    %s17 = ssub.s32 %s12, 1
    %s18 = ssub.s32 %s12, 2
    %s25 = sadd.s32 1, %s20
    %p26 = scmp.ge.s32.totalorder %s25, 1
    %s27 = scalar_select %p26, 0, %s25
    %s28 = sadd.s32 1, %s19
    %s29 = scalar_select %p26, %s28, %s19
    %p30 = scmp.ge.s32.totalorder %s29, 2
    %s31 = scalar_select %p30, 0, %s29
    %s32 = ssub.s32 %s19, %s31
    %s33 = ssub.s32 %s20, %s27
    %s34 = sor.u32 %s32, %s33
    %p35 = scmp.eq.s32.totalorder %s34, 0
    %s37 = sadd.s32 %s36, 1
    %s38 = scalar_select %p35, %s36, %s37
    %p41 = pneg %p35
    %p42 = scmp.eq.s32.totalorder %s12, 1
    %p43 = por %p41, %p42
    %p44 = scmp.ne.s32.totalorder %s36, %s39
    %p45 = scmp.eq.s32.totalorder %s12, 0
    %p46 = por %p44, %p45
    %p47 = scmp.ne.s32.totalorder %s36, %s39
    %p48 = scmp.eq.s32.totalorder %s17, 1
    %p49 = por %p47, %p48
    %p50 = scmp.ne.s32.totalorder %s39, %s40
    %p51 = scmp.eq.s32.totalorder %s17, 0
    %p52 = por %p50, %p51
    %p53 = scmp.ne.s32.totalorder %s39, %s40
    %p54 = scmp.eq.s32.totalorder %s18, 1
    %p55 = por %p53, %p54
    %p57 = scmp.ne.s32.totalorder %s40, %s56
    %p58 = scmp.eq.s32.totalorder %s18, 0
    %p59 = por %p57, %p58
    %s60 = ssub.s32 %s20, %s27
    %p61 = scmp.eq.s32.totalorder %s60, 0
    %s63 = sadd.s32 %s62, 1
    %s64 = scalar_select %p61, %s62, %s63
    %p67 = pneg %p61
    %p68 = scmp.eq.s32.totalorder %s12, 1
    %p69 = por %p67, %p68
    %p70 = scmp.ne.s32.totalorder %s62, %s65
    %p71 = scmp.eq.s32.totalorder %s12, 0
    %p72 = por %p70, %p71
    %p73 = scmp.ne.s32.totalorder %s62, %s65
    %p74 = scmp.eq.s32.totalorder %s17, 1
    %p75 = por %p73, %p74
    %p76 = scmp.ne.s32.totalorder %s65, %s66
    %p77 = scmp.eq.s32.totalorder %s17, 0
    %p78 = por %p76, %p77
    %p79 = scmp.ne.s32.totalorder %s65, %s66
    %p80 = scmp.eq.s32.totalorder %s18, 1
    %p81 = por %p79, %p80
    %p83 = scmp.ne.s32.totalorder %s66, %s82
    %p84 = scmp.eq.s32.totalorder %s18, 0
    %p85 = por %p83, %p84
    %s87 = sadd.s32 %s86, 1
    %p90 = scmp.eq.s32.totalorder %s12, 1
    %p91 = scmp.ne.s32.totalorder %s86, %s88
    %p92 = scmp.eq.s32.totalorder %s12, 0
    %p93 = por %p91, %p92
    %p94 = scmp.ne.s32.totalorder %s86, %s88
    %p95 = scmp.eq.s32.totalorder %s17, 1
    %p96 = por %p94, %p95
    %p97 = scmp.ne.s32.totalorder %s88, %s89
    %p98 = scmp.eq.s32.totalorder %s17, 0
    %p99 = por %p97, %p98
    %p100 = scmp.ne.s32.totalorder %s88, %s89
    %p101 = scmp.eq.s32.totalorder %s18, 1
    %p102 = por %p100, %p101
    %p104 = scmp.ne.s32.totalorder %s89, %s103
    %p105 = scmp.eq.s32.totalorder %s18, 0
    %p106 = por %p104, %p105
    %s107 = ssub.s32 %s19, %s31
    %p108 = scmp.eq.s32.totalorder %s107, 0
    %s110 = sadd.s32 %s109, 1
    %s111 = scalar_select %p108, %s109, %s110
    %p114 = pneg %p108
    %p115 = scmp.eq.s32.totalorder %s12, 1
    %p116 = por %p114, %p115
    %p117 = scmp.ne.s32.totalorder %s109, %s112
    %p118 = scmp.eq.s32.totalorder %s12, 0
    %p119 = por %p117, %p118
    %p120 = scmp.ne.s32.totalorder %s109, %s112
    %p121 = scmp.eq.s32.totalorder %s17, 1
    %p122 = por %p120, %p121
    %p123 = scmp.ne.s32.totalorder %s112, %s113
    %p124 = scmp.eq.s32.totalorder %s17, 0
    %p125 = por %p123, %p124
    %p126 = scmp.ne.s32.totalorder %s112, %s113
    %p127 = scmp.eq.s32.totalorder %s18, 1
    %p128 = por %p126, %p127
    %p130 = scmp.ne.s32.totalorder %s113, %s129
    %p131 = scmp.eq.s32.totalorder %s18, 0
    %p132 = por %p130, %p131
    %s133 = ssub.s32 %s19, %s31
    %p134 = scmp.eq.s32.totalorder %s133, 0
    %s136 = sadd.s32 %s135, 1
    %s137 = scalar_select %p134, %s135, %s136
    %p140 = pneg %p134
    %p141 = scmp.eq.s32.totalorder %s12, 1
    %p142 = por %p140, %p141
    %p143 = scmp.ne.s32.totalorder %s135, %s138
    %p144 = scmp.eq.s32.totalorder %s12, 0
    %p145 = por %p143, %p144
    %p146 = scmp.ne.s32.totalorder %s135, %s138
    %p147 = scmp.eq.s32.totalorder %s17, 1
    %p148 = por %p146, %p147
    %p149 = scmp.ne.s32.totalorder %s138, %s139
    %p150 = scmp.eq.s32.totalorder %s17, 0
    %p151 = por %p149, %p150
    %p152 = scmp.ne.s32.totalorder %s138, %s139
    %p153 = scmp.eq.s32.totalorder %s18, 1
    %p154 = por %p152, %p153
    %p156 = scmp.ne.s32.totalorder %s139, %s155
    %p157 = scmp.eq.s32.totalorder %s18, 0
    %p158 = por %p156, %p157
    %s159 = ssub.s32 %s19, %s31
    %p160 = scmp.eq.s32.totalorder %s159, 0
    %s162 = sadd.s32 %s161, 1
    %s163 = scalar_select %p160, %s161, %s162
    %p166 = pneg %p160
    %p167 = scmp.eq.s32.totalorder %s12, 1
    %p168 = por %p166, %p167
    %p169 = scmp.ne.s32.totalorder %s161, %s164
    %p170 = scmp.eq.s32.totalorder %s12, 0
    %p171 = por %p169, %p170
    %p172 = scmp.ne.s32.totalorder %s161, %s164
    %p173 = scmp.eq.s32.totalorder %s17, 1
    %p174 = por %p172, %p173
    %p175 = scmp.ne.s32.totalorder %s164, %s165
    %p176 = scmp.eq.s32.totalorder %s17, 0
    %p177 = por %p175, %p176
    %p178 = scmp.ne.s32.totalorder %s164, %s165
    %p179 = scmp.eq.s32.totalorder %s18, 1
    %p180 = por %p178, %p179
    %p182 = scmp.ne.s32.totalorder %s165, %s181
    %p183 = scmp.eq.s32.totalorder %s18, 0
    %p184 = por %p182, %p183
    %p185 = scmp.le.s32.totalorder 1, %s12
    %p186 = scmp.lt.s32.totalorder %s12, 3
    %p187 = pnand %p185, %p186
    %p188 = pneg %p187
    // Predicated region
    $region9: #{ppm_forward.2} parent=5 // pred_check
      _
    $region10: #{ppm_forward.2} parent=5 // pred_check_branch
      %190 = sbr.rel (%p187) target = $region12
    $region11: #{ppm_forward.2} parent=5 // pred_region
      %s191 = ssub.s32 %s12, 1
      // Predicated region
      $region13: #{ppm_forward.2} parent=11 // pred_check
        %p192 = pneg %p78
      $region14: #{ppm_forward.2} parent=11 // pred_check_branch
        %194 = sbr.rel (%p192) target = $region16
      $region15: #{ppm_forward.2} parent=11 // pred_region
        %s195 = smul.u32 2, %s22
        %p196 = scmp.lt.s32.totalorder %s195, 1
        %s197 = scalar_select %p196, %s195, 1
        %s198 = smul.addr %s197, 4
        %s199 = scalar_lea.vmem %s1, %s198
        %s200 = smul.u32 2, %s22
      $region16: #{ppm_forward.2} parent=11 // pred_fallthru
        _
      // Predicated region
      $region17: #{ppm_forward.2} parent=11 // pred_check
        %p201 = pneg %p99
      $region18: #{ppm_forward.2} parent=11 // pred_check_branch
        %203 = sbr.rel (%p201) target = $region20
      $region19: #{ppm_forward.2} parent=11 // pred_region
        _
      $region20: #{ppm_forward.2} parent=11 // pred_fallthru
        _
    $region12: #{ppm_forward.2} parent=5 // pred_fallthru
      _
    %p204 = scmp.lt.s32.totalorder %s12, 2
    // Predicated region
    $region21: #{ppm_forward.2} parent=5 // pred_check
      %p205 = pneg %p204
    $region22: #{ppm_forward.2} parent=5 // pred_check_branch
      %207 = sbr.rel (%p205) target = $region24
    $region23: #{ppm_forward.2} parent=5 // pred_region
      // Predicated region
      $region25: #{ppm_forward.2} parent=23 // pred_check
        %p208 = pneg %p46
      $region26: #{ppm_forward.2} parent=23 // pred_check_branch
        %210 = sbr.rel (%p208) target = $region28
      $region27: #{ppm_forward.2} parent=23 // pred_region
        %s211 = smul.u32 2, %s20
        %p212 = scmp.lt.s32.totalorder %s19, 1
        %s213 = scalar_select %p212, %s19, 1
        %p214 = scmp.lt.s32.totalorder %s211, 1
        %s215 = scalar_select %p214, %s211, 1
        %s216 = smul.addr %s213, 2
        %s217 = sadd.s32 %s215, %s216
        %s218 = smul.addr %s217, 4
        %s219 = scalar_lea.vmem %s0, %s218
        %s220 = smul.u32 2, %s20
      $region28: #{ppm_forward.2} parent=23 // pred_fallthru
        _
    $region24: #{ppm_forward.2} parent=5 // pred_fallthru
      _
    %p221 = scmp.le.s32.totalorder 1, %s12
    %p222 = scmp.lt.s32.totalorder %s12, 3
    %p223 = pnand %p221, %p222
    %p224 = pneg %p223
    // Predicated region
    $region29: #{ppm_forward.2} parent=5 // pred_check
      _
    $region30: #{ppm_forward.2} parent=5 // pred_check_branch
      %226 = sbr.rel (%p223) target = $region32
    $region31: #{ppm_forward.2} parent=5 // pred_region
      %s227 = ssub.s32 %s12, 1
      %s228 = smul.u32 2, %s22
      %p229 = scmp.lt.s32.totalorder %s21, 1
      %s230 = scalar_select %p229, %s21, 1
      %p231 = scmp.lt.s32.totalorder %s228, 1
      %s232 = scalar_select %p231, %s228, 1
      %s233 = smul.addr %s230, 2
      %s234 = sadd.s32 %s232, %s233
      %s235 = smul.addr %s234, 4
      %s236 = scalar_lea.vmem %s0, %s235
      %p237 = pneg %p52
      %p238 = pneg %p49
      %s239 = smul.u32 2, %s22
      %p240 = scmp.lt.s32.totalorder %s239, 1
      %s241 = scalar_select %p240, %s239, 1
      %s242 = smul.addr %s241, 4
      %s243 = scalar_lea.vmem %s1, %s242
      %p244 = pneg %p78
      %p245 = pneg %p75
      %p246 = pneg %p99
      %p247 = pneg %p96
      %p248 = pneg %p125
      %p249 = pneg %p122
      %p250 = scmp.lt.s32.totalorder %s21, 1
      %s251 = scalar_select %p250, %s21, 1
      %s252 = smul.addr %s251, 64
      %s253 = smul.addr %s252, 8
      %s254 = scalar_lea.vmem %s3, %s253
      %p255 = pneg %p151
      %p256 = pneg %p148
      %p257 = scmp.lt.s32.totalorder %s21, 1
      %s258 = scalar_select %p257, %s21, 1
      %s259 = smul.addr %s258, 64
      %s260 = smul.addr %s259, 8
      %s261 = scalar_lea.vmem %s4, %s260
      %p262 = pneg %p177
      %p263 = pneg %p174
      %p264 = scmp.lt.s32.totalorder %s21, 1
      %s265 = scalar_select %p264, %s21, 1
      %s266 = smul.addr %s265, 64
      %s267 = smul.addr %s266, 8
      %s268 = scalar_lea.vmem %s5, %s267
      %s269 = smul.u32 2, %s22
      %p270 = scmp.lt.s32.totalorder %s21, 1
      %s271 = scalar_select %p270, %s21, 1
      %p272 = scmp.lt.s32.totalorder %s269, 1
      %s273 = scalar_select %p272, %s269, 1
      %s274 = smul.addr %s271, 2
      %s275 = sadd.s32 %s273, %s274
      %s276 = smul.addr %s275, 4
      %s277 = scalar_lea.vmem %s0, %s276
      %s278 = smul.u32 2, %s22
      %s279 = smul.u32 2, %s22
      %p280 = scmp.lt.s32.totalorder %s279, 1
      %s281 = scalar_select %p280, %s279, 1
      %s282 = smul.addr %s281, 4
      %s283 = scalar_lea.vmem %s1, %s282
      %s284 = smul.u32 2, %s22
      %p285 = scmp.lt.s32.totalorder %s21, 1
      %s286 = scalar_select %p285, %s21, 1
      %s287 = smul.addr %s286, 64
      %s288 = smul.addr %s287, 8
      %s289 = scalar_lea.vmem %s3, %s288
      %p290 = scmp.lt.s32.totalorder %s21, 1
      %s291 = scalar_select %p290, %s21, 1
      %s292 = smul.addr %s291, 64
      %s293 = smul.addr %s292, 8
      %s294 = scalar_lea.vmem %s4, %s293
      %p295 = scmp.lt.s32.totalorder %s21, 1
      %s296 = scalar_select %p295, %s21, 1
      %s297 = smul.addr %s296, 64
      %s298 = smul.addr %s297, 8
      %s299 = scalar_lea.vmem %s5, %s298
      %p301 = scmp.eq.s32.totalorder %s22, 0
      // Predicated region
      $region33: #{ppm_forward.2} parent=31 // pred_check
        %p302 = pneg %p301
      $region34: #{ppm_forward.2} parent=31 // pred_check_branch
        %304 = sbr.rel (%p302) target = $region36
      $region35: #{ppm_forward.2} parent=31 // pred_region
        %305 = vst [vmem:[#allocation2] sm:$0xff] 0.0
        %vm306 = vcmask 523264
        %307 = vst.msk [vmem:[#allocation2 + $0x8] sm:$0xff] %vm306, 0.0
      $region36: #{ppm_forward.2} parent=31 // pred_fallthru
        _
      %v308 = vld [vmem:[#allocation2] sm:$0xff]
      %v309 = vld [vmem:[#allocation2 + $0x8] sm:$0xff]
      %v310 = vld [vmem:[%s277] sm:$0xff]
      %v311 = vld [vmem:[%s283] sm:$0xff]
      %v312 = vld [vmem:[%s283 + $0x8] sm:$0xff]
      %v313 = vld [vmem:[%s283 + $0x10] sm:$0xff]
      %v314 = vld [vmem:[%s283 + $0x18] sm:$0xff]
      %v315 = vld [vmem:[%s283 + $0x20] sm:$0xff]
      %v316 = vld [vmem:[%s283 + $0x28] sm:$0xff]
      %v317 = vld [vmem:[%s283 + $0x30] sm:$0xff]
      %v318 = vld [vmem:[%s283 + $0x38] sm:$0xff]
      %v319 = vld [vmem:[%s283 + $0x40] sm:$0xff]
      %v320 = vld [vmem:[%s283 + $0x48] sm:$0xff]
      %v321 = vld [vmem:[%s283 + $0x50] sm:$0xff]
      %v322 = vld [vmem:[%s283 + $0x58] sm:$0xff]
      %v323 = vld [vmem:[%s283 + $0x60] sm:$0xff]
      %v324 = vld [vmem:[%s283 + $0x68] sm:$0xff]
      %v325 = vld [vmem:[%s283 + $0x70] sm:$0xff]
      %v326 = vld [vmem:[%s283 + $0x78] sm:$0xff]
      %v327 = vld [vmem:[%s283 + $0x80] sm:$0xff]
      %v328 = vld [vmem:[%s283 + $0x88] sm:$0xff]
      %v329 = vld [vmem:[%s283 + $0x90] sm:$0xff]
      %v330 = vld [vmem:[%s283 + $0x98] sm:$0xff]
      %v331 = vld [vmem:[%s283 + $0xa0] sm:$0xff]
      %v332 = vld [vmem:[%s283 + $0xa8] sm:$0xff]
      %v333 = vld [vmem:[%s283 + $0xb0] sm:$0xff]
      %v334 = vld [vmem:[%s283 + $0xb8] sm:$0xff]
      %v336 = vunpack.c.l.b16 %v310
      %v337 = vunpack.c.h.b16 %v310
      %v338 = vpack.c.b16 %v336, %v336
      %v339 = vpack.c.b16 %v337, %v337
      %v366 = vunpack.c.l.b16 %v311
      %v367 = vunpack.c.h.b16 %v311
      %v368 = vunpack.c.l.b16 %v312
      %v369 = vunpack.c.h.b16 %v312
      %v370 = vunpack.c.l.b16 %v313
      %v371 = vunpack.c.h.b16 %v313
      %v372 = vunpack.c.l.b16 %v314
      %v373 = vunpack.c.h.b16 %v314
      %v374 = vunpack.c.l.b16 %v315
      %v375 = vunpack.c.h.b16 %v315
      %v376 = vunpack.c.l.b16 %v316
      %v377 = vunpack.c.h.b16 %v316
      %v378 = vunpack.c.l.b16 %v317
      %v379 = vunpack.c.h.b16 %v317
      %v380 = vunpack.c.l.b16 %v318
      %v381 = vunpack.c.h.b16 %v318
      %v382 = vunpack.c.l.b16 %v319
      %v383 = vunpack.c.h.b16 %v319
      %v384 = vunpack.c.l.b16 %v320
      %v385 = vunpack.c.h.b16 %v320
      %v386 = vunpack.c.l.b16 %v321
      %v387 = vunpack.c.h.b16 %v321
      %v388 = vunpack.c.l.b16 %v322
      %v389 = vunpack.c.h.b16 %v322
      %v390 = vunpack.c.l.b16 %v323
      %v391 = vunpack.c.h.b16 %v323
      %v392 = vunpack.c.l.b16 %v324
      %v393 = vunpack.c.h.b16 %v324
      %v394 = vunpack.c.l.b16 %v325
      %v395 = vunpack.c.h.b16 %v325
      %v396 = vunpack.c.l.b16 %v326
      %v397 = vunpack.c.h.b16 %v326
      %v398 = vunpack.c.l.b16 %v327
      %v399 = vunpack.c.h.b16 %v327
      %v400 = vunpack.c.l.b16 %v328
      %v401 = vunpack.c.h.b16 %v328
      %v402 = vunpack.c.l.b16 %v329
      %v403 = vunpack.c.h.b16 %v329
      %v404 = vunpack.c.l.b16 %v330
      %v405 = vunpack.c.h.b16 %v330
      %v406 = vunpack.c.l.b16 %v331
      %v407 = vunpack.c.h.b16 %v331
      %v408 = vunpack.c.l.b16 %v332
      %v409 = vunpack.c.h.b16 %v332
      %v410 = vunpack.c.l.b16 %v333
      %v411 = vunpack.c.h.b16 %v333
      %v412 = vunpack.c.l.b16 %v334
      %v413 = vunpack.c.h.b16 %v334
      %v414 = vpack.c.b16 %v368, %v366
      %v415 = vpack.c.b16 %v369, %v367
      %v416 = vpack.c.b16 %v372, %v370
      %v417 = vpack.c.b16 %v373, %v371
      %v418 = vpack.c.b16 %v376, %v374
      %v419 = vpack.c.b16 %v377, %v375
      %v420 = vpack.c.b16 %v380, %v378
      %v421 = vpack.c.b16 %v381, %v379
      %v422 = vpack.c.b16 %v384, %v382
      %v423 = vpack.c.b16 %v385, %v383
      %v424 = vpack.c.b16 %v388, %v386
      %v425 = vpack.c.b16 %v389, %v387
      %v426 = vpack.c.b16 %v392, %v390
      %v427 = vpack.c.b16 %v393, %v391
      %v428 = vpack.c.b16 %v396, %v394
      %v429 = vpack.c.b16 %v397, %v395
      %v430 = vpack.c.b16 %v400, %v398
      %v431 = vpack.c.b16 %v401, %v399
      %v432 = vpack.c.b16 %v404, %v402
      %v433 = vpack.c.b16 %v405, %v403
      %v434 = vpack.c.b16 %v408, %v406
      %v435 = vpack.c.b16 %v409, %v407
      %v436 = vpack.c.b16 %v412, %v410
      %v437 = vpack.c.b16 %v413, %v411
      %462 = vmatprep.subr.bf16.mxu0 %v415
      %463 = vmatpush1.bf16.xpose.msra.mxu0 %v414
      %464 = vmatprep.subr.bf16.mxu0 %v417
      %465 = vmatpush1.bf16.xpose.msra.mxu0 %v416
      %466 = vmatprep.subr.bf16.mxu0 %v419
      %467 = vmatpush1.bf16.xpose.msra.mxu0 %v418
      %468 = vmatprep.subr.bf16.mxu0 %v421
      %469 = vmatpush1.bf16.xpose.msra.mxu0 %v420
      %470 = vmatprep.subr.bf16.mxu0 %v423
      %471 = vmatpush1.bf16.xpose.msra.mxu0 %v422
      %472 = vmatprep.subr.bf16.mxu0 %v425
      %473 = vmatpush1.bf16.xpose.msra.mxu0 %v424
      %474 = vmatprep.subr.bf16.mxu0 %v427
      %475 = vmatpush1.bf16.xpose.msra.mxu0 %v426
      %476 = vmatprep.subr.bf16.mxu0 %v429
      %477 = vmatpush1.bf16.xpose.msra.mxu0 %v428
      %478 = vmatprep.subr.bf16.mxu0 %v431
      %479 = vmatpush1.bf16.xpose.msra.mxu0 %v430
      %480 = vmatprep.subr.bf16.mxu0 %v433
      %481 = vmatpush1.bf16.xpose.msra.mxu0 %v432
      %482 = vmatprep.subr.bf16.mxu0 %v435
      %483 = vmatpush1.bf16.xpose.msra.mxu0 %v434
      %484 = vmatprep.subr.bf16.mxu0 %v437
      %485 = vmatpush1.bf16.xpose.msra.mxu0 %v436
      %486 = vmatprep.subr.bf16.mxu0 0
      %487 = vmatpush1.bf16.xpose.msra.mxu0 0
      %488 = vmatprep.subr.bf16.mxu0 0
      %489 = vmatpush1.bf16.xpose.msra.mxu0 0
      %490 = vmatprep.subr.bf16.mxu0 0
      %491 = vmatpush1.bf16.xpose.msra.mxu0 0
      %492 = vmatprep.subr.bf16.mxu0 0
      %493 = vmatpush1.bf16.xpose.msra.mxu0 0
      %494 = vmatprep.mubr.bf16.mxu0 %v339
      %495 = vmatmul.mubr.bf16.gmra.mrb[0].mxu0 %v338
      %v496 = vpop.f32.mrb[0].mxu0
      %v497 = vadd.f32 0.0, %v496
      %v498 = vpop.f32.mrb[0].mxu0
      %v499 = vadd.f32 0.0, %v498
      %v500 = vpop.f32.mrb[0].mxu0
      %v501 = vpop.f32.mrb[0].mxu0
      %502 = vdwg.mxu0
      %v503 = vadd.f32 %v308, %v497
      %v504 = vadd.f32 %v309, %v499
      %505 = vst [vmem:[#allocation2] sm:$0xff] %v503
      %vm506 = vcmask 523264
      %507 = vst.msk [vmem:[#allocation2 + $0x8] sm:$0xff] %vm506, %v504
      // Predicated region
      $region37: #{ppm_forward.2} parent=31 // pred_check
        %p508 = pneg %p301
      $region38: #{ppm_forward.2} parent=31 // pred_check_branch
        %510 = sbr.rel (%p508) target = $region40
      $region39: #{ppm_forward.2} parent=31 // pred_region
        %v511 = vld [vmem:[#allocation2] sm:$0xff]
        %v512 = vpack.c.bf16 %v511, %v511
        %v513 = vld [vmem:[%s2] sm:$0xf]
        %v514 = vld [vmem:[%s2 + $0x4] sm:$0xf]
        %v515 = vld [vmem:[%s2 + $0x8] sm:$0xf]
        %v516 = vld [vmem:[%s2 + $0xc] sm:$0xf]
        %v517 = vld [vmem:[%s2 + $0x10] sm:$0xf]
        %v518 = vld [vmem:[%s2 + $0x14] sm:$0xf]
        %v519 = vld [vmem:[%s2 + $0x18] sm:$0xf]
        %v520 = vld [vmem:[%s2 + $0x1c] sm:$0xf]
        %v521 = vld [vmem:[%s2 + $0x20] sm:$0xf]
        %v522 = vld [vmem:[%s2 + $0x24] sm:$0xf]
        %v523 = vld [vmem:[%s2 + $0x28] sm:$0xf]
        %v524 = vld [vmem:[%s2 + $0x2c] sm:$0xf]
        %v525 = vld [vmem:[%s2 + $0x30] sm:$0xf]
        %v526 = vld [vmem:[%s2 + $0x34] sm:$0xf]
        %v527 = vld [vmem:[%s2 + $0x38] sm:$0xf]
        %v528 = vld [vmem:[%s2 + $0x3c] sm:$0xf]
        %v545 = vunpack.c.l.b16 %v513
        %v546 = vunpack.c.l.b16 %v514
        %v547 = vunpack.c.l.b16 %v515
        %v548 = vunpack.c.l.b16 %v516
        %v549 = vunpack.c.l.b16 %v517
        %v550 = vunpack.c.l.b16 %v518
        %v551 = vunpack.c.l.b16 %v519
        %v552 = vunpack.c.l.b16 %v520
        %v553 = vunpack.c.l.b16 %v521
        %v554 = vunpack.c.l.b16 %v522
        %v555 = vunpack.c.l.b16 %v523
        %v556 = vunpack.c.l.b16 %v524
        %v557 = vunpack.c.l.b16 %v525
        %v558 = vunpack.c.l.b16 %v526
        %v559 = vunpack.c.l.b16 %v527
        %v560 = vunpack.c.l.b16 %v528
        %v561 = vpack.c.b16 %v546, %v545
        %v562 = vpack.c.b16 %v548, %v547
        %v563 = vpack.c.b16 %v550, %v549
        %v564 = vpack.c.b16 %v552, %v551
        %v565 = vpack.c.b16 %v554, %v553
        %v566 = vpack.c.b16 %v556, %v555
        %v567 = vpack.c.b16 %v558, %v557
        %v568 = vpack.c.b16 %v560, %v559
        %vm569 = vcmask 64512
        %v571 = vsel %vm569, %v561, 0
        %v574 = vsel %vm569, %v562, 0
        %v577 = vsel %vm569, %v563, 0
        %v580 = vsel %vm569, %v564, 0
        %v583 = vsel %vm569, %v565, 0
        %v586 = vsel %vm569, %v566, 0
        %v589 = vsel %vm569, %v567, 0
        %v592 = vsel %vm569, %v568, 0
        %vm594 = vcmask 1043456
        %v596 = vsel %vm594, %v512, 0
        %598 = vmatprep.subr.bf16.mxu0 0
        %599 = vmatpush1.bf16.msra.mxu0 %v596
        %600 = vmatprep.subr.bf16.mxu0 0
        %601 = vmatpush1.bf16.msra.mxu0 0
        %602 = vmatprep.subr.bf16.mxu0 0
        %603 = vmatpush1.bf16.msra.mxu0 0
        %604 = vmatprep.subr.bf16.mxu0 0
        %605 = vmatpush1.bf16.msra.mxu0 0
        %606 = vmatprep.subr.bf16.mxu0 0
        %607 = vmatpush1.bf16.msra.mxu0 0
        %608 = vmatprep.subr.bf16.mxu0 0
        %609 = vmatpush1.bf16.msra.mxu0 0
        %610 = vmatprep.subr.bf16.mxu0 0
        %611 = vmatpush1.bf16.msra.mxu0 0
        %612 = vmatprep.subr.bf16.mxu0 0
        %613 = vmatpush1.bf16.msra.mxu0 0
        %614 = vmatprep.subr.bf16.mxu0 0
        %615 = vmatpush1.bf16.msra.mxu0 0
        %616 = vmatprep.subr.bf16.mxu0 0
        %617 = vmatpush1.bf16.msra.mxu0 0
        %618 = vmatprep.subr.bf16.mxu0 0
        %619 = vmatpush1.bf16.msra.mxu0 0
        %620 = vmatprep.subr.bf16.mxu0 0
        %621 = vmatpush1.bf16.msra.mxu0 0
        %622 = vmatprep.subr.bf16.mxu0 0
        %623 = vmatpush1.bf16.msra.mxu0 0
        %624 = vmatprep.subr.bf16.mxu0 0
        %625 = vmatpush1.bf16.msra.mxu0 0
        %626 = vmatprep.subr.bf16.mxu0 0
        %627 = vmatpush1.bf16.msra.mxu0 0
        %628 = vmatprep.subr.bf16.mxu0 0
        %629 = vmatpush1.bf16.msra.mxu0 0
        %630 = vmatprep.mubr.bf16.mxu0 0
        %631 = vmatmul.mubr.bf16.gmra.mrb[0].mxu0 %v571
        %v632 = vpop.f32.mrb[0].mxu0
        %v633 = vadd.f32 0.0, %v632
        %v634 = vpop.f32.mrb[0].mxu0
        %v635 = vpop.f32.mrb[0].mxu0
        %v636 = vadd.f32 0.0, %v635
        %v637 = vpop.f32.mrb[0].mxu0
        %638 = vmatprep.mubr.bf16.mxu0 0
        %639 = vmatmul.mubr.bf16.gmra.mrb[0].mxu0 %v574
        %v640 = vpop.f32.mrb[0].mxu0
        %v641 = vadd.f32 0.0, %v640
        %v642 = vpop.f32.mrb[0].mxu0
        %v643 = vpop.f32.mrb[0].mxu0
        %v644 = vadd.f32 0.0, %v643
        %v645 = vpop.f32.mrb[0].mxu0
        %646 = vmatprep.mubr.bf16.mxu0 0
        %647 = vmatmul.mubr.bf16.gmra.mrb[0].mxu0 %v577
        %v648 = vpop.f32.mrb[0].mxu0
        %v649 = vadd.f32 0.0, %v648
        %v650 = vpop.f32.mrb[0].mxu0
        %v651 = vpop.f32.mrb[0].mxu0
        %v652 = vadd.f32 0.0, %v651
        %v653 = vpop.f32.mrb[0].mxu0
        %654 = vmatprep.mubr.bf16.mxu0 0
        %655 = vmatmul.mubr.bf16.gmra.mrb[0].mxu0 %v580
        %v656 = vpop.f32.mrb[0].mxu0
        %v657 = vadd.f32 0.0, %v656
        %v658 = vpop.f32.mrb[0].mxu0
        %v659 = vpop.f32.mrb[0].mxu0
        %v660 = vadd.f32 0.0, %v659
        %v661 = vpop.f32.mrb[0].mxu0
        %662 = vmatprep.mubr.bf16.mxu0 0
        %663 = vmatmul.mubr.bf16.gmra.mrb[0].mxu0 %v583
        %v664 = vpop.f32.mrb[0].mxu0
        %v665 = vadd.f32 0.0, %v664
        %v666 = vpop.f32.mrb[0].mxu0
        %v667 = vpop.f32.mrb[0].mxu0
        %v668 = vadd.f32 0.0, %v667
        %v669 = vpop.f32.mrb[0].mxu0
        %670 = vmatprep.mubr.bf16.mxu0 0
        %671 = vmatmul.mubr.bf16.gmra.mrb[0].mxu0 %v586
        %v672 = vpop.f32.mrb[0].mxu0
        %v673 = vadd.f32 0.0, %v672
        %v674 = vpop.f32.mrb[0].mxu0
        %v675 = vpop.f32.mrb[0].mxu0
        %v676 = vadd.f32 0.0, %v675
        %v677 = vpop.f32.mrb[0].mxu0
        %678 = vmatprep.mubr.bf16.mxu0 0
        %679 = vmatmul.mubr.bf16.gmra.mrb[0].mxu0 %v589
        %v680 = vpop.f32.mrb[0].mxu0
        %v681 = vadd.f32 0.0, %v680
        %v682 = vpop.f32.mrb[0].mxu0
        %v683 = vpop.f32.mrb[0].mxu0
        %v684 = vadd.f32 0.0, %v683
        %v685 = vpop.f32.mrb[0].mxu0
        %686 = vmatprep.mubr.bf16.mxu0 0
        %687 = vmatmul.mubr.bf16.gmra.mrb[0].mxu0 %v592
        %v688 = vpop.f32.mrb[0].mxu0
        %v689 = vadd.f32 0.0, %v688
        %v690 = vpop.f32.mrb[0].mxu0
        %v691 = vpop.f32.mrb[0].mxu0
        %v692 = vadd.f32 0.0, %v691
        %v693 = vpop.f32.mrb[0].mxu0
        %694 = vdwg.mxu0
        %vm695 = vcmask 392192
        %696 = vst.msk [vmem:[%s289] sm:$0xff] %vm695, %v633
        %697 = vst.msk [vmem:[%s289 + $0x8] sm:$0xff] %vm695, %v636
        %698 = vst.msk [vmem:[%s289 + $0x10] sm:$0xff] %vm695, %v641
        %699 = vst.msk [vmem:[%s289 + $0x18] sm:$0xff] %vm695, %v644
        %700 = vst.msk [vmem:[%s289 + $0x20] sm:$0xff] %vm695, %v649
        %701 = vst.msk [vmem:[%s289 + $0x28] sm:$0xff] %vm695, %v652
        %702 = vst.msk [vmem:[%s289 + $0x30] sm:$0xff] %vm695, %v657
        %703 = vst.msk [vmem:[%s289 + $0x38] sm:$0xff] %vm695, %v660
        %704 = vst.msk [vmem:[%s289 + $0x40] sm:$0xff] %vm695, %v665
        %705 = vst.msk [vmem:[%s289 + $0x48] sm:$0xff] %vm695, %v668
        %706 = vst.msk [vmem:[%s289 + $0x50] sm:$0xff] %vm695, %v673
        %707 = vst.msk [vmem:[%s289 + $0x58] sm:$0xff] %vm695, %v676
        %708 = vst.msk [vmem:[%s289 + $0x60] sm:$0xff] %vm695, %v681
        %709 = vst.msk [vmem:[%s289 + $0x68] sm:$0xff] %vm695, %v684
        %710 = vst.msk [vmem:[%s289 + $0x70] sm:$0xff] %vm695, %v689
        %711 = vst.msk [vmem:[%s289 + $0x78] sm:$0xff] %vm695, %v692
        %v712 = vsel %vm695, %v633, 0.0
        %713 = vadd.xlane.f32.xlu0 %v712
        %v714 = vpop.xlane.xlu0 %713
        %v715 = vsel %vm695, %v636, 0.0
        %716 = vadd.xlane.f32.xlu0 %v715
        %v717 = vpop.xlane.xlu0 %716
        %v718 = vsel %vm695, %v641, 0.0
        %719 = vadd.xlane.f32.xlu0 %v718
        %v720 = vpop.xlane.xlu0 %719
        %v721 = vsel %vm695, %v644, 0.0
        %722 = vadd.xlane.f32.xlu0 %v721
        %v723 = vpop.xlane.xlu0 %722
        %v724 = vsel %vm695, %v649, 0.0
        %725 = vadd.xlane.f32.xlu0 %v724
        %v726 = vpop.xlane.xlu0 %725
        %v727 = vsel %vm695, %v652, 0.0
        %728 = vadd.xlane.f32.xlu0 %v727
        %v729 = vpop.xlane.xlu0 %728
        %v730 = vsel %vm695, %v657, 0.0
        %731 = vadd.xlane.f32.xlu0 %v730
        %v732 = vpop.xlane.xlu0 %731
        %v733 = vsel %vm695, %v660, 0.0
        %734 = vadd.xlane.f32.xlu0 %v733
        %v735 = vpop.xlane.xlu0 %734
        %v736 = vsel %vm695, %v665, 0.0
        %737 = vadd.xlane.f32.xlu0 %v736
        %v738 = vpop.xlane.xlu0 %737
        %v739 = vsel %vm695, %v668, 0.0
        %740 = vadd.xlane.f32.xlu0 %v739
        %v741 = vpop.xlane.xlu0 %740
        %v742 = vsel %vm695, %v673, 0.0
        %743 = vadd.xlane.f32.xlu0 %v742
        %v744 = vpop.xlane.xlu0 %743
        %v745 = vsel %vm695, %v676, 0.0
        %746 = vadd.xlane.f32.xlu0 %v745
        %v747 = vpop.xlane.xlu0 %746
        %v748 = vsel %vm695, %v681, 0.0
        %749 = vadd.xlane.f32.xlu0 %v748
        %v750 = vpop.xlane.xlu0 %749
        %v751 = vsel %vm695, %v684, 0.0
        %752 = vadd.xlane.f32.xlu0 %v751
        %v753 = vpop.xlane.xlu0 %752
        %v754 = vsel %vm695, %v689, 0.0
        %755 = vadd.xlane.f32.xlu0 %v754
        %v756 = vpop.xlane.xlu0 %755
        %v757 = vsel %vm695, %v692, 0.0
        %758 = vadd.xlane.f32.xlu0 %v757
        %v759 = vpop.xlane.xlu0 %758
        %vm760 = vcmask 7168
        %761 = vst.msk [vmem:[%s294] sm:$0xff] %vm760, %v714
        %762 = vst.msk [vmem:[%s294 + $0x8] sm:$0xff] %vm760, %v717
        %763 = vst.msk [vmem:[%s294 + $0x10] sm:$0xff] %vm760, %v720
        %764 = vst.msk [vmem:[%s294 + $0x18] sm:$0xff] %vm760, %v723
        %765 = vst.msk [vmem:[%s294 + $0x20] sm:$0xff] %vm760, %v726
        %766 = vst.msk [vmem:[%s294 + $0x28] sm:$0xff] %vm760, %v729
        %767 = vst.msk [vmem:[%s294 + $0x30] sm:$0xff] %vm760, %v732
        %768 = vst.msk [vmem:[%s294 + $0x38] sm:$0xff] %vm760, %v735
        %769 = vst.msk [vmem:[%s294 + $0x40] sm:$0xff] %vm760, %v738
        %770 = vst.msk [vmem:[%s294 + $0x48] sm:$0xff] %vm760, %v741
        %771 = vst.msk [vmem:[%s294 + $0x50] sm:$0xff] %vm760, %v744
        %772 = vst.msk [vmem:[%s294 + $0x58] sm:$0xff] %vm760, %v747
        %773 = vst.msk [vmem:[%s294 + $0x60] sm:$0xff] %vm760, %v750
        %774 = vst.msk [vmem:[%s294 + $0x68] sm:$0xff] %vm760, %v753
        %775 = vst.msk [vmem:[%s294 + $0x70] sm:$0xff] %vm760, %v756
        %776 = vst.msk [vmem:[%s294 + $0x78] sm:$0xff] %vm760, %v759
        %v777 = vmul.f32 %v633, %v633
        %v778 = vmul.f32 %v636, %v636
        %v779 = vmul.f32 %v641, %v641
        %v780 = vmul.f32 %v644, %v644
        %v781 = vmul.f32 %v649, %v649
        %v782 = vmul.f32 %v652, %v652
        %v783 = vmul.f32 %v657, %v657
        %v784 = vmul.f32 %v660, %v660
        %v785 = vmul.f32 %v665, %v665
        %v786 = vmul.f32 %v668, %v668
        %v787 = vmul.f32 %v673, %v673
        %v788 = vmul.f32 %v676, %v676
        %v789 = vmul.f32 %v681, %v681
        %v790 = vmul.f32 %v684, %v684
        %v791 = vmul.f32 %v689, %v689
        %v792 = vmul.f32 %v692, %v692
        %v793 = vsel %vm695, %v777, 0.0
        %794 = vadd.xlane.f32.xlu0 %v793
        %v795 = vpop.xlane.xlu0 %794
        %v796 = vsel %vm695, %v778, 0.0
        %797 = vadd.xlane.f32.xlu0 %v796
        %v798 = vpop.xlane.xlu0 %797
        %v799 = vsel %vm695, %v779, 0.0
        %800 = vadd.xlane.f32.xlu0 %v799
        %v801 = vpop.xlane.xlu0 %800
        %v802 = vsel %vm695, %v780, 0.0
        %803 = vadd.xlane.f32.xlu0 %v802
        %v804 = vpop.xlane.xlu0 %803
        %v805 = vsel %vm695, %v781, 0.0
        %806 = vadd.xlane.f32.xlu0 %v805
        %v807 = vpop.xlane.xlu0 %806
        %v808 = vsel %vm695, %v782, 0.0
        %809 = vadd.xlane.f32.xlu0 %v808
        %v810 = vpop.xlane.xlu0 %809
        %v811 = vsel %vm695, %v783, 0.0
        %812 = vadd.xlane.f32.xlu0 %v811
        %v813 = vpop.xlane.xlu0 %812
        %v814 = vsel %vm695, %v784, 0.0
        %815 = vadd.xlane.f32.xlu0 %v814
        %v816 = vpop.xlane.xlu0 %815
        %v817 = vsel %vm695, %v785, 0.0
        %818 = vadd.xlane.f32.xlu0 %v817
        %v819 = vpop.xlane.xlu0 %818
        %v820 = vsel %vm695, %v786, 0.0
        %821 = vadd.xlane.f32.xlu0 %v820
        %v822 = vpop.xlane.xlu0 %821
        %v823 = vsel %vm695, %v787, 0.0
        %824 = vadd.xlane.f32.xlu0 %v823
        %v825 = vpop.xlane.xlu0 %824
        %v826 = vsel %vm695, %v788, 0.0
        %827 = vadd.xlane.f32.xlu0 %v826
        %v828 = vpop.xlane.xlu0 %827
        %v829 = vsel %vm695, %v789, 0.0
        %830 = vadd.xlane.f32.xlu0 %v829
        %v831 = vpop.xlane.xlu0 %830
        %v832 = vsel %vm695, %v790, 0.0
        %833 = vadd.xlane.f32.xlu0 %v832
        %v834 = vpop.xlane.xlu0 %833
        %v835 = vsel %vm695, %v791, 0.0
        %836 = vadd.xlane.f32.xlu0 %v835
        %v837 = vpop.xlane.xlu0 %836
        %v838 = vsel %vm695, %v792, 0.0
        %839 = vadd.xlane.f32.xlu0 %v838
        %v840 = vpop.xlane.xlu0 %839
        %841 = vst.msk [vmem:[%s299] sm:$0xff] %vm760, %v795
        %842 = vst.msk [vmem:[%s299 + $0x8] sm:$0xff] %vm760, %v798
        %843 = vst.msk [vmem:[%s299 + $0x10] sm:$0xff] %vm760, %v801
        %844 = vst.msk [vmem:[%s299 + $0x18] sm:$0xff] %vm760, %v804
        %845 = vst.msk [vmem:[%s299 + $0x20] sm:$0xff] %vm760, %v807
        %846 = vst.msk [vmem:[%s299 + $0x28] sm:$0xff] %vm760, %v810
        %847 = vst.msk [vmem:[%s299 + $0x30] sm:$0xff] %vm760, %v813
        %848 = vst.msk [vmem:[%s299 + $0x38] sm:$0xff] %vm760, %v816
        %849 = vst.msk [vmem:[%s299 + $0x40] sm:$0xff] %vm760, %v819
        %850 = vst.msk [vmem:[%s299 + $0x48] sm:$0xff] %vm760, %v822
        %851 = vst.msk [vmem:[%s299 + $0x50] sm:$0xff] %vm760, %v825
        %852 = vst.msk [vmem:[%s299 + $0x58] sm:$0xff] %vm760, %v828
        %853 = vst.msk [vmem:[%s299 + $0x60] sm:$0xff] %vm760, %v831
        %854 = vst.msk [vmem:[%s299 + $0x68] sm:$0xff] %vm760, %v834
        %855 = vst.msk [vmem:[%s299 + $0x70] sm:$0xff] %vm760, %v837
        %856 = vst.msk [vmem:[%s299 + $0x78] sm:$0xff] %vm760, %v840
        %v857 = vld [vmem:[#allocation2] sm:$0xff]
        %v858 = vpack.c.bf16 %v857, %v857
        %s859 = scalar_lea.vmem %s2, 64
        %v860 = vld [vmem:[%s859] sm:$0xf]
        %v861 = vld [vmem:[%s859 + $0x4] sm:$0xf]
        %v862 = vld [vmem:[%s859 + $0x8] sm:$0xf]
        %v863 = vld [vmem:[%s859 + $0xc] sm:$0xf]
        %v864 = vld [vmem:[%s859 + $0x10] sm:$0xf]
        %v865 = vld [vmem:[%s859 + $0x14] sm:$0xf]
        %v866 = vld [vmem:[%s859 + $0x18] sm:$0xf]
        %v867 = vld [vmem:[%s859 + $0x1c] sm:$0xf]
        %v868 = vld [vmem:[%s859 + $0x20] sm:$0xf]
        %v869 = vld [vmem:[%s859 + $0x24] sm:$0xf]
        %v870 = vld [vmem:[%s859 + $0x28] sm:$0xf]
        %v871 = vld [vmem:[%s859 + $0x2c] sm:$0xf]
        %v872 = vld [vmem:[%s859 + $0x30] sm:$0xf]
        %v873 = vld [vmem:[%s859 + $0x34] sm:$0xf]
        %v874 = vld [vmem:[%s859 + $0x38] sm:$0xf]
        %v875 = vld [vmem:[%s859 + $0x3c] sm:$0xf]
        %v892 = vunpack.c.l.b16 %v860
        %v893 = vunpack.c.l.b16 %v861
        %v894 = vunpack.c.l.b16 %v862
        %v895 = vunpack.c.l.b16 %v863
        %v896 = vunpack.c.l.b16 %v864
        %v897 = vunpack.c.l.b16 %v865
        %v898 = vunpack.c.l.b16 %v866
        %v899 = vunpack.c.l.b16 %v867
        %v900 = vunpack.c.l.b16 %v868
        %v901 = vunpack.c.l.b16 %v869
        %v902 = vunpack.c.l.b16 %v870
        %v903 = vunpack.c.l.b16 %v871
        %v904 = vunpack.c.l.b16 %v872
        %v905 = vunpack.c.l.b16 %v873
        %v906 = vunpack.c.l.b16 %v874
        %v907 = vunpack.c.l.b16 %v875
        %v908 = vpack.c.b16 %v893, %v892
        %v909 = vpack.c.b16 %v895, %v894
        %v910 = vpack.c.b16 %v897, %v896
        %v911 = vpack.c.b16 %v899, %v898
        %v912 = vpack.c.b16 %v901, %v900
        %v913 = vpack.c.b16 %v903, %v902
        %v914 = vpack.c.b16 %v905, %v904
        %v915 = vpack.c.b16 %v907, %v906
        %917 = vrot.lane.b32.xlu0 %v858, 80
        %v918 = vpop.permute.xlu0 %917
        %v920 = vsel %vm569, %v908, 0
        %v923 = vsel %vm569, %v909, 0
        %v926 = vsel %vm569, %v910, 0
        %v929 = vsel %vm569, %v911, 0
        %v932 = vsel %vm569, %v912, 0
        %v935 = vsel %vm569, %v913, 0
        %v938 = vsel %vm569, %v914, 0
        %v941 = vsel %vm569, %v915, 0
        %v944 = vsel %vm594, %v918, 0
        %946 = vmatprep.subr.bf16.mxu0 0
        %947 = vmatpush1.bf16.msra.mxu0 %v944
        %948 = vmatprep.subr.bf16.mxu0 0
        %949 = vmatpush1.bf16.msra.mxu0 0
        %950 = vmatprep.subr.bf16.mxu0 0
        %951 = vmatpush1.bf16.msra.mxu0 0
        %952 = vmatprep.subr.bf16.mxu0 0
        %953 = vmatpush1.bf16.msra.mxu0 0
        %954 = vmatprep.subr.bf16.mxu0 0
        %955 = vmatpush1.bf16.msra.mxu0 0
        %956 = vmatprep.subr.bf16.mxu0 0
        %957 = vmatpush1.bf16.msra.mxu0 0
        %958 = vmatprep.subr.bf16.mxu0 0
        %959 = vmatpush1.bf16.msra.mxu0 0
        %960 = vmatprep.subr.bf16.mxu0 0
        %961 = vmatpush1.bf16.msra.mxu0 0
        %962 = vmatprep.subr.bf16.mxu0 0
        %963 = vmatpush1.bf16.msra.mxu0 0
        %964 = vmatprep.subr.bf16.mxu0 0
        %965 = vmatpush1.bf16.msra.mxu0 0
        %966 = vmatprep.subr.bf16.mxu0 0
        %967 = vmatpush1.bf16.msra.mxu0 0
        %968 = vmatprep.subr.bf16.mxu0 0
        %969 = vmatpush1.bf16.msra.mxu0 0
        %970 = vmatprep.subr.bf16.mxu0 0
        %971 = vmatpush1.bf16.msra.mxu0 0
        %972 = vmatprep.subr.bf16.mxu0 0
        %973 = vmatpush1.bf16.msra.mxu0 0
        %974 = vmatprep.subr.bf16.mxu0 0
        %975 = vmatpush1.bf16.msra.mxu0 0
        %976 = vmatprep.subr.bf16.mxu0 0
        %977 = vmatpush1.bf16.msra.mxu0 0
        %978 = vmatprep.mubr.bf16.mxu0 0
        %979 = vmatmul.mubr.bf16.gmra.mrb[0].mxu0 %v920
        %v980 = vpop.f32.mrb[0].mxu0
        %v981 = vadd.f32 0.0, %v980
        %v982 = vpop.f32.mrb[0].mxu0
        %v983 = vpop.f32.mrb[0].mxu0
        %v984 = vadd.f32 0.0, %v983
        %v985 = vpop.f32.mrb[0].mxu0
        %986 = vmatprep.mubr.bf16.mxu0 0
        %987 = vmatmul.mubr.bf16.gmra.mrb[0].mxu0 %v923
        %v988 = vpop.f32.mrb[0].mxu0
        %v989 = vadd.f32 0.0, %v988
        %v990 = vpop.f32.mrb[0].mxu0
        %v991 = vpop.f32.mrb[0].mxu0
        %v992 = vadd.f32 0.0, %v991
        %v993 = vpop.f32.mrb[0].mxu0
        %994 = vmatprep.mubr.bf16.mxu0 0
        %995 = vmatmul.mubr.bf16.gmra.mrb[0].mxu0 %v926
        %v996 = vpop.f32.mrb[0].mxu0
        %v997 = vadd.f32 0.0, %v996
        %v998 = vpop.f32.mrb[0].mxu0
        %v999 = vpop.f32.mrb[0].mxu0
        %v1000 = vadd.f32 0.0, %v999
        %v1001 = vpop.f32.mrb[0].mxu0
        %1002 = vmatprep.mubr.bf16.mxu0 0
        %1003 = vmatmul.mubr.bf16.gmra.mrb[0].mxu0 %v929
        %v1004 = vpop.f32.mrb[0].mxu0
        %v1005 = vadd.f32 0.0, %v1004
        %v1006 = vpop.f32.mrb[0].mxu0
        %v1007 = vpop.f32.mrb[0].mxu0
        %v1008 = vadd.f32 0.0, %v1007
        %v1009 = vpop.f32.mrb[0].mxu0
        %1010 = vmatprep.mubr.bf16.mxu0 0
        %1011 = vmatmul.mubr.bf16.gmra.mrb[0].mxu0 %v932
        %v1012 = vpop.f32.mrb[0].mxu0
        %v1013 = vadd.f32 0.0, %v1012
        %v1014 = vpop.f32.mrb[0].mxu0
        %v1015 = vpop.f32.mrb[0].mxu0
        %v1016 = vadd.f32 0.0, %v1015
        %v1017 = vpop.f32.mrb[0].mxu0
        %1018 = vmatprep.mubr.bf16.mxu0 0
        %1019 = vmatmul.mubr.bf16.gmra.mrb[0].mxu0 %v935
        %v1020 = vpop.f32.mrb[0].mxu0
        %v1021 = vadd.f32 0.0, %v1020
        %v1022 = vpop.f32.mrb[0].mxu0
        %v1023 = vpop.f32.mrb[0].mxu0
        %v1024 = vadd.f32 0.0, %v1023
        %v1025 = vpop.f32.mrb[0].mxu0
        %1026 = vmatprep.mubr.bf16.mxu0 0
        %1027 = vmatmul.mubr.bf16.gmra.mrb[0].mxu0 %v938
        %v1028 = vpop.f32.mrb[0].mxu0
        %v1029 = vadd.f32 0.0, %v1028
        %v1030 = vpop.f32.mrb[0].mxu0
        %v1031 = vpop.f32.mrb[0].mxu0
        %v1032 = vadd.f32 0.0, %v1031
        %v1033 = vpop.f32.mrb[0].mxu0
        %1034 = vmatprep.mubr.bf16.mxu0 0
        %1035 = vmatmul.mubr.bf16.gmra.mrb[0].mxu0 %v941
        %v1036 = vpop.f32.mrb[0].mxu0
        %v1037 = vadd.f32 0.0, %v1036
        %v1038 = vpop.f32.mrb[0].mxu0
        %v1039 = vpop.f32.mrb[0].mxu0
        %v1040 = vadd.f32 0.0, %v1039
        %v1041 = vpop.f32.mrb[0].mxu0
        %1042 = vdwg.mxu0
        %s1043 = scalar_lea.vmem %s289, 128
        %1044 = vst.msk [vmem:[%s1043] sm:$0xff] %vm695, %v981
        %1045 = vst.msk [vmem:[%s1043 + $0x8] sm:$0xff] %vm695, %v984
        %1046 = vst.msk [vmem:[%s1043 + $0x10] sm:$0xff] %vm695, %v989
        %1047 = vst.msk [vmem:[%s1043 + $0x18] sm:$0xff] %vm695, %v992
        %1048 = vst.msk [vmem:[%s1043 + $0x20] sm:$0xff] %vm695, %v997
        %1049 = vst.msk [vmem:[%s1043 + $0x28] sm:$0xff] %vm695, %v1000
        %1050 = vst.msk [vmem:[%s1043 + $0x30] sm:$0xff] %vm695, %v1005
        %1051 = vst.msk [vmem:[%s1043 + $0x38] sm:$0xff] %vm695, %v1008
        %1052 = vst.msk [vmem:[%s1043 + $0x40] sm:$0xff] %vm695, %v1013
        %1053 = vst.msk [vmem:[%s1043 + $0x48] sm:$0xff] %vm695, %v1016
        %1054 = vst.msk [vmem:[%s1043 + $0x50] sm:$0xff] %vm695, %v1021
        %1055 = vst.msk [vmem:[%s1043 + $0x58] sm:$0xff] %vm695, %v1024
        %1056 = vst.msk [vmem:[%s1043 + $0x60] sm:$0xff] %vm695, %v1029
        %1057 = vst.msk [vmem:[%s1043 + $0x68] sm:$0xff] %vm695, %v1032
        %1058 = vst.msk [vmem:[%s1043 + $0x70] sm:$0xff] %vm695, %v1037
        %1059 = vst.msk [vmem:[%s1043 + $0x78] sm:$0xff] %vm695, %v1040
        %v1060 = vsel %vm695, %v981, 0.0
        %1061 = vadd.xlane.f32.xlu0 %v1060
        %v1062 = vpop.xlane.xlu0 %1061
        %v1063 = vsel %vm695, %v984, 0.0
        %1064 = vadd.xlane.f32.xlu0 %v1063
        %v1065 = vpop.xlane.xlu0 %1064
        %v1066 = vsel %vm695, %v989, 0.0
        %1067 = vadd.xlane.f32.xlu0 %v1066
        %v1068 = vpop.xlane.xlu0 %1067
        %v1069 = vsel %vm695, %v992, 0.0
        %1070 = vadd.xlane.f32.xlu0 %v1069
        %v1071 = vpop.xlane.xlu0 %1070
        %v1072 = vsel %vm695, %v997, 0.0
        %1073 = vadd.xlane.f32.xlu0 %v1072
        %v1074 = vpop.xlane.xlu0 %1073
        %v1075 = vsel %vm695, %v1000, 0.0
        %1076 = vadd.xlane.f32.xlu0 %v1075
        %v1077 = vpop.xlane.xlu0 %1076
        %v1078 = vsel %vm695, %v1005, 0.0
        %1079 = vadd.xlane.f32.xlu0 %v1078
        %v1080 = vpop.xlane.xlu0 %1079
        %v1081 = vsel %vm695, %v1008, 0.0
        %1082 = vadd.xlane.f32.xlu0 %v1081
        %v1083 = vpop.xlane.xlu0 %1082
        %v1084 = vsel %vm695, %v1013, 0.0
        %1085 = vadd.xlane.f32.xlu0 %v1084
        %v1086 = vpop.xlane.xlu0 %1085
        %v1087 = vsel %vm695, %v1016, 0.0
        %1088 = vadd.xlane.f32.xlu0 %v1087
        %v1089 = vpop.xlane.xlu0 %1088
        %v1090 = vsel %vm695, %v1021, 0.0
        %1091 = vadd.xlane.f32.xlu0 %v1090
        %v1092 = vpop.xlane.xlu0 %1091
        %v1093 = vsel %vm695, %v1024, 0.0
        %1094 = vadd.xlane.f32.xlu0 %v1093
        %v1095 = vpop.xlane.xlu0 %1094
        %v1096 = vsel %vm695, %v1029, 0.0
        %1097 = vadd.xlane.f32.xlu0 %v1096
        %v1098 = vpop.xlane.xlu0 %1097
        %v1099 = vsel %vm695, %v1032, 0.0
        %1100 = vadd.xlane.f32.xlu0 %v1099
        %v1101 = vpop.xlane.xlu0 %1100
        %v1102 = vsel %vm695, %v1037, 0.0
        %1103 = vadd.xlane.f32.xlu0 %v1102
        %v1104 = vpop.xlane.xlu0 %1103
        %v1105 = vsel %vm695, %v1040, 0.0
        %1106 = vadd.xlane.f32.xlu0 %v1105
        %v1107 = vpop.xlane.xlu0 %1106
        %s1108 = scalar_lea.vmem %s294, 128
        %1109 = vst.msk [vmem:[%s1108] sm:$0xff] %vm760, %v1062
        %1110 = vst.msk [vmem:[%s1108 + $0x8] sm:$0xff] %vm760, %v1065
        %1111 = vst.msk [vmem:[%s1108 + $0x10] sm:$0xff] %vm760, %v1068
        %1112 = vst.msk [vmem:[%s1108 + $0x18] sm:$0xff] %vm760, %v1071
        %1113 = vst.msk [vmem:[%s1108 + $0x20] sm:$0xff] %vm760, %v1074
        %1114 = vst.msk [vmem:[%s1108 + $0x28] sm:$0xff] %vm760, %v1077
        %1115 = vst.msk [vmem:[%s1108 + $0x30] sm:$0xff] %vm760, %v1080
        %1116 = vst.msk [vmem:[%s1108 + $0x38] sm:$0xff] %vm760, %v1083
        %1117 = vst.msk [vmem:[%s1108 + $0x40] sm:$0xff] %vm760, %v1086
        %1118 = vst.msk [vmem:[%s1108 + $0x48] sm:$0xff] %vm760, %v1089
        %1119 = vst.msk [vmem:[%s1108 + $0x50] sm:$0xff] %vm760, %v1092
        %1120 = vst.msk [vmem:[%s1108 + $0x58] sm:$0xff] %vm760, %v1095
        %1121 = vst.msk [vmem:[%s1108 + $0x60] sm:$0xff] %vm760, %v1098
        %1122 = vst.msk [vmem:[%s1108 + $0x68] sm:$0xff] %vm760, %v1101
        %1123 = vst.msk [vmem:[%s1108 + $0x70] sm:$0xff] %vm760, %v1104
        %1124 = vst.msk [vmem:[%s1108 + $0x78] sm:$0xff] %vm760, %v1107
        %v1125 = vmul.f32 %v981, %v981
        %v1126 = vmul.f32 %v984, %v984
        %v1127 = vmul.f32 %v989, %v989
        %v1128 = vmul.f32 %v992, %v992
        %v1129 = vmul.f32 %v997, %v997
        %v1130 = vmul.f32 %v1000, %v1000
        %v1131 = vmul.f32 %v1005, %v1005
        %v1132 = vmul.f32 %v1008, %v1008
        %v1133 = vmul.f32 %v1013, %v1013
        %v1134 = vmul.f32 %v1016, %v1016
        %v1135 = vmul.f32 %v1021, %v1021
        %v1136 = vmul.f32 %v1024, %v1024
        %v1137 = vmul.f32 %v1029, %v1029
        %v1138 = vmul.f32 %v1032, %v1032
        %v1139 = vmul.f32 %v1037, %v1037
        %v1140 = vmul.f32 %v1040, %v1040
        %v1141 = vsel %vm695, %v1125, 0.0
        %1142 = vadd.xlane.f32.xlu0 %v1141
        %v1143 = vpop.xlane.xlu0 %1142
        %v1144 = vsel %vm695, %v1126, 0.0
        %1145 = vadd.xlane.f32.xlu0 %v1144
        %v1146 = vpop.xlane.xlu0 %1145
        %v1147 = vsel %vm695, %v1127, 0.0
        %1148 = vadd.xlane.f32.xlu0 %v1147
        %v1149 = vpop.xlane.xlu0 %1148
        %v1150 = vsel %vm695, %v1128, 0.0
        %1151 = vadd.xlane.f32.xlu0 %v1150
        %v1152 = vpop.xlane.xlu0 %1151
        %v1153 = vsel %vm695, %v1129, 0.0
        %1154 = vadd.xlane.f32.xlu0 %v1153
        %v1155 = vpop.xlane.xlu0 %1154
        %v1156 = vsel %vm695, %v1130, 0.0
        %1157 = vadd.xlane.f32.xlu0 %v1156
        %v1158 = vpop.xlane.xlu0 %1157
        %v1159 = vsel %vm695, %v1131, 0.0
        %1160 = vadd.xlane.f32.xlu0 %v1159
        %v1161 = vpop.xlane.xlu0 %1160
        %v1162 = vsel %vm695, %v1132, 0.0
        %1163 = vadd.xlane.f32.xlu0 %v1162
        %v1164 = vpop.xlane.xlu0 %1163
        %v1165 = vsel %vm695, %v1133, 0.0
        %1166 = vadd.xlane.f32.xlu0 %v1165
        %v1167 = vpop.xlane.xlu0 %1166
        %v1168 = vsel %vm695, %v1134, 0.0
        %1169 = vadd.xlane.f32.xlu0 %v1168
        %v1170 = vpop.xlane.xlu0 %1169
        %v1171 = vsel %vm695, %v1135, 0.0
        %1172 = vadd.xlane.f32.xlu0 %v1171
        %v1173 = vpop.xlane.xlu0 %1172
        %v1174 = vsel %vm695, %v1136, 0.0
        %1175 = vadd.xlane.f32.xlu0 %v1174
        %v1176 = vpop.xlane.xlu0 %1175
        %v1177 = vsel %vm695, %v1137, 0.0
        %1178 = vadd.xlane.f32.xlu0 %v1177
        %v1179 = vpop.xlane.xlu0 %1178
        %v1180 = vsel %vm695, %v1138, 0.0
        %1181 = vadd.xlane.f32.xlu0 %v1180
        %v1182 = vpop.xlane.xlu0 %1181
        %v1183 = vsel %vm695, %v1139, 0.0
        %1184 = vadd.xlane.f32.xlu0 %v1183
        %v1185 = vpop.xlane.xlu0 %1184
        %v1186 = vsel %vm695, %v1140, 0.0
        %1187 = vadd.xlane.f32.xlu0 %v1186
        %v1188 = vpop.xlane.xlu0 %1187
        %s1189 = scalar_lea.vmem %s299, 128
        %1190 = vst.msk [vmem:[%s1189] sm:$0xff] %vm760, %v1143
        %1191 = vst.msk [vmem:[%s1189 + $0x8] sm:$0xff] %vm760, %v1146
        %1192 = vst.msk [vmem:[%s1189 + $0x10] sm:$0xff] %vm760, %v1149
        %1193 = vst.msk [vmem:[%s1189 + $0x18] sm:$0xff] %vm760, %v1152
        %1194 = vst.msk [vmem:[%s1189 + $0x20] sm:$0xff] %vm760, %v1155
        %1195 = vst.msk [vmem:[%s1189 + $0x28] sm:$0xff] %vm760, %v1158
        %1196 = vst.msk [vmem:[%s1189 + $0x30] sm:$0xff] %vm760, %v1161
        %1197 = vst.msk [vmem:[%s1189 + $0x38] sm:$0xff] %vm760, %v1164
        %1198 = vst.msk [vmem:[%s1189 + $0x40] sm:$0xff] %vm760, %v1167
        %1199 = vst.msk [vmem:[%s1189 + $0x48] sm:$0xff] %vm760, %v1170
        %1200 = vst.msk [vmem:[%s1189 + $0x50] sm:$0xff] %vm760, %v1173
        %1201 = vst.msk [vmem:[%s1189 + $0x58] sm:$0xff] %vm760, %v1176
        %1202 = vst.msk [vmem:[%s1189 + $0x60] sm:$0xff] %vm760, %v1179
        %1203 = vst.msk [vmem:[%s1189 + $0x68] sm:$0xff] %vm760, %v1182
        %1204 = vst.msk [vmem:[%s1189 + $0x70] sm:$0xff] %vm760, %v1185
        %1205 = vst.msk [vmem:[%s1189 + $0x78] sm:$0xff] %vm760, %v1188
        %v1206 = vld [vmem:[#allocation2] sm:$0xff]
        %v1207 = vld [vmem:[#allocation2 + $0x8] sm:$0xff]
        %v1208 = vpack.c.bf16 %v1206, %v1206
        %v1209 = vpack.c.bf16 %v1207, %v1207
        %s1210 = scalar_lea.vmem %s2, 128
        %v1211 = vld [vmem:[%s1210] sm:$0xf]
        %v1212 = vld [vmem:[%s1210 + $0x4] sm:$0xf]
        %v1213 = vld [vmem:[%s1210 + $0x8] sm:$0xf]
        %v1214 = vld [vmem:[%s1210 + $0xc] sm:$0xf]
        %v1215 = vld [vmem:[%s1210 + $0x10] sm:$0xf]
        %v1216 = vld [vmem:[%s1210 + $0x14] sm:$0xf]
        %v1217 = vld [vmem:[%s1210 + $0x18] sm:$0xf]
        %v1218 = vld [vmem:[%s1210 + $0x1c] sm:$0xf]
        %v1219 = vld [vmem:[%s1210 + $0x20] sm:$0xf]
        %v1220 = vld [vmem:[%s1210 + $0x24] sm:$0xf]
        %v1221 = vld [vmem:[%s1210 + $0x28] sm:$0xf]
        %v1222 = vld [vmem:[%s1210 + $0x2c] sm:$0xf]
        %v1223 = vld [vmem:[%s1210 + $0x30] sm:$0xf]
        %v1224 = vld [vmem:[%s1210 + $0x34] sm:$0xf]
        %v1225 = vld [vmem:[%s1210 + $0x38] sm:$0xf]
        %v1226 = vld [vmem:[%s1210 + $0x3c] sm:$0xf]
        %v1243 = vunpack.c.l.b16 %v1211
        %v1244 = vunpack.c.l.b16 %v1212
        %v1245 = vunpack.c.l.b16 %v1213
        %v1246 = vunpack.c.l.b16 %v1214
        %v1247 = vunpack.c.l.b16 %v1215
        %v1248 = vunpack.c.l.b16 %v1216
        %v1249 = vunpack.c.l.b16 %v1217
        %v1250 = vunpack.c.l.b16 %v1218
        %v1251 = vunpack.c.l.b16 %v1219
        %v1252 = vunpack.c.l.b16 %v1220
        %v1253 = vunpack.c.l.b16 %v1221
        %v1254 = vunpack.c.l.b16 %v1222
        %v1255 = vunpack.c.l.b16 %v1223
        %v1256 = vunpack.c.l.b16 %v1224
        %v1257 = vunpack.c.l.b16 %v1225
        %v1258 = vunpack.c.l.b16 %v1226
        %v1259 = vpack.c.b16 %v1244, %v1243
        %v1260 = vpack.c.b16 %v1246, %v1245
        %v1261 = vpack.c.b16 %v1248, %v1247
        %v1262 = vpack.c.b16 %v1250, %v1249
        %v1263 = vpack.c.b16 %v1252, %v1251
        %v1264 = vpack.c.b16 %v1254, %v1253
        %v1265 = vpack.c.b16 %v1256, %v1255
        %v1266 = vpack.c.b16 %v1258, %v1257
        %1269 = vrot.lane.b32.xlu0 %v1208, 32
        %v1270 = vpop.permute.xlu0 %1269
        %1271 = vrot.lane.b32.xlu0 %v1209, 32
        %v1272 = vpop.permute.xlu0 %1271
        %vm1273 = vcmask 261120
        %v1274 = vsel %vm1273, %v1270, %v1272
        %v1276 = vsel %vm569, %v1259, 0
        %v1279 = vsel %vm569, %v1260, 0
        %v1282 = vsel %vm569, %v1261, 0
        %v1285 = vsel %vm569, %v1262, 0
        %v1288 = vsel %vm569, %v1263, 0
        %v1291 = vsel %vm569, %v1264, 0
        %v1294 = vsel %vm569, %v1265, 0
        %v1297 = vsel %vm569, %v1266, 0
        %v1300 = vsel %vm594, %v1274, 0
        %1302 = vmatprep.subr.bf16.mxu0 0
        %1303 = vmatpush1.bf16.msra.mxu0 %v1300
        %1304 = vmatprep.subr.bf16.mxu0 0
        %1305 = vmatpush1.bf16.msra.mxu0 0
        %1306 = vmatprep.subr.bf16.mxu0 0
        %1307 = vmatpush1.bf16.msra.mxu0 0
        %1308 = vmatprep.subr.bf16.mxu0 0
        %1309 = vmatpush1.bf16.msra.mxu0 0
        %1310 = vmatprep.subr.bf16.mxu0 0
        %1311 = vmatpush1.bf16.msra.mxu0 0
        %1312 = vmatprep.subr.bf16.mxu0 0
        %1313 = vmatpush1.bf16.msra.mxu0 0
        %1314 = vmatprep.subr.bf16.mxu0 0
        %1315 = vmatpush1.bf16.msra.mxu0 0
        %1316 = vmatprep.subr.bf16.mxu0 0
        %1317 = vmatpush1.bf16.msra.mxu0 0
        %1318 = vmatprep.subr.bf16.mxu0 0
        %1319 = vmatpush1.bf16.msra.mxu0 0
        %1320 = vmatprep.subr.bf16.mxu0 0
        %1321 = vmatpush1.bf16.msra.mxu0 0
        %1322 = vmatprep.subr.bf16.mxu0 0
        %1323 = vmatpush1.bf16.msra.mxu0 0
        %1324 = vmatprep.subr.bf16.mxu0 0
        %1325 = vmatpush1.bf16.msra.mxu0 0
        %1326 = vmatprep.subr.bf16.mxu0 0
        %1327 = vmatpush1.bf16.msra.mxu0 0
        %1328 = vmatprep.subr.bf16.mxu0 0
        %1329 = vmatpush1.bf16.msra.mxu0 0
        %1330 = vmatprep.subr.bf16.mxu0 0
        %1331 = vmatpush1.bf16.msra.mxu0 0
        %1332 = vmatprep.subr.bf16.mxu0 0
        %1333 = vmatpush1.bf16.msra.mxu0 0
        %1334 = vmatprep.mubr.bf16.mxu0 0
        %1335 = vmatmul.mubr.bf16.gmra.mrb[0].mxu0 %v1276
        %v1336 = vpop.f32.mrb[0].mxu0
        %v1337 = vadd.f32 0.0, %v1336
        %v1338 = vpop.f32.mrb[0].mxu0
        %v1339 = vpop.f32.mrb[0].mxu0
        %v1340 = vadd.f32 0.0, %v1339
        %v1341 = vpop.f32.mrb[0].mxu0
        %1342 = vmatprep.mubr.bf16.mxu0 0
        %1343 = vmatmul.mubr.bf16.gmra.mrb[0].mxu0 %v1279
        %v1344 = vpop.f32.mrb[0].mxu0
        %v1345 = vadd.f32 0.0, %v1344
        %v1346 = vpop.f32.mrb[0].mxu0
        %v1347 = vpop.f32.mrb[0].mxu0
        %v1348 = vadd.f32 0.0, %v1347
        %v1349 = vpop.f32.mrb[0].mxu0
        %1350 = vmatprep.mubr.bf16.mxu0 0
        %1351 = vmatmul.mubr.bf16.gmra.mrb[0].mxu0 %v1282
        %v1352 = vpop.f32.mrb[0].mxu0
        %v1353 = vadd.f32 0.0, %v1352
        %v1354 = vpop.f32.mrb[0].mxu0
        %v1355 = vpop.f32.mrb[0].mxu0
        %v1356 = vadd.f32 0.0, %v1355
        %v1357 = vpop.f32.mrb[0].mxu0
        %1358 = vmatprep.mubr.bf16.mxu0 0
        %1359 = vmatmul.mubr.bf16.gmra.mrb[0].mxu0 %v1285
        %v1360 = vpop.f32.mrb[0].mxu0
        %v1361 = vadd.f32 0.0, %v1360
        %v1362 = vpop.f32.mrb[0].mxu0
        %v1363 = vpop.f32.mrb[0].mxu0
        %v1364 = vadd.f32 0.0, %v1363
        %v1365 = vpop.f32.mrb[0].mxu0
        %1366 = vmatprep.mubr.bf16.mxu0 0
        %1367 = vmatmul.mubr.bf16.gmra.mrb[0].mxu0 %v1288
        %v1368 = vpop.f32.mrb[0].mxu0
        %v1369 = vadd.f32 0.0, %v1368
        %v1370 = vpop.f32.mrb[0].mxu0
        %v1371 = vpop.f32.mrb[0].mxu0
        %v1372 = vadd.f32 0.0, %v1371
        %v1373 = vpop.f32.mrb[0].mxu0
        %1374 = vmatprep.mubr.bf16.mxu0 0
        %1375 = vmatmul.mubr.bf16.gmra.mrb[0].mxu0 %v1291
        %v1376 = vpop.f32.mrb[0].mxu0
        %v1377 = vadd.f32 0.0, %v1376
        %v1378 = vpop.f32.mrb[0].mxu0
        %v1379 = vpop.f32.mrb[0].mxu0
        %v1380 = vadd.f32 0.0, %v1379
        %v1381 = vpop.f32.mrb[0].mxu0
        %1382 = vmatprep.mubr.bf16.mxu0 0
        %1383 = vmatmul.mubr.bf16.gmra.mrb[0].mxu0 %v1294
        %v1384 = vpop.f32.mrb[0].mxu0
        %v1385 = vadd.f32 0.0, %v1384
        %v1386 = vpop.f32.mrb[0].mxu0
        %v1387 = vpop.f32.mrb[0].mxu0
        %v1388 = vadd.f32 0.0, %v1387
        %v1389 = vpop.f32.mrb[0].mxu0
        %1390 = vmatprep.mubr.bf16.mxu0 0
        %1391 = vmatmul.mubr.bf16.gmra.mrb[0].mxu0 %v1297
        %v1392 = vpop.f32.mrb[0].mxu0
        %v1393 = vadd.f32 0.0, %v1392
        %v1394 = vpop.f32.mrb[0].mxu0
        %v1395 = vpop.f32.mrb[0].mxu0
        %v1396 = vadd.f32 0.0, %v1395
        %v1397 = vpop.f32.mrb[0].mxu0
        %1398 = vdwg.mxu0
        %s1399 = scalar_lea.vmem %s289, 256
        %1400 = vst.msk [vmem:[%s1399] sm:$0xff] %vm695, %v1337
        %1401 = vst.msk [vmem:[%s1399 + $0x8] sm:$0xff] %vm695, %v1340
        %1402 = vst.msk [vmem:[%s1399 + $0x10] sm:$0xff] %vm695, %v1345
        %1403 = vst.msk [vmem:[%s1399 + $0x18] sm:$0xff] %vm695, %v1348
        %1404 = vst.msk [vmem:[%s1399 + $0x20] sm:$0xff] %vm695, %v1353
        %1405 = vst.msk [vmem:[%s1399 + $0x28] sm:$0xff] %vm695, %v1356
        %1406 = vst.msk [vmem:[%s1399 + $0x30] sm:$0xff] %vm695, %v1361
        %1407 = vst.msk [vmem:[%s1399 + $0x38] sm:$0xff] %vm695, %v1364
        %1408 = vst.msk [vmem:[%s1399 + $0x40] sm:$0xff] %vm695, %v1369
        %1409 = vst.msk [vmem:[%s1399 + $0x48] sm:$0xff] %vm695, %v1372
        %1410 = vst.msk [vmem:[%s1399 + $0x50] sm:$0xff] %vm695, %v1377
        %1411 = vst.msk [vmem:[%s1399 + $0x58] sm:$0xff] %vm695, %v1380
        %1412 = vst.msk [vmem:[%s1399 + $0x60] sm:$0xff] %vm695, %v1385
        %1413 = vst.msk [vmem:[%s1399 + $0x68] sm:$0xff] %vm695, %v1388
        %1414 = vst.msk [vmem:[%s1399 + $0x70] sm:$0xff] %vm695, %v1393
        %1415 = vst.msk [vmem:[%s1399 + $0x78] sm:$0xff] %vm695, %v1396
        %v1416 = vsel %vm695, %v1337, 0.0
        %1417 = vadd.xlane.f32.xlu0 %v1416
        %v1418 = vpop.xlane.xlu0 %1417
        %v1419 = vsel %vm695, %v1340, 0.0
        %1420 = vadd.xlane.f32.xlu0 %v1419
        %v1421 = vpop.xlane.xlu0 %1420
        %v1422 = vsel %vm695, %v1345, 0.0
        %1423 = vadd.xlane.f32.xlu0 %v1422
        %v1424 = vpop.xlane.xlu0 %1423
        %v1425 = vsel %vm695, %v1348, 0.0
        %1426 = vadd.xlane.f32.xlu0 %v1425
        %v1427 = vpop.xlane.xlu0 %1426
        %v1428 = vsel %vm695, %v1353, 0.0
        %1429 = vadd.xlane.f32.xlu0 %v1428
        %v1430 = vpop.xlane.xlu0 %1429
        %v1431 = vsel %vm695, %v1356, 0.0
        %1432 = vadd.xlane.f32.xlu0 %v1431
        %v1433 = vpop.xlane.xlu0 %1432
        %v1434 = vsel %vm695, %v1361, 0.0
        %1435 = vadd.xlane.f32.xlu0 %v1434
        %v1436 = vpop.xlane.xlu0 %1435
        %v1437 = vsel %vm695, %v1364, 0.0
        %1438 = vadd.xlane.f32.xlu0 %v1437
        %v1439 = vpop.xlane.xlu0 %1438
        %v1440 = vsel %vm695, %v1369, 0.0
        %1441 = vadd.xlane.f32.xlu0 %v1440
        %v1442 = vpop.xlane.xlu0 %1441
        %v1443 = vsel %vm695, %v1372, 0.0
        %1444 = vadd.xlane.f32.xlu0 %v1443
        %v1445 = vpop.xlane.xlu0 %1444
        %v1446 = vsel %vm695, %v1377, 0.0
        %1447 = vadd.xlane.f32.xlu0 %v1446
        %v1448 = vpop.xlane.xlu0 %1447
        %v1449 = vsel %vm695, %v1380, 0.0
        %1450 = vadd.xlane.f32.xlu0 %v1449
        %v1451 = vpop.xlane.xlu0 %1450
        %v1452 = vsel %vm695, %v1385, 0.0
        %1453 = vadd.xlane.f32.xlu0 %v1452
        %v1454 = vpop.xlane.xlu0 %1453
        %v1455 = vsel %vm695, %v1388, 0.0
        %1456 = vadd.xlane.f32.xlu0 %v1455
        %v1457 = vpop.xlane.xlu0 %1456
        %v1458 = vsel %vm695, %v1393, 0.0
        %1459 = vadd.xlane.f32.xlu0 %v1458
        %v1460 = vpop.xlane.xlu0 %1459
        %v1461 = vsel %vm695, %v1396, 0.0
        %1462 = vadd.xlane.f32.xlu0 %v1461
        %v1463 = vpop.xlane.xlu0 %1462
        %s1464 = scalar_lea.vmem %s294, 256
        %1465 = vst.msk [vmem:[%s1464] sm:$0xff] %vm760, %v1418
        %1466 = vst.msk [vmem:[%s1464 + $0x8] sm:$0xff] %vm760, %v1421
        %1467 = vst.msk [vmem:[%s1464 + $0x10] sm:$0xff] %vm760, %v1424
        %1468 = vst.msk [vmem:[%s1464 + $0x18] sm:$0xff] %vm760, %v1427
        %1469 = vst.msk [vmem:[%s1464 + $0x20] sm:$0xff] %vm760, %v1430
        %1470 = vst.msk [vmem:[%s1464 + $0x28] sm:$0xff] %vm760, %v1433
        %1471 = vst.msk [vmem:[%s1464 + $0x30] sm:$0xff] %vm760, %v1436
        %1472 = vst.msk [vmem:[%s1464 + $0x38] sm:$0xff] %vm760, %v1439
        %1473 = vst.msk [vmem:[%s1464 + $0x40] sm:$0xff] %vm760, %v1442
        %1474 = vst.msk [vmem:[%s1464 + $0x48] sm:$0xff] %vm760, %v1445
        %1475 = vst.msk [vmem:[%s1464 + $0x50] sm:$0xff] %vm760, %v1448
        %1476 = vst.msk [vmem:[%s1464 + $0x58] sm:$0xff] %vm760, %v1451
        %1477 = vst.msk [vmem:[%s1464 + $0x60] sm:$0xff] %vm760, %v1454
        %1478 = vst.msk [vmem:[%s1464 + $0x68] sm:$0xff] %vm760, %v1457
        %1479 = vst.msk [vmem:[%s1464 + $0x70] sm:$0xff] %vm760, %v1460
        %1480 = vst.msk [vmem:[%s1464 + $0x78] sm:$0xff] %vm760, %v1463
        %v1481 = vmul.f32 %v1337, %v1337
        %v1482 = vmul.f32 %v1340, %v1340
        %v1483 = vmul.f32 %v1345, %v1345
        %v1484 = vmul.f32 %v1348, %v1348
        %v1485 = vmul.f32 %v1353, %v1353
        %v1486 = vmul.f32 %v1356, %v1356
        %v1487 = vmul.f32 %v1361, %v1361
        %v1488 = vmul.f32 %v1364, %v1364
        %v1489 = vmul.f32 %v1369, %v1369
        %v1490 = vmul.f32 %v1372, %v1372
        %v1491 = vmul.f32 %v1377, %v1377
        %v1492 = vmul.f32 %v1380, %v1380
        %v1493 = vmul.f32 %v1385, %v1385
        %v1494 = vmul.f32 %v1388, %v1388
        %v1495 = vmul.f32 %v1393, %v1393
        %v1496 = vmul.f32 %v1396, %v1396
        %v1497 = vsel %vm695, %v1481, 0.0
        %1498 = vadd.xlane.f32.xlu0 %v1497
        %v1499 = vpop.xlane.xlu0 %1498
        %v1500 = vsel %vm695, %v1482, 0.0
        %1501 = vadd.xlane.f32.xlu0 %v1500
        %v1502 = vpop.xlane.xlu0 %1501
        %v1503 = vsel %vm695, %v1483, 0.0
        %1504 = vadd.xlane.f32.xlu0 %v1503
        %v1505 = vpop.xlane.xlu0 %1504
        %v1506 = vsel %vm695, %v1484, 0.0
        %1507 = vadd.xlane.f32.xlu0 %v1506
        %v1508 = vpop.xlane.xlu0 %1507
        %v1509 = vsel %vm695, %v1485, 0.0
        %1510 = vadd.xlane.f32.xlu0 %v1509
        %v1511 = vpop.xlane.xlu0 %1510
        %v1512 = vsel %vm695, %v1486, 0.0
        %1513 = vadd.xlane.f32.xlu0 %v1512
        %v1514 = vpop.xlane.xlu0 %1513
        %v1515 = vsel %vm695, %v1487, 0.0
        %1516 = vadd.xlane.f32.xlu0 %v1515
        %v1517 = vpop.xlane.xlu0 %1516
        %v1518 = vsel %vm695, %v1488, 0.0
        %1519 = vadd.xlane.f32.xlu0 %v1518
        %v1520 = vpop.xlane.xlu0 %1519
        %v1521 = vsel %vm695, %v1489, 0.0
        %1522 = vadd.xlane.f32.xlu0 %v1521
        %v1523 = vpop.xlane.xlu0 %1522
        %v1524 = vsel %vm695, %v1490, 0.0
        %1525 = vadd.xlane.f32.xlu0 %v1524
        %v1526 = vpop.xlane.xlu0 %1525
        %v1527 = vsel %vm695, %v1491, 0.0
        %1528 = vadd.xlane.f32.xlu0 %v1527
        %v1529 = vpop.xlane.xlu0 %1528
        %v1530 = vsel %vm695, %v1492, 0.0
        %1531 = vadd.xlane.f32.xlu0 %v1530
        %v1532 = vpop.xlane.xlu0 %1531
        %v1533 = vsel %vm695, %v1493, 0.0
        %1534 = vadd.xlane.f32.xlu0 %v1533
        %v1535 = vpop.xlane.xlu0 %1534
        %v1536 = vsel %vm695, %v1494, 0.0
        %1537 = vadd.xlane.f32.xlu0 %v1536
        %v1538 = vpop.xlane.xlu0 %1537
        %v1539 = vsel %vm695, %v1495, 0.0
        %1540 = vadd.xlane.f32.xlu0 %v1539
        %v1541 = vpop.xlane.xlu0 %1540
        %v1542 = vsel %vm695, %v1496, 0.0
        %1543 = vadd.xlane.f32.xlu0 %v1542
        %v1544 = vpop.xlane.xlu0 %1543
        %s1545 = scalar_lea.vmem %s299, 256
        %1546 = vst.msk [vmem:[%s1545] sm:$0xff] %vm760, %v1499
        %1547 = vst.msk [vmem:[%s1545 + $0x8] sm:$0xff] %vm760, %v1502
        %1548 = vst.msk [vmem:[%s1545 + $0x10] sm:$0xff] %vm760, %v1505
        %1549 = vst.msk [vmem:[%s1545 + $0x18] sm:$0xff] %vm760, %v1508
        %1550 = vst.msk [vmem:[%s1545 + $0x20] sm:$0xff] %vm760, %v1511
        %1551 = vst.msk [vmem:[%s1545 + $0x28] sm:$0xff] %vm760, %v1514
        %1552 = vst.msk [vmem:[%s1545 + $0x30] sm:$0xff] %vm760, %v1517
        %1553 = vst.msk [vmem:[%s1545 + $0x38] sm:$0xff] %vm760, %v1520
        %1554 = vst.msk [vmem:[%s1545 + $0x40] sm:$0xff] %vm760, %v1523
        %1555 = vst.msk [vmem:[%s1545 + $0x48] sm:$0xff] %vm760, %v1526
        %1556 = vst.msk [vmem:[%s1545 + $0x50] sm:$0xff] %vm760, %v1529
        %1557 = vst.msk [vmem:[%s1545 + $0x58] sm:$0xff] %vm760, %v1532
        %1558 = vst.msk [vmem:[%s1545 + $0x60] sm:$0xff] %vm760, %v1535
        %1559 = vst.msk [vmem:[%s1545 + $0x68] sm:$0xff] %vm760, %v1538
        %1560 = vst.msk [vmem:[%s1545 + $0x70] sm:$0xff] %vm760, %v1541
        %1561 = vst.msk [vmem:[%s1545 + $0x78] sm:$0xff] %vm760, %v1544
        %v1562 = vld [vmem:[#allocation2 + $0x8] sm:$0xff]
        %v1563 = vpack.c.bf16 %v1562, %v1562
        %s1564 = scalar_lea.vmem %s2, 192
        %v1565 = vld [vmem:[%s1564] sm:$0xf]
        %v1566 = vld [vmem:[%s1564 + $0x4] sm:$0xf]
        %v1567 = vld [vmem:[%s1564 + $0x8] sm:$0xf]
        %v1568 = vld [vmem:[%s1564 + $0xc] sm:$0xf]
        %v1569 = vld [vmem:[%s1564 + $0x10] sm:$0xf]
        %v1570 = vld [vmem:[%s1564 + $0x14] sm:$0xf]
        %v1571 = vld [vmem:[%s1564 + $0x18] sm:$0xf]
        %v1572 = vld [vmem:[%s1564 + $0x1c] sm:$0xf]
        %v1573 = vld [vmem:[%s1564 + $0x20] sm:$0xf]
        %v1574 = vld [vmem:[%s1564 + $0x24] sm:$0xf]
        %v1575 = vld [vmem:[%s1564 + $0x28] sm:$0xf]
        %v1576 = vld [vmem:[%s1564 + $0x2c] sm:$0xf]
        %v1577 = vld [vmem:[%s1564 + $0x30] sm:$0xf]
        %v1578 = vld [vmem:[%s1564 + $0x34] sm:$0xf]
        %v1579 = vld [vmem:[%s1564 + $0x38] sm:$0xf]
        %v1580 = vld [vmem:[%s1564 + $0x3c] sm:$0xf]
        %v1597 = vunpack.c.l.b16 %v1565
        %v1598 = vunpack.c.l.b16 %v1566
        %v1599 = vunpack.c.l.b16 %v1567
        %v1600 = vunpack.c.l.b16 %v1568
        %v1601 = vunpack.c.l.b16 %v1569
        %v1602 = vunpack.c.l.b16 %v1570
        %v1603 = vunpack.c.l.b16 %v1571
        %v1604 = vunpack.c.l.b16 %v1572
        %v1605 = vunpack.c.l.b16 %v1573
        %v1606 = vunpack.c.l.b16 %v1574
        %v1607 = vunpack.c.l.b16 %v1575
        %v1608 = vunpack.c.l.b16 %v1576
        %v1609 = vunpack.c.l.b16 %v1577
        %v1610 = vunpack.c.l.b16 %v1578
        %v1611 = vunpack.c.l.b16 %v1579
        %v1612 = vunpack.c.l.b16 %v1580
        %v1613 = vpack.c.b16 %v1598, %v1597
        %v1614 = vpack.c.b16 %v1600, %v1599
        %v1615 = vpack.c.b16 %v1602, %v1601
        %v1616 = vpack.c.b16 %v1604, %v1603
        %v1617 = vpack.c.b16 %v1606, %v1605
        %v1618 = vpack.c.b16 %v1608, %v1607
        %v1619 = vpack.c.b16 %v1610, %v1609
        %v1620 = vpack.c.b16 %v1612, %v1611
        %1622 = vrot.lane.b32.xlu0 %v1563, 112
        %v1623 = vpop.permute.xlu0 %1622
        %v1625 = vsel %vm569, %v1613, 0
        %v1628 = vsel %vm569, %v1614, 0
        %v1631 = vsel %vm569, %v1615, 0
        %v1634 = vsel %vm569, %v1616, 0
        %v1637 = vsel %vm569, %v1617, 0
        %v1640 = vsel %vm569, %v1618, 0
        %v1643 = vsel %vm569, %v1619, 0
        %v1646 = vsel %vm569, %v1620, 0
        %v1649 = vsel %vm594, %v1623, 0
        %1651 = vmatprep.subr.bf16.mxu0 0
        %1652 = vmatpush1.bf16.msra.mxu0 %v1649
        %1653 = vmatprep.subr.bf16.mxu0 0
        %1654 = vmatpush1.bf16.msra.mxu0 0
        %1655 = vmatprep.subr.bf16.mxu0 0
        %1656 = vmatpush1.bf16.msra.mxu0 0
        %1657 = vmatprep.subr.bf16.mxu0 0
        %1658 = vmatpush1.bf16.msra.mxu0 0
        %1659 = vmatprep.subr.bf16.mxu0 0
        %1660 = vmatpush1.bf16.msra.mxu0 0
        %1661 = vmatprep.subr.bf16.mxu0 0
        %1662 = vmatpush1.bf16.msra.mxu0 0
        %1663 = vmatprep.subr.bf16.mxu0 0
        %1664 = vmatpush1.bf16.msra.mxu0 0
        %1665 = vmatprep.subr.bf16.mxu0 0
        %1666 = vmatpush1.bf16.msra.mxu0 0
        %1667 = vmatprep.subr.bf16.mxu0 0
        %1668 = vmatpush1.bf16.msra.mxu0 0
        %1669 = vmatprep.subr.bf16.mxu0 0
        %1670 = vmatpush1.bf16.msra.mxu0 0
        %1671 = vmatprep.subr.bf16.mxu0 0
        %1672 = vmatpush1.bf16.msra.mxu0 0
        %1673 = vmatprep.subr.bf16.mxu0 0
        %1674 = vmatpush1.bf16.msra.mxu0 0
        %1675 = vmatprep.subr.bf16.mxu0 0
        %1676 = vmatpush1.bf16.msra.mxu0 0
        %1677 = vmatprep.subr.bf16.mxu0 0
        %1678 = vmatpush1.bf16.msra.mxu0 0
        %1679 = vmatprep.subr.bf16.mxu0 0
        %1680 = vmatpush1.bf16.msra.mxu0 0
        %1681 = vmatprep.subr.bf16.mxu0 0
        %1682 = vmatpush1.bf16.msra.mxu0 0
        %1683 = vmatprep.mubr.bf16.mxu0 0
        %1684 = vmatmul.mubr.bf16.gmra.mrb[0].mxu0 %v1625
        %v1685 = vpop.f32.mrb[0].mxu0
        %v1686 = vadd.f32 0.0, %v1685
        %v1687 = vpop.f32.mrb[0].mxu0
        %v1688 = vpop.f32.mrb[0].mxu0
        %v1689 = vadd.f32 0.0, %v1688
        %v1690 = vpop.f32.mrb[0].mxu0
        %1691 = vmatprep.mubr.bf16.mxu0 0
        %1692 = vmatmul.mubr.bf16.gmra.mrb[0].mxu0 %v1628
        %v1693 = vpop.f32.mrb[0].mxu0
        %v1694 = vadd.f32 0.0, %v1693
        %v1695 = vpop.f32.mrb[0].mxu0
        %v1696 = vpop.f32.mrb[0].mxu0
        %v1697 = vadd.f32 0.0, %v1696
        %v1698 = vpop.f32.mrb[0].mxu0
        %1699 = vmatprep.mubr.bf16.mxu0 0
        %1700 = vmatmul.mubr.bf16.gmra.mrb[0].mxu0 %v1631
        %v1701 = vpop.f32.mrb[0].mxu0
        %v1702 = vadd.f32 0.0, %v1701
        %v1703 = vpop.f32.mrb[0].mxu0
        %v1704 = vpop.f32.mrb[0].mxu0
        %v1705 = vadd.f32 0.0, %v1704
        %v1706 = vpop.f32.mrb[0].mxu0
        %1707 = vmatprep.mubr.bf16.mxu0 0
        %1708 = vmatmul.mubr.bf16.gmra.mrb[0].mxu0 %v1634
        %v1709 = vpop.f32.mrb[0].mxu0
        %v1710 = vadd.f32 0.0, %v1709
        %v1711 = vpop.f32.mrb[0].mxu0
        %v1712 = vpop.f32.mrb[0].mxu0
        %v1713 = vadd.f32 0.0, %v1712
        %v1714 = vpop.f32.mrb[0].mxu0
        %1715 = vmatprep.mubr.bf16.mxu0 0
        %1716 = vmatmul.mubr.bf16.gmra.mrb[0].mxu0 %v1637
        %v1717 = vpop.f32.mrb[0].mxu0
        %v1718 = vadd.f32 0.0, %v1717
        %v1719 = vpop.f32.mrb[0].mxu0
        %v1720 = vpop.f32.mrb[0].mxu0
        %v1721 = vadd.f32 0.0, %v1720
        %v1722 = vpop.f32.mrb[0].mxu0
        %1723 = vmatprep.mubr.bf16.mxu0 0
        %1724 = vmatmul.mubr.bf16.gmra.mrb[0].mxu0 %v1640
        %v1725 = vpop.f32.mrb[0].mxu0
        %v1726 = vadd.f32 0.0, %v1725
        %v1727 = vpop.f32.mrb[0].mxu0
        %v1728 = vpop.f32.mrb[0].mxu0
        %v1729 = vadd.f32 0.0, %v1728
        %v1730 = vpop.f32.mrb[0].mxu0
        %1731 = vmatprep.mubr.bf16.mxu0 0
        %1732 = vmatmul.mubr.bf16.gmra.mrb[0].mxu0 %v1643
        %v1733 = vpop.f32.mrb[0].mxu0
        %v1734 = vadd.f32 0.0, %v1733
        %v1735 = vpop.f32.mrb[0].mxu0
        %v1736 = vpop.f32.mrb[0].mxu0
        %v1737 = vadd.f32 0.0, %v1736
        %v1738 = vpop.f32.mrb[0].mxu0
        %1739 = vmatprep.mubr.bf16.mxu0 0
        %1740 = vmatmul.mubr.bf16.gmra.mrb[0].mxu0 %v1646
        %v1741 = vpop.f32.mrb[0].mxu0
        %v1742 = vadd.f32 0.0, %v1741
        %v1743 = vpop.f32.mrb[0].mxu0
        %v1744 = vpop.f32.mrb[0].mxu0
        %v1745 = vadd.f32 0.0, %v1744
        %v1746 = vpop.f32.mrb[0].mxu0
        %1747 = vdwg.mxu0
        %s1748 = scalar_lea.vmem %s289, 384
        %1749 = vst.msk [vmem:[%s1748] sm:$0xff] %vm695, %v1686
        %1750 = vst.msk [vmem:[%s1748 + $0x8] sm:$0xff] %vm695, %v1689
        %1751 = vst.msk [vmem:[%s1748 + $0x10] sm:$0xff] %vm695, %v1694
        %1752 = vst.msk [vmem:[%s1748 + $0x18] sm:$0xff] %vm695, %v1697
        %1753 = vst.msk [vmem:[%s1748 + $0x20] sm:$0xff] %vm695, %v1702
        %1754 = vst.msk [vmem:[%s1748 + $0x28] sm:$0xff] %vm695, %v1705
        %1755 = vst.msk [vmem:[%s1748 + $0x30] sm:$0xff] %vm695, %v1710
        %1756 = vst.msk [vmem:[%s1748 + $0x38] sm:$0xff] %vm695, %v1713
        %1757 = vst.msk [vmem:[%s1748 + $0x40] sm:$0xff] %vm695, %v1718
        %1758 = vst.msk [vmem:[%s1748 + $0x48] sm:$0xff] %vm695, %v1721
        %1759 = vst.msk [vmem:[%s1748 + $0x50] sm:$0xff] %vm695, %v1726
        %1760 = vst.msk [vmem:[%s1748 + $0x58] sm:$0xff] %vm695, %v1729
        %1761 = vst.msk [vmem:[%s1748 + $0x60] sm:$0xff] %vm695, %v1734
        %1762 = vst.msk [vmem:[%s1748 + $0x68] sm:$0xff] %vm695, %v1737
        %1763 = vst.msk [vmem:[%s1748 + $0x70] sm:$0xff] %vm695, %v1742
        %1764 = vst.msk [vmem:[%s1748 + $0x78] sm:$0xff] %vm695, %v1745
        %v1765 = vsel %vm695, %v1686, 0.0
        %1766 = vadd.xlane.f32.xlu0 %v1765
        %v1767 = vpop.xlane.xlu0 %1766
        %v1768 = vsel %vm695, %v1689, 0.0
        %1769 = vadd.xlane.f32.xlu0 %v1768
        %v1770 = vpop.xlane.xlu0 %1769
        %v1771 = vsel %vm695, %v1694, 0.0
        %1772 = vadd.xlane.f32.xlu0 %v1771
        %v1773 = vpop.xlane.xlu0 %1772
        %v1774 = vsel %vm695, %v1697, 0.0
        %1775 = vadd.xlane.f32.xlu0 %v1774
        %v1776 = vpop.xlane.xlu0 %1775
        %v1777 = vsel %vm695, %v1702, 0.0
        %1778 = vadd.xlane.f32.xlu0 %v1777
        %v1779 = vpop.xlane.xlu0 %1778
        %v1780 = vsel %vm695, %v1705, 0.0
        %1781 = vadd.xlane.f32.xlu0 %v1780
        %v1782 = vpop.xlane.xlu0 %1781
        %v1783 = vsel %vm695, %v1710, 0.0
        %1784 = vadd.xlane.f32.xlu0 %v1783
        %v1785 = vpop.xlane.xlu0 %1784
        %v1786 = vsel %vm695, %v1713, 0.0
        %1787 = vadd.xlane.f32.xlu0 %v1786
        %v1788 = vpop.xlane.xlu0 %1787
        %v1789 = vsel %vm695, %v1718, 0.0
        %1790 = vadd.xlane.f32.xlu0 %v1789
        %v1791 = vpop.xlane.xlu0 %1790
        %v1792 = vsel %vm695, %v1721, 0.0
        %1793 = vadd.xlane.f32.xlu0 %v1792
        %v1794 = vpop.xlane.xlu0 %1793
        %v1795 = vsel %vm695, %v1726, 0.0
        %1796 = vadd.xlane.f32.xlu0 %v1795
        %v1797 = vpop.xlane.xlu0 %1796
        %v1798 = vsel %vm695, %v1729, 0.0
        %1799 = vadd.xlane.f32.xlu0 %v1798
        %v1800 = vpop.xlane.xlu0 %1799
        %v1801 = vsel %vm695, %v1734, 0.0
        %1802 = vadd.xlane.f32.xlu0 %v1801
        %v1803 = vpop.xlane.xlu0 %1802
        %v1804 = vsel %vm695, %v1737, 0.0
        %1805 = vadd.xlane.f32.xlu0 %v1804
        %v1806 = vpop.xlane.xlu0 %1805
        %v1807 = vsel %vm695, %v1742, 0.0
        %1808 = vadd.xlane.f32.xlu0 %v1807
        %v1809 = vpop.xlane.xlu0 %1808
        %v1810 = vsel %vm695, %v1745, 0.0
        %1811 = vadd.xlane.f32.xlu0 %v1810
        %v1812 = vpop.xlane.xlu0 %1811
        %s1813 = scalar_lea.vmem %s294, 384
        %1814 = vst.msk [vmem:[%s1813] sm:$0xff] %vm760, %v1767
        %1815 = vst.msk [vmem:[%s1813 + $0x8] sm:$0xff] %vm760, %v1770
        %1816 = vst.msk [vmem:[%s1813 + $0x10] sm:$0xff] %vm760, %v1773
        %1817 = vst.msk [vmem:[%s1813 + $0x18] sm:$0xff] %vm760, %v1776
        %1818 = vst.msk [vmem:[%s1813 + $0x20] sm:$0xff] %vm760, %v1779
        %1819 = vst.msk [vmem:[%s1813 + $0x28] sm:$0xff] %vm760, %v1782
        %1820 = vst.msk [vmem:[%s1813 + $0x30] sm:$0xff] %vm760, %v1785
        %1821 = vst.msk [vmem:[%s1813 + $0x38] sm:$0xff] %vm760, %v1788
        %1822 = vst.msk [vmem:[%s1813 + $0x40] sm:$0xff] %vm760, %v1791
        %1823 = vst.msk [vmem:[%s1813 + $0x48] sm:$0xff] %vm760, %v1794
        %1824 = vst.msk [vmem:[%s1813 + $0x50] sm:$0xff] %vm760, %v1797
        %1825 = vst.msk [vmem:[%s1813 + $0x58] sm:$0xff] %vm760, %v1800
        %1826 = vst.msk [vmem:[%s1813 + $0x60] sm:$0xff] %vm760, %v1803
        %1827 = vst.msk [vmem:[%s1813 + $0x68] sm:$0xff] %vm760, %v1806
        %1828 = vst.msk [vmem:[%s1813 + $0x70] sm:$0xff] %vm760, %v1809
        %1829 = vst.msk [vmem:[%s1813 + $0x78] sm:$0xff] %vm760, %v1812
        %v1830 = vmul.f32 %v1686, %v1686
        %v1831 = vmul.f32 %v1689, %v1689
        %v1832 = vmul.f32 %v1694, %v1694
        %v1833 = vmul.f32 %v1697, %v1697
        %v1834 = vmul.f32 %v1702, %v1702
        %v1835 = vmul.f32 %v1705, %v1705
        %v1836 = vmul.f32 %v1710, %v1710
        %v1837 = vmul.f32 %v1713, %v1713
        %v1838 = vmul.f32 %v1718, %v1718
        %v1839 = vmul.f32 %v1721, %v1721
        %v1840 = vmul.f32 %v1726, %v1726
        %v1841 = vmul.f32 %v1729, %v1729
        %v1842 = vmul.f32 %v1734, %v1734
        %v1843 = vmul.f32 %v1737, %v1737
        %v1844 = vmul.f32 %v1742, %v1742
        %v1845 = vmul.f32 %v1745, %v1745
        %v1846 = vsel %vm695, %v1830, 0.0
        %1847 = vadd.xlane.f32.xlu0 %v1846
        %v1848 = vpop.xlane.xlu0 %1847
        %v1849 = vsel %vm695, %v1831, 0.0
        %1850 = vadd.xlane.f32.xlu0 %v1849
        %v1851 = vpop.xlane.xlu0 %1850
        %v1852 = vsel %vm695, %v1832, 0.0
        %1853 = vadd.xlane.f32.xlu0 %v1852
        %v1854 = vpop.xlane.xlu0 %1853
        %v1855 = vsel %vm695, %v1833, 0.0
        %1856 = vadd.xlane.f32.xlu0 %v1855
        %v1857 = vpop.xlane.xlu0 %1856
        %v1858 = vsel %vm695, %v1834, 0.0
        %1859 = vadd.xlane.f32.xlu0 %v1858
        %v1860 = vpop.xlane.xlu0 %1859
        %v1861 = vsel %vm695, %v1835, 0.0
        %1862 = vadd.xlane.f32.xlu0 %v1861
        %v1863 = vpop.xlane.xlu0 %1862
        %v1864 = vsel %vm695, %v1836, 0.0
        %1865 = vadd.xlane.f32.xlu0 %v1864
        %v1866 = vpop.xlane.xlu0 %1865
        %v1867 = vsel %vm695, %v1837, 0.0
        %1868 = vadd.xlane.f32.xlu0 %v1867
        %v1869 = vpop.xlane.xlu0 %1868
        %v1870 = vsel %vm695, %v1838, 0.0
        %1871 = vadd.xlane.f32.xlu0 %v1870
        %v1872 = vpop.xlane.xlu0 %1871
        %v1873 = vsel %vm695, %v1839, 0.0
        %1874 = vadd.xlane.f32.xlu0 %v1873
        %v1875 = vpop.xlane.xlu0 %1874
        %v1876 = vsel %vm695, %v1840, 0.0
        %1877 = vadd.xlane.f32.xlu0 %v1876
        %v1878 = vpop.xlane.xlu0 %1877
        %v1879 = vsel %vm695, %v1841, 0.0
        %1880 = vadd.xlane.f32.xlu0 %v1879
        %v1881 = vpop.xlane.xlu0 %1880
        %v1882 = vsel %vm695, %v1842, 0.0
        %1883 = vadd.xlane.f32.xlu0 %v1882
        %v1884 = vpop.xlane.xlu0 %1883
        %v1885 = vsel %vm695, %v1843, 0.0
        %1886 = vadd.xlane.f32.xlu0 %v1885
        %v1887 = vpop.xlane.xlu0 %1886
        %v1888 = vsel %vm695, %v1844, 0.0
        %1889 = vadd.xlane.f32.xlu0 %v1888
        %v1890 = vpop.xlane.xlu0 %1889
        %v1891 = vsel %vm695, %v1845, 0.0
        %1892 = vadd.xlane.f32.xlu0 %v1891
        %v1893 = vpop.xlane.xlu0 %1892
        %s1894 = scalar_lea.vmem %s299, 384
        %1895 = vst.msk [vmem:[%s1894] sm:$0xff] %vm760, %v1848
        %1896 = vst.msk [vmem:[%s1894 + $0x8] sm:$0xff] %vm760, %v1851
        %1897 = vst.msk [vmem:[%s1894 + $0x10] sm:$0xff] %vm760, %v1854
        %1898 = vst.msk [vmem:[%s1894 + $0x18] sm:$0xff] %vm760, %v1857
        %1899 = vst.msk [vmem:[%s1894 + $0x20] sm:$0xff] %vm760, %v1860
        %1900 = vst.msk [vmem:[%s1894 + $0x28] sm:$0xff] %vm760, %v1863
        %1901 = vst.msk [vmem:[%s1894 + $0x30] sm:$0xff] %vm760, %v1866
        %1902 = vst.msk [vmem:[%s1894 + $0x38] sm:$0xff] %vm760, %v1869
        %1903 = vst.msk [vmem:[%s1894 + $0x40] sm:$0xff] %vm760, %v1872
        %1904 = vst.msk [vmem:[%s1894 + $0x48] sm:$0xff] %vm760, %v1875
        %1905 = vst.msk [vmem:[%s1894 + $0x50] sm:$0xff] %vm760, %v1878
        %1906 = vst.msk [vmem:[%s1894 + $0x58] sm:$0xff] %vm760, %v1881
        %1907 = vst.msk [vmem:[%s1894 + $0x60] sm:$0xff] %vm760, %v1884
        %1908 = vst.msk [vmem:[%s1894 + $0x68] sm:$0xff] %vm760, %v1887
        %1909 = vst.msk [vmem:[%s1894 + $0x70] sm:$0xff] %vm760, %v1890
        %1910 = vst.msk [vmem:[%s1894 + $0x78] sm:$0xff] %vm760, %v1893
      $region40: #{ppm_forward.2} parent=31 // pred_fallthru
        _
      %p1911 = scmp.lt.s32.totalorder %s21, 1
      %s1912 = scalar_select %p1911, %s21, 1
      %s1913 = smul.addr %s1912, 64
      %s1914 = smul.addr %s1913, 8
      %s1915 = scalar_lea.vmem %s3, %s1914
      %p1916 = scmp.lt.s32.totalorder %s21, 1
      %s1917 = scalar_select %p1916, %s21, 1
      %s1918 = smul.addr %s1917, 64
      %s1919 = smul.addr %s1918, 8
      %s1920 = scalar_lea.vmem %s4, %s1919
      %p1921 = scmp.lt.s32.totalorder %s21, 1
      %s1922 = scalar_select %p1921, %s21, 1
      %s1923 = smul.addr %s1922, 64
      %s1924 = smul.addr %s1923, 8
      %s1925 = scalar_lea.vmem %s5, %s1924
      // Predicated region
      $region41: #{ppm_forward.2} parent=31 // pred_check
        %p1926 = pneg %p122
      $region42: #{ppm_forward.2} parent=31 // pred_check_branch
        %1928 = sbr.rel (%p1926) target = $region44
      $region43: #{ppm_forward.2} parent=31 // pred_region
        _
      $region44: #{ppm_forward.2} parent=31 // pred_fallthru
        _
      // Predicated region
      $region45: #{ppm_forward.2} parent=31 // pred_check
        %p1929 = pneg %p148
      $region46: #{ppm_forward.2} parent=31 // pred_check_branch
        %1931 = sbr.rel (%p1929) target = $region48
      $region47: #{ppm_forward.2} parent=31 // pred_region
        _
      $region48: #{ppm_forward.2} parent=31 // pred_fallthru
        _
      // Predicated region
      $region49: #{ppm_forward.2} parent=31 // pred_check
        %p1932 = pneg %p174
      $region50: #{ppm_forward.2} parent=31 // pred_check_branch
        %1934 = sbr.rel (%p1932) target = $region52
      $region51: #{ppm_forward.2} parent=31 // pred_region
        _
      $region52: #{ppm_forward.2} parent=31 // pred_fallthru
        _
    $region32: #{ppm_forward.2} parent=5 // pred_fallthru
      _
    %p1935 = scmp.le.s32.totalorder 2, %s12
    // Predicated region
    $region53: #{ppm_forward.2} parent=5 // pred_check
      %p1936 = pneg %p1935
    $region54: #{ppm_forward.2} parent=5 // pred_check_branch
      %1938 = sbr.rel (%p1936) target = $region56
    $region55: #{ppm_forward.2} parent=5 // pred_region
      %s1939 = ssub.s32 %s12, 2
      // Predicated region
      $region57: #{ppm_forward.2} parent=55 // pred_check
        %p1940 = pneg %p128
      $region58: #{ppm_forward.2} parent=55 // pred_check_branch
        %1942 = sbr.rel (%p1940) target = $region60
      $region59: #{ppm_forward.2} parent=55 // pred_region
        %p1943 = scmp.lt.s32.totalorder %s23, 1
        %s1944 = scalar_select %p1943, %s23, 1
        %s1945 = smul.addr %s1944, 64
        %s1946 = smul.addr %s1945, 8
        %s1947 = scalar_lea.vmem %s3, %s1946
      $region60: #{ppm_forward.2} parent=55 // pred_fallthru
        _
      // Predicated region
      $region61: #{ppm_forward.2} parent=55 // pred_check
        %p1948 = pneg %p154
      $region62: #{ppm_forward.2} parent=55 // pred_check_branch
        %1950 = sbr.rel (%p1948) target = $region64
      $region63: #{ppm_forward.2} parent=55 // pred_region
        %p1951 = scmp.lt.s32.totalorder %s23, 1
        %s1952 = scalar_select %p1951, %s23, 1
        %s1953 = smul.addr %s1952, 64
        %s1954 = smul.addr %s1953, 8
        %s1955 = scalar_lea.vmem %s4, %s1954
      $region64: #{ppm_forward.2} parent=55 // pred_fallthru
        _
      // Predicated region
      $region65: #{ppm_forward.2} parent=55 // pred_check
        %p1956 = pneg %p180
      $region66: #{ppm_forward.2} parent=55 // pred_check_branch
        %1958 = sbr.rel (%p1956) target = $region68
      $region67: #{ppm_forward.2} parent=55 // pred_region
        %p1959 = scmp.lt.s32.totalorder %s23, 1
        %s1960 = scalar_select %p1959, %s23, 1
        %s1961 = smul.addr %s1960, 64
        %s1962 = smul.addr %s1961, 8
        %s1963 = scalar_lea.vmem %s5, %s1962
      $region68: #{ppm_forward.2} parent=55 // pred_fallthru
        _
    $region56: #{ppm_forward.2} parent=5 // pred_fallthru
      _
  $region6: #{ppm_forward.2} parent=0 // loop_footer
    %s16 = sadd.s32 1, %s12
  $region7: #{ppm_forward.2} parent=0 // loop_footer_branch
    %11 = sbr.rel target = $region3
  $region8: #{ppm_forward.2} parent=0 // loop_exit
    _

</llo_original>
